<compile_context>
chip_gen: v7x
topology: tpu7x:2x2x1
jax: 0.10.0
libtpu: 0.0.40
codegen_flags: <defaults>
</compile_context>

<pallas_src>
import jax
import jax.numpy as jnp
from jax import lax
from jax.experimental import pallas as pl
from jax.experimental.pallas import tpu as pltpu


# -----------------------------------------------------------------------------
# Kernel helpers (trace-time Python, operate on values inside the kernel)
# -----------------------------------------------------------------------------
def _pad1_hw(x):
    """Zero-pad an (H, W, C) value by 1 on both spatial dims, in-register."""
    H, W, C = x.shape
    zr = jnp.zeros((1, W, C), x.dtype)
    xp = jnp.concatenate([zr, x, zr], axis=0)          # (H+2, W, C)
    zc = jnp.zeros((H + 2, 1, C), x.dtype)
    return jnp.concatenate([zc, xp, zc], axis=1)       # (H+2, W+2, C)


def _conv3x3(x, w2d):
    """3x3 'same' convolution as ONE im2col matmul on the MXU.

    x:   (H, W, Cin) f32 value
    w2d: (9*Cin, Cout) weight (BN scale already folded in), row index is
         (kh*3 + kw)*Cin + cin
    returns (H*W, Cout) f32
    """
    H, W, Cin = x.shape
    xp = _pad1_hw(x)
    taps = [xp[kh:kh + H, kw:kw + W, :] for kh in range(3) for kw in range(3)]
    patch = jnp.concatenate(taps, axis=-1).reshape(H * W, 9 * Cin)
    return jnp.dot(patch, w2d, preferred_element_type=jnp.float32)


# -----------------------------------------------------------------------------
# Fused kernel: conv3x3+BN+LReLU -> conv3x3+BN+LReLU, one batch element per step
# -----------------------------------------------------------------------------
def _double_conv_kernel(x_ref, w1_ref, w2_ref, shifts_ref, out_ref):
    """x_ref:      (1, H, W, Cin)
       w1_ref:     (9*Cin,  Cout)   conv1 weights with BN1 scale folded in
       w2_ref:     (9*Cout, Cout)   conv2 weights with BN2 scale folded in
       shifts_ref: (2, Cout)        row 0: BN1 shift, row 1: BN2 shift
       out_ref:    (1, H, W, Cout)
    """
    H, W, Cout = out_ref.shape[1], out_ref.shape[2], out_ref.shape[3]

    x = x_ref[0]                                         # (H, W, Cin) f32

    # Stage 1: conv3x3 -> folded-BN shift -> LeakyReLU(0.2). `h` stays on-chip.
    h = _conv3x3(x, w1_ref[...]) + shifts_ref[0:1, :]
    h = jnp.where(h > 0, h, 0.2 * h).reshape(H, W, Cout)

    # Stage 2: conv3x3 -> folded-BN shift -> LeakyReLU(0.2).
    y = _conv3x3(h, w2_ref[...]) + shifts_ref[1:2, :]
    y = jnp.where(y > 0, y, 0.2 * y)

    out_ref[0] = y.reshape(H, W, Cout).astype(out_ref.dtype)


# -----------------------------------------------------------------------------
# Wrapper: fold BN into conv weights and launch the fused kernel (NHWC)
# -----------------------------------------------------------------------------
def _fold_conv_bn(w_oihw, gamma, beta, mean, var, eps=1e-5):
    """Fold inference-mode BN into the conv: returns (9*Cin, Cout) weight + shift."""
    scale = gamma / jnp.sqrt(var + eps)                  # (Cout,)
    w_hwio = jnp.transpose(w_oihw, (2, 3, 1, 0))         # (3, 3, Cin, Cout)
    w_folded = w_hwio * scale[None, None, None, :]
    cout, cin = w_oihw.shape[0], w_oihw.shape[1]
    w2d = w_folded.reshape(9 * cin, cout)                # row = (kh*3+kw)*Cin + ci
    shift = beta - mean * scale
    return w2d, shift


@jax.jit
def double_conv_forward(x_nhwc, params):
    """DoubleConv forward, NHWC in / NHWC out (preferred TPU layout)."""
    w1_2d, shift1 = _fold_conv_bn(params["w1"], params["g1"], params["b1"],
                                  params["m1"], params["v1"])
    w2_2d, shift2 = _fold_conv_bn(params["w2"], params["g2"], params["b2"],
                                  params["m2"], params["v2"])
    shifts = jnp.stack([shift1, shift2], axis=0).astype(jnp.float32)   # (2, Cout)

    N, H, W, Cin = x_nhwc.shape
    Cout = w1_2d.shape[1]

    return pl.pallas_call(
        _double_conv_kernel,
        out_shape=jax.ShapeDtypeStruct((N, H, W, Cout), jnp.float32),
        grid_spec=pltpu.PrefetchScalarGridSpec(
            num_scalar_prefetch=0,
            grid=(N,),
            in_specs=[
                pl.BlockSpec((1, H, W, Cin), lambda n: (n, 0, 0, 0)),
                pl.BlockSpec((9 * Cin, Cout), lambda n: (0, 0)),
                pl.BlockSpec((9 * Cout, Cout), lambda n: (0, 0)),
                pl.BlockSpec((2, Cout), lambda n: (0, 0)),
            ],
            out_specs=pl.BlockSpec((1, H, W, Cout), lambda n: (n, 0, 0, 0)),
        ),
        compiler_params=pltpu.CompilerParams(
            dimension_semantics=("parallel",),
            vmem_limit_bytes=32 * 1024 * 1024),   # safe on v7x (64 MiB phys) too
    )(x_nhwc, w1_2d, w2_2d, shifts)


def double_conv_forward_nchw(x_nchw, params):
    """PyTorch-layout adapter (NCHW). Prefer the NHWC entry point above so the
    transposes can be folded into neighbouring layers instead of paid here."""
    x = jnp.transpose(x_nchw, (0, 2, 3, 1))
    y = double_conv_forward(x, params)
    return jnp.transpose(y, (0, 3, 1, 2))


# -----------------------------------------------------------------------------
# Deterministic parameter init + pure-JAX reference (unfused, checks BN folding)
# -----------------------------------------------------------------------------
def make_params(key, in_ch, out_ch):
    ks = jax.random.split(key, 10)
    w1 = 0.1 * jax.random.normal(ks[0], (out_ch, in_ch, 3, 3), jnp.float32)   # OIHW
    w2 = 0.1 * jax.random.normal(ks[1], (out_ch, out_ch, 3, 3), jnp.float32)  # OIHW
    g1 = 1.0 + 0.1 * jax.random.normal(ks[2], (out_ch,), jnp.float32)
    b1 = 0.1 * jax.random.normal(ks[3], (out_ch,), jnp.float32)
    m1 = 0.1 * jax.random.normal(ks[4], (out_ch,), jnp.float32)
    v1 = jnp.abs(jax.random.normal(ks[5], (out_ch,), jnp.float32)) + 0.5
    g2 = 1.0 + 0.1 * jax.random.normal(ks[6], (out_ch,), jnp.float32)
    b2 = 0.1 * jax.random.normal(ks[7], (out_ch,), jnp.float32)
    m2 = 0.1 * jax.random.normal(ks[8], (out_ch,), jnp.float32)
    v2 = jnp.abs(jax.random.normal(ks[9], (out_ch,), jnp.float32)) + 0.5
    return {"w1": w1, "g1": g1, "b1": b1, "m1": m1, "v1": v1,
            "w2": w2, "g2": g2, "b2": b2, "m2": m2, "v2": v2}


def reference_forward(x_nhwc, params, eps=1e-5):
    """Pure-JAX (lax.conv) reference of the same forward pass, NHWC."""
    def conv(x, w_oihw):
        w_hwio = jnp.transpose(w_oihw, (2, 3, 1, 0))
        return lax.conv_general_dilated(
            x, w_hwio, window_strides=(1, 1), padding=((1, 1), (1, 1)),
            dimension_numbers=("NHWC", "HWIO", "NHWC"))

    def bn(y, g, b, m, v):
        return (y - m) / jnp.sqrt(v + eps) * g + b

    def lrelu(y):
        return jnp.where(y > 0, y, 0.2 * y)

    h = lrelu(bn(conv(x_nhwc, params["w1"]),
                 params["g1"], params["b1"], params["m1"], params["v1"]))
    return lrelu(bn(conv(h, params["w2"]),
                    params["g2"], params["b2"], params["m2"], params["v2"]))


# -----------------------------------------------------------------------------
if __name__ == "__main__":
    key = jax.random.PRNGKey(0)
    kx, kp = jax.random.split(key)

    N, H, W, Cin, Cout = 2, 16, 16, 4, 8      # DoubleConv(in_ch=4, out_ch=8)
    x = jax.random.normal(kx, (N, H, W, Cin), jnp.float32)   # NHWC
    params = make_params(kp, Cin, Cout)

    out = jax.block_until_ready(double_conv_forward(x, params))

    ref = reference_forward(x, params)
    assert out.shape == (N, H, W, Cout)
    assert jnp.allclose(out, ref, atol=1e-4, rtol=1e-4), "mismatch vs JAX reference"

    print("KERNEL_OK")
</pallas_src>

<mosaic_0001>
module attributes {stable_mosaic.version = 11 : i64} {
  func.func @_double_conv_kernel(%arg0: i32, %arg1: memref<1x16x16x4xf32, #tpu.memory_space<vmem>>, %arg2: memref<36x8xf32, #tpu.memory_space<vmem>>, %arg3: memref<72x8xf32, #tpu.memory_space<vmem>>, %arg4: memref<2x8xf32, #tpu.memory_space<vmem>>, %arg5: memref<1x16x16x8xf32, #tpu.memory_space<vmem>>) attributes {dimension_semantics = [#tpu.dimension_semantics<parallel>], iteration_bounds = array<i64: 2>, scalar_prefetch = 0 : i64, scratch_operands = 0 : i64, tpu.core_type = #tpu.core_type<tc>, window_params = [{transform_indices = @transform_0, window_bounds = array<i64: 1, 16, 16, 4>}, {pipeline_mode = #tpu.pipeline_mode<synchronous>, transform_indices = @transform_1, window_bounds = array<i64: 36, 8>}, {pipeline_mode = #tpu.pipeline_mode<synchronous>, transform_indices = @transform_2, window_bounds = array<i64: 72, 8>}, {pipeline_mode = #tpu.pipeline_mode<synchronous>, transform_indices = @transform_3, window_bounds = array<i64: 2, 8>}, {transform_indices = @transform_4, window_bounds = array<i64: 1, 16, 16, 8>}]} {
    %c0 = arith.constant 0 : index
    %c0_0 = arith.constant 0 : index
    %c0_1 = arith.constant 0 : index
    %c0_2 = arith.constant 0 : index
    %0 = vector.load %arg1[%c0, %c0_0, %c0_1, %c0_2] : memref<1x16x16x4xf32, #tpu.memory_space<vmem>>, vector<1x16x16x4xf32>
    %1 = vector.shape_cast %0 : vector<1x16x16x4xf32> to vector<16x16x4xf32>
    %c0_3 = arith.constant 0 : index
    %c0_4 = arith.constant 0 : index
    %2 = vector.load %arg2[%c0_3, %c0_4] : memref<36x8xf32, #tpu.memory_space<vmem>>, vector<36x8xf32>
    %cst = arith.constant 0.000000e+00 : f32
    %3 = vector.broadcast %cst : f32 to vector<1x16x4xf32>
    %4 = tpu.concatenate %3, %1, %3 in 0 : vector<1x16x4xf32>, vector<16x16x4xf32>, vector<1x16x4xf32> -> vector<18x16x4xf32>
    %cst_5 = arith.constant 0.000000e+00 : f32
    %5 = vector.broadcast %cst_5 : f32 to vector<18x1x4xf32>
    %6 = tpu.concatenate %5, %4, %5 in 1 : vector<18x1x4xf32>, vector<18x16x4xf32>, vector<18x1x4xf32> -> vector<18x18x4xf32>
    %7 = vector.extract_strided_slice %6 {offsets = [0, 0, 0], sizes = [16, 16, 4], strides = [1, 1, 1]} : vector<18x18x4xf32> to vector<16x16x4xf32>
    %8 = vector.extract_strided_slice %6 {offsets = [0, 1, 0], sizes = [16, 16, 4], strides = [1, 1, 1]} : vector<18x18x4xf32> to vector<16x16x4xf32>
    %9 = vector.extract_strided_slice %6 {offsets = [0, 2, 0], sizes = [16, 16, 4], strides = [1, 1, 1]} : vector<18x18x4xf32> to vector<16x16x4xf32>
    %10 = vector.extract_strided_slice %6 {offsets = [1, 0, 0], sizes = [16, 16, 4], strides = [1, 1, 1]} : vector<18x18x4xf32> to vector<16x16x4xf32>
    %11 = vector.extract_strided_slice %6 {offsets = [1, 1, 0], sizes = [16, 16, 4], strides = [1, 1, 1]} : vector<18x18x4xf32> to vector<16x16x4xf32>
    %12 = vector.extract_strided_slice %6 {offsets = [1, 2, 0], sizes = [16, 16, 4], strides = [1, 1, 1]} : vector<18x18x4xf32> to vector<16x16x4xf32>
    %13 = vector.extract_strided_slice %6 {offsets = [2, 0, 0], sizes = [16, 16, 4], strides = [1, 1, 1]} : vector<18x18x4xf32> to vector<16x16x4xf32>
    %14 = vector.extract_strided_slice %6 {offsets = [2, 1, 0], sizes = [16, 16, 4], strides = [1, 1, 1]} : vector<18x18x4xf32> to vector<16x16x4xf32>
    %15 = vector.extract_strided_slice %6 {offsets = [2, 2, 0], sizes = [16, 16, 4], strides = [1, 1, 1]} : vector<18x18x4xf32> to vector<16x16x4xf32>
    %16 = tpu.concatenate %7, %8, %9, %10, %11, %12, %13, %14, %15 in 2 : vector<16x16x4xf32>, vector<16x16x4xf32>, vector<16x16x4xf32>, vector<16x16x4xf32>, vector<16x16x4xf32>, vector<16x16x4xf32>, vector<16x16x4xf32>, vector<16x16x4xf32>, vector<16x16x4xf32> -> vector<16x16x36xf32>
    %17 = vector.shape_cast %16 : vector<16x16x36xf32> to vector<256x36xf32>
    %cst_6 = arith.constant dense<0.000000e+00> : vector<256x8xf32>
    %18 = tpu.matmul %17, %2, %cst_6 {dimension_numbers = #tpu.dot_dimension_numbers<[1], [0], [0], [1], [0, 0, 1, 1], [], []>} : vector<256x36xf32>, vector<36x8xf32>, vector<256x8xf32> -> vector<256x8xf32>
    %c0_7 = arith.constant 0 : index
    %c0_8 = arith.constant 0 : index
    %19 = vector.load %arg4[%c0_7, %c0_8] : memref<2x8xf32, #tpu.memory_space<vmem>>, vector<1x8xf32>
    %20 = vector.broadcast %19 : vector<1x8xf32> to vector<256x8xf32>
    %21 = arith.addf %18, %20 : vector<256x8xf32>
    %cst_9 = arith.constant 0.000000e+00 : f32
    %22 = vector.broadcast %cst_9 : f32 to vector<256x8xf32>
    %23 = arith.cmpf ogt, %21, %22 : vector<256x8xf32>
    %cst_10 = arith.constant 2.000000e-01 : f32
    %24 = vector.broadcast %cst_10 : f32 to vector<256x8xf32>
    %25 = arith.mulf %24, %21 : vector<256x8xf32>
    %26 = arith.select %23, %21, %25 : vector<256x8xi1>, vector<256x8xf32>
    %27 = vector.shape_cast %26 : vector<256x8xf32> to vector<16x16x8xf32>
    %c0_11 = arith.constant 0 : index
    %c0_12 = arith.constant 0 : index
    %28 = vector.load %arg3[%c0_11, %c0_12] : memref<72x8xf32, #tpu.memory_space<vmem>>, vector<72x8xf32>
    %cst_13 = arith.constant 0.000000e+00 : f32
    %29 = vector.broadcast %cst_13 : f32 to vector<1x16x8xf32>
    %30 = tpu.concatenate %29, %27, %29 in 0 : vector<1x16x8xf32>, vector<16x16x8xf32>, vector<1x16x8xf32> -> vector<18x16x8xf32>
    %cst_14 = arith.constant 0.000000e+00 : f32
    %31 = vector.broadcast %cst_14 : f32 to vector<18x1x8xf32>
    %32 = tpu.concatenate %31, %30, %31 in 1 : vector<18x1x8xf32>, vector<18x16x8xf32>, vector<18x1x8xf32> -> vector<18x18x8xf32>
    %33 = vector.extract_strided_slice %32 {offsets = [0, 0, 0], sizes = [16, 16, 8], strides = [1, 1, 1]} : vector<18x18x8xf32> to vector<16x16x8xf32>
    %34 = vector.extract_strided_slice %32 {offsets = [0, 1, 0], sizes = [16, 16, 8], strides = [1, 1, 1]} : vector<18x18x8xf32> to vector<16x16x8xf32>
    %35 = vector.extract_strided_slice %32 {offsets = [0, 2, 0], sizes = [16, 16, 8], strides = [1, 1, 1]} : vector<18x18x8xf32> to vector<16x16x8xf32>
    %36 = vector.extract_strided_slice %32 {offsets = [1, 0, 0], sizes = [16, 16, 8], strides = [1, 1, 1]} : vector<18x18x8xf32> to vector<16x16x8xf32>
    %37 = vector.extract_strided_slice %32 {offsets = [1, 1, 0], sizes = [16, 16, 8], strides = [1, 1, 1]} : vector<18x18x8xf32> to vector<16x16x8xf32>
    %38 = vector.extract_strided_slice %32 {offsets = [1, 2, 0], sizes = [16, 16, 8], strides = [1, 1, 1]} : vector<18x18x8xf32> to vector<16x16x8xf32>
    %39 = vector.extract_strided_slice %32 {offsets = [2, 0, 0], sizes = [16, 16, 8], strides = [1, 1, 1]} : vector<18x18x8xf32> to vector<16x16x8xf32>
    %40 = vector.extract_strided_slice %32 {offsets = [2, 1, 0], sizes = [16, 16, 8], strides = [1, 1, 1]} : vector<18x18x8xf32> to vector<16x16x8xf32>
    %41 = vector.extract_strided_slice %32 {offsets = [2, 2, 0], sizes = [16, 16, 8], strides = [1, 1, 1]} : vector<18x18x8xf32> to vector<16x16x8xf32>
    %42 = tpu.concatenate %33, %34, %35, %36, %37, %38, %39, %40, %41 in 2 : vector<16x16x8xf32>, vector<16x16x8xf32>, vector<16x16x8xf32>, vector<16x16x8xf32>, vector<16x16x8xf32>, vector<16x16x8xf32>, vector<16x16x8xf32>, vector<16x16x8xf32>, vector<16x16x8xf32> -> vector<16x16x72xf32>
    %43 = vector.shape_cast %42 : vector<16x16x72xf32> to vector<256x72xf32>
    %cst_15 = arith.constant dense<0.000000e+00> : vector<256x8xf32>
    %44 = tpu.matmul %43, %28, %cst_15 {dimension_numbers = #tpu.dot_dimension_numbers<[1], [0], [0], [1], [0, 0, 1, 1], [], []>} : vector<256x72xf32>, vector<72x8xf32>, vector<256x8xf32> -> vector<256x8xf32>
    %c1 = arith.constant 1 : index
    %c0_16 = arith.constant 0 : index
    %45 = vector.load %arg4[%c1, %c0_16] : memref<2x8xf32, #tpu.memory_space<vmem>>, vector<1x8xf32>
    %46 = vector.broadcast %45 : vector<1x8xf32> to vector<256x8xf32>
    %47 = arith.addf %44, %46 : vector<256x8xf32>
    %cst_17 = arith.constant 0.000000e+00 : f32
    %48 = vector.broadcast %cst_17 : f32 to vector<256x8xf32>
    %49 = arith.cmpf ogt, %47, %48 : vector<256x8xf32>
    %cst_18 = arith.constant 2.000000e-01 : f32
    %50 = vector.broadcast %cst_18 : f32 to vector<256x8xf32>
    %51 = arith.mulf %50, %47 : vector<256x8xf32>
    %52 = arith.select %49, %47, %51 : vector<256x8xi1>, vector<256x8xf32>
    %53 = vector.shape_cast %52 : vector<256x8xf32> to vector<16x16x8xf32>
    %c0_19 = arith.constant 0 : index
    %c0_20 = arith.constant 0 : index
    %c0_21 = arith.constant 0 : index
    %c0_22 = arith.constant 0 : index
    %54 = vector.load %arg5[%c0_19, %c0_20, %c0_21, %c0_22] : memref<1x16x16x8xf32, #tpu.memory_space<vmem>>, vector<1x16x16x8xf32>
    %55 = vector.shape_cast %54 : vector<1x16x16x8xf32> to vector<16x16x8xf32>
    %56 = vector.shape_cast %53 : vector<16x16x8xf32> to vector<1x16x16x8xf32>
    tpu.vector_store %arg5[%c0_19, %c0_20, %c0_21, %c0_22], %56 {strides = array<i32>} : memref<1x16x16x8xf32, #tpu.memory_space<vmem>>, vector<1x16x16x8xf32>,
    return
  }
  func.func @transform_0(%arg0: i32) -> (i32, i32, i32, i32) {
    %c0_i32 = arith.constant 0 : i32
    %c0_i32_0 = arith.constant 0 : i32
    %c0_i32_1 = arith.constant 0 : i32
    %c0_i32_2 = arith.constant 0 : i32
    return %arg0, %c0_i32, %c0_i32_0, %c0_i32_1 : i32, i32, i32, i32
  }
  func.func @transform_1(%arg0: i32) -> (i32, i32) {
    %c0_i32 = arith.constant 0 : i32
    %c0_i32_0 = arith.constant 0 : i32
    %c0_i32_1 = arith.constant 0 : i32
    return %c0_i32, %c0_i32_0 : i32, i32
  }
  func.func @transform_2(%arg0: i32) -> (i32, i32) {
    %c0_i32 = arith.constant 0 : i32
    %c0_i32_0 = arith.constant 0 : i32
    %c0_i32_1 = arith.constant 0 : i32
    return %c0_i32, %c0_i32_0 : i32, i32
  }
  func.func @transform_3(%arg0: i32) -> (i32, i32) {
    %c0_i32 = arith.constant 0 : i32
    %c0_i32_0 = arith.constant 0 : i32
    %c0_i32_1 = arith.constant 0 : i32
    return %c0_i32, %c0_i32_0 : i32, i32
  }
  func.func @transform_4(%arg0: i32) -> (i32, i32, i32, i32) {
    %c0_i32 = arith.constant 0 : i32
    %c0_i32_0 = arith.constant 0 : i32
    %c0_i32_1 = arith.constant 0 : i32
    %c0_i32_2 = arith.constant 0 : i32
    return %arg0, %c0_i32, %c0_i32_0, %c0_i32_1 : i32, i32, i32, i32
  }
}

</mosaic_0001>

<llo_original>
// kernel: double_conv_forward.1
$region0: #{double_conv_forward.1}
  #allocation0 [shape = 'u32[]', space=smem, size = 0x4, offset = 0x4, fixed_abs, tag = 'smem constant byte address 0x4 - core index']
  #allocation1 [shape = 'u32[144,128]{1,0:T(1,128)}', space=vmem, size = 0x12000, scoped, tag = 'internal scratch']
  %s0 = inlined_call_operand.vmem [shape: f32[2,16,16,4], index: 0, kind: input, shape index: {}]
  %s1 = inlined_call_operand.vmem [shape: f32[36,8], index: 1, kind: input, shape index: {}]
  %s2 = inlined_call_operand.vmem [shape: f32[72,8], index: 2, kind: input, shape index: {}]
  %s3 = inlined_call_operand.vmem [shape: f32[2,8], index: 3, kind: input, shape index: {}]
  %s4 = inlined_call_operand.vmem [shape: f32[2,16,16,8], index: 4, kind: output, shape index: {}]
  %s5 = sld [smem:[#allocation0]]
  $region49: #{double_conv_forward.1} parent=0
    _
  %s7 = ssub.s32 1, %s5
  %s8 = scalar_select 0, %s7, %s5
  loop: start=0, step=1, limit=4
  $region2: #{double_conv_forward.1} parent=0 // loop_pre_header
    _
  $region3: #{double_conv_forward.1} parent=0 // loop_header
    %s10 = sphi 0, %s14
    %p11 = scmp.ge.s32.totalorder %s10, 4
    %s20 = sphi 0, %s22
    %s23 = sphi 0, %s20
    %s24 = sphi 0, %s23
    %s40 = sphi 0, %s24
    %s44 = sphi 0, %s44
    %s46 = sphi 0, %s44
    %s47 = sphi 0, %s46
    %s61 = sphi 0, %s47
    %s65 = sphi 0, %s65
    %s67 = sphi 0, %s65
    %s68 = sphi 0, %s67
    %s82 = sphi 0, %s68
    %s86 = sphi 0, %s86
    %s88 = sphi 0, %s86
    %s89 = sphi 0, %s88
    %s103 = sphi 0, %s89
    %s109 = sphi 0, %s111
    %s112 = sphi 0, %s109
    %s113 = sphi 0, %s112
    %s129 = sphi 0, %s113
  $region4: #{double_conv_forward.1} parent=0 // loop_header_branch
    %13 = sbr.rel (%p11) target = $region8
  $region5: #{double_conv_forward.1} parent=0 // loop_body
    %s15 = ssub.s32 %s10, 1
    %s16 = ssub.s32 %s10, 2
    %s17 = sadd.s32 %s10, 1
    %s18 = ssub.s32 %s10, %s17
    %p19 = scmp.eq.s32.totalorder %s18, 0
    %s21 = sadd.s32 %s20, 1
    %s22 = scalar_select %p19, %s20, %s21
    %p25 = pneg %p19
    %p26 = scmp.eq.s32.totalorder %s10, 1
    %p27 = por %p25, %p26
    %p28 = scmp.ne.s32.totalorder %s20, %s23
    %p29 = scmp.eq.s32.totalorder %s10, 0
    %p30 = por %p28, %p29
    %p31 = scmp.ne.s32.totalorder %s20, %s23
    %p32 = scmp.eq.s32.totalorder %s15, 1
    %p33 = por %p31, %p32
    %p34 = scmp.ne.s32.totalorder %s23, %s24
    %p35 = scmp.eq.s32.totalorder %s15, 0
    %p36 = por %p34, %p35
    %p37 = scmp.ne.s32.totalorder %s23, %s24
    %p38 = scmp.eq.s32.totalorder %s16, 1
    %p39 = por %p37, %p38
    %p41 = scmp.ne.s32.totalorder %s24, %s40
    %p42 = scmp.eq.s32.totalorder %s16, 0
    %p43 = por %p41, %p42
    %s45 = sadd.s32 %s44, 1
    %p48 = scmp.eq.s32.totalorder %s10, 1
    %p49 = scmp.ne.s32.totalorder %s44, %s46
    %p50 = scmp.eq.s32.totalorder %s10, 0
    %p51 = por %p49, %p50
    %p52 = scmp.ne.s32.totalorder %s44, %s46
    %p53 = scmp.eq.s32.totalorder %s15, 1
    %p54 = por %p52, %p53
    %p55 = scmp.ne.s32.totalorder %s46, %s47
    %p56 = scmp.eq.s32.totalorder %s15, 0
    %p57 = por %p55, %p56
    %p58 = scmp.ne.s32.totalorder %s46, %s47
    %p59 = scmp.eq.s32.totalorder %s16, 1
    %p60 = por %p58, %p59
    %p62 = scmp.ne.s32.totalorder %s47, %s61
    %p63 = scmp.eq.s32.totalorder %s16, 0
    %p64 = por %p62, %p63
    %s66 = sadd.s32 %s65, 1
    %p69 = scmp.eq.s32.totalorder %s10, 1
    %p70 = scmp.ne.s32.totalorder %s65, %s67
    %p71 = scmp.eq.s32.totalorder %s10, 0
    %p72 = por %p70, %p71
    %p73 = scmp.ne.s32.totalorder %s65, %s67
    %p74 = scmp.eq.s32.totalorder %s15, 1
    %p75 = por %p73, %p74
    %p76 = scmp.ne.s32.totalorder %s67, %s68
    %p77 = scmp.eq.s32.totalorder %s15, 0
    %p78 = por %p76, %p77
    %p79 = scmp.ne.s32.totalorder %s67, %s68
    %p80 = scmp.eq.s32.totalorder %s16, 1
    %p81 = por %p79, %p80
    %p83 = scmp.ne.s32.totalorder %s68, %s82
    %p84 = scmp.eq.s32.totalorder %s16, 0
    %p85 = por %p83, %p84
    %s87 = sadd.s32 %s86, 1
    %p90 = scmp.eq.s32.totalorder %s10, 1
    %p91 = scmp.ne.s32.totalorder %s86, %s88
    %p92 = scmp.eq.s32.totalorder %s10, 0
    %p93 = por %p91, %p92
    %p94 = scmp.ne.s32.totalorder %s86, %s88
    %p95 = scmp.eq.s32.totalorder %s15, 1
    %p96 = por %p94, %p95
    %p97 = scmp.ne.s32.totalorder %s88, %s89
    %p98 = scmp.eq.s32.totalorder %s15, 0
    %p99 = por %p97, %p98
    %p100 = scmp.ne.s32.totalorder %s88, %s89
    %p101 = scmp.eq.s32.totalorder %s16, 1
    %p102 = por %p100, %p101
    %p104 = scmp.ne.s32.totalorder %s89, %s103
    %p105 = scmp.eq.s32.totalorder %s16, 0
    %p106 = por %p104, %p105
    %s107 = ssub.s32 %s10, %s17
    %p108 = scmp.eq.s32.totalorder %s107, 0
    %s110 = sadd.s32 %s109, 1
    %s111 = scalar_select %p108, %s109, %s110
    %p114 = pneg %p108
    %p115 = scmp.eq.s32.totalorder %s10, 1
    %p116 = por %p114, %p115
    %p117 = scmp.ne.s32.totalorder %s109, %s112
    %p118 = scmp.eq.s32.totalorder %s10, 0
    %p119 = por %p117, %p118
    %p120 = scmp.ne.s32.totalorder %s109, %s112
    %p121 = scmp.eq.s32.totalorder %s15, 1
    %p122 = por %p120, %p121
    %p123 = scmp.ne.s32.totalorder %s112, %s113
    %p124 = scmp.eq.s32.totalorder %s15, 0
    %p125 = por %p123, %p124
    %p126 = scmp.ne.s32.totalorder %s112, %s113
    %p127 = scmp.eq.s32.totalorder %s16, 1
    %p128 = por %p126, %p127
    %p130 = scmp.ne.s32.totalorder %s113, %s129
    %p131 = scmp.eq.s32.totalorder %s16, 0
    %p132 = por %p130, %p131
    %p133 = scmp.le.s32.totalorder 1, %s10
    %p134 = scmp.lt.s32.totalorder %s10, 3
    %p135 = pnand %p133, %p134
    %p136 = pneg %p135
    // Predicated region
    $region9: #{double_conv_forward.1} parent=5 // pred_check
      _
    $region10: #{double_conv_forward.1} parent=5 // pred_check_branch
      %138 = sbr.rel (%p135) target = $region12
    $region11: #{double_conv_forward.1} parent=5 // pred_region
      %s139 = ssub.s32 %s10, 1
      // Predicated region
      $region13: #{double_conv_forward.1} parent=11 // pred_check
        %p140 = pneg %p57
      $region14: #{double_conv_forward.1} parent=11 // pred_check_branch
        %142 = sbr.rel (%p140) target = $region16
      $region15: #{double_conv_forward.1} parent=11 // pred_region
        _
      $region16: #{double_conv_forward.1} parent=11 // pred_fallthru
        _
      // Predicated region
      $region17: #{double_conv_forward.1} parent=11 // pred_check
        %p143 = pneg %p78
      $region18: #{double_conv_forward.1} parent=11 // pred_check_branch
        %145 = sbr.rel (%p143) target = $region20
      $region19: #{double_conv_forward.1} parent=11 // pred_region
        _
      $region20: #{double_conv_forward.1} parent=11 // pred_fallthru
        _
      // Predicated region
      $region21: #{double_conv_forward.1} parent=11 // pred_check
        %p146 = pneg %p99
      $region22: #{double_conv_forward.1} parent=11 // pred_check_branch
        %148 = sbr.rel (%p146) target = $region24
      $region23: #{double_conv_forward.1} parent=11 // pred_region
        _
      $region24: #{double_conv_forward.1} parent=11 // pred_fallthru
        _
    $region12: #{double_conv_forward.1} parent=5 // pred_fallthru
      _
    %p149 = scmp.lt.s32.totalorder %s10, 2
    // Predicated region
    $region25: #{double_conv_forward.1} parent=5 // pred_check
      %p150 = pneg %p149
    $region26: #{double_conv_forward.1} parent=5 // pred_check_branch
      %152 = sbr.rel (%p150) target = $region28
    $region27: #{double_conv_forward.1} parent=5 // pred_region
      // Predicated region
      $region29: #{double_conv_forward.1} parent=27 // pred_check
        %p153 = pneg %p30
      $region30: #{double_conv_forward.1} parent=27 // pred_check_branch
        %155 = sbr.rel (%p153) target = $region32
      $region31: #{double_conv_forward.1} parent=27 // pred_region
        %p156 = scmp.lt.s32.totalorder %s10, 1
        %s157 = scalar_select %p156, %s10, 1
        %s158 = smul.addr %s157, 32
        %s159 = smul.addr %s158, 8
        %s160 = scalar_lea.vmem %s0, %s159
      $region32: #{double_conv_forward.1} parent=27 // pred_fallthru
        _
    $region28: #{double_conv_forward.1} parent=5 // pred_fallthru
      _
    %p161 = scmp.le.s32.totalorder 1, %s10
    %p162 = scmp.lt.s32.totalorder %s10, 3
    %p163 = pnand %p161, %p162
    %p164 = pneg %p163
    // Predicated region
    $region33: #{double_conv_forward.1} parent=5 // pred_check
      _
    $region34: #{double_conv_forward.1} parent=5 // pred_check_branch
      %166 = sbr.rel (%p163) target = $region36
    $region35: #{double_conv_forward.1} parent=5 // pred_region
      %s167 = ssub.s32 %s10, 1
      %p168 = scmp.lt.s32.totalorder %s15, 1
      %s169 = scalar_select %p168, %s15, 1
      %s170 = smul.addr %s169, 32
      %s171 = smul.addr %s170, 8
      %s172 = scalar_lea.vmem %s0, %s171
      %p173 = pneg %p36
      %p174 = pneg %p33
      %p175 = pneg %p57
      %p176 = pneg %p54
      %p177 = pneg %p78
      %p178 = pneg %p75
      %p179 = pneg %p99
      %p180 = pneg %p96
      %p181 = pneg %p125
      %p182 = pneg %p122
      %p183 = scmp.lt.s32.totalorder %s15, 1
      %s184 = scalar_select %p183, %s15, 1
      %s185 = smul.addr %s184, 32
      %s186 = smul.addr %s185, 8
      %s187 = scalar_lea.vmem %s4, %s186
      %p188 = scmp.lt.s32.totalorder %s15, 1
      %s189 = scalar_select %p188, %s15, 1
      %s190 = smul.addr %s189, 32
      %s191 = smul.addr %s190, 8
      %s192 = scalar_lea.vmem %s0, %s191
      %p193 = scmp.lt.s32.totalorder %s15, 1
      %s194 = scalar_select %p193, %s15, 1
      %s195 = smul.addr %s194, 32
      %s196 = smul.addr %s195, 8
      %s197 = scalar_lea.vmem %s4, %s196
      %v198 = vld [vmem:[%s192] sm:$0xff]
      %v199 = vld [vmem:[%s192 + $0x8] sm:$0xff]
      %v200 = vld [vmem:[%s192 + $0x10] sm:$0xff]
      %v201 = vld [vmem:[%s192 + $0x18] sm:$0xff]
      %v202 = vld [vmem:[%s192 + $0x20] sm:$0xff]
      %v203 = vld [vmem:[%s192 + $0x28] sm:$0xff]
      %v204 = vld [vmem:[%s192 + $0x30] sm:$0xff]
      %v205 = vld [vmem:[%s192 + $0x38] sm:$0xff]
      %v206 = vld [vmem:[%s192 + $0x40] sm:$0xff]
      %v207 = vld [vmem:[%s192 + $0x48] sm:$0xff]
      %v208 = vld [vmem:[%s192 + $0x50] sm:$0xff]
      %v209 = vld [vmem:[%s192 + $0x58] sm:$0xff]
      %v210 = vld [vmem:[%s192 + $0x60] sm:$0xff]
      %v211 = vld [vmem:[%s192 + $0x68] sm:$0xff]
      %v212 = vld [vmem:[%s192 + $0x70] sm:$0xff]
      %v213 = vld [vmem:[%s192 + $0x78] sm:$0xff]
      %v214 = vld [vmem:[%s192 + $0x80] sm:$0xff]
      %v215 = vld [vmem:[%s192 + $0x88] sm:$0xff]
      %v216 = vld [vmem:[%s192 + $0x90] sm:$0xff]
      %v217 = vld [vmem:[%s192 + $0x98] sm:$0xff]
      %v218 = vld [vmem:[%s192 + $0xa0] sm:$0xff]
      %v219 = vld [vmem:[%s192 + $0xa8] sm:$0xff]
      %v220 = vld [vmem:[%s192 + $0xb0] sm:$0xff]
      %v221 = vld [vmem:[%s192 + $0xb8] sm:$0xff]
      %v222 = vld [vmem:[%s192 + $0xc0] sm:$0xff]
      %v223 = vld [vmem:[%s192 + $0xc8] sm:$0xff]
      %v224 = vld [vmem:[%s192 + $0xd0] sm:$0xff]
      %v225 = vld [vmem:[%s192 + $0xd8] sm:$0xff]
      %v226 = vld [vmem:[%s192 + $0xe0] sm:$0xff]
      %v227 = vld [vmem:[%s192 + $0xe8] sm:$0xff]
      %v228 = vld [vmem:[%s192 + $0xf0] sm:$0xff]
      %v229 = vld [vmem:[%s192 + $0xf8] sm:$0xff]
      %v230 = vld [vmem:[%s1] sm:$0xff]
      %v231 = vld [vmem:[%s1 + $0x8] sm:$0xff]
      %v232 = vld [vmem:[%s1 + $0x10] sm:$0xff]
      %v233 = vld [vmem:[%s1 + $0x18] sm:$0xff]
      %v234 = vld [vmem:[%s1 + $0x20] sm:$0xf]
      %vm268 = vcmask 1040384
      %v269 = vrot.slane 0.0, 7
      %v270 = vsel %vm268, %v269, %v269
      %v271 = vrot.slane %v198, 7
      %v272 = vrot.slane %v199, 7
      %v273 = vsel %vm268, %v271, %v272
      %v274 = vrot.slane %v200, 7
      %v275 = vrot.slane %v201, 7
      %v276 = vsel %vm268, %v274, %v275
      %v277 = vrot.slane %v202, 7
      %v278 = vrot.slane %v203, 7
      %v279 = vsel %vm268, %v277, %v278
      %v280 = vrot.slane %v204, 7
      %v281 = vrot.slane %v205, 7
      %v282 = vsel %vm268, %v280, %v281
      %v283 = vrot.slane %v206, 7
      %v284 = vrot.slane %v207, 7
      %v285 = vsel %vm268, %v283, %v284
      %v286 = vrot.slane %v208, 7
      %v287 = vrot.slane %v209, 7
      %v288 = vsel %vm268, %v286, %v287
      %v289 = vrot.slane %v210, 7
      %v290 = vrot.slane %v211, 7
      %v291 = vsel %vm268, %v289, %v290
      %v292 = vrot.slane %v212, 7
      %v293 = vrot.slane %v213, 7
      %v294 = vsel %vm268, %v292, %v293
      %v295 = vrot.slane %v214, 7
      %v296 = vrot.slane %v215, 7
      %v297 = vsel %vm268, %v295, %v296
      %v298 = vrot.slane %v216, 7
      %v299 = vrot.slane %v217, 7
      %v300 = vsel %vm268, %v298, %v299
      %v301 = vrot.slane %v218, 7
      %v302 = vrot.slane %v219, 7
      %v303 = vsel %vm268, %v301, %v302
      %v304 = vrot.slane %v220, 7
      %v305 = vrot.slane %v221, 7
      %v306 = vsel %vm268, %v304, %v305
      %v307 = vrot.slane %v222, 7
      %v308 = vrot.slane %v223, 7
      %v309 = vsel %vm268, %v307, %v308
      %v310 = vrot.slane %v224, 7
      %v311 = vrot.slane %v225, 7
      %v312 = vsel %vm268, %v310, %v311
      %v313 = vrot.slane %v226, 7
      %v314 = vrot.slane %v227, 7
      %v315 = vsel %vm268, %v313, %v314
      %v316 = vrot.slane %v228, 7
      %v317 = vrot.slane %v229, 7
      %v318 = vsel %vm268, %v316, %v317
      %v368 = vsel %vm268, 0.0, %v269
      %v369 = vsel %vm268, 0.0, %v271
      %v370 = vsel %vm268, 0.0, %v274
      %v371 = vsel %vm268, 0.0, %v277
      %v372 = vsel %vm268, 0.0, %v280
      %v373 = vsel %vm268, 0.0, %v283
      %v374 = vsel %vm268, 0.0, %v286
      %v375 = vsel %vm268, 0.0, %v289
      %v376 = vsel %vm268, 0.0, %v292
      %v377 = vsel %vm268, 0.0, %v295
      %v378 = vsel %vm268, 0.0, %v298
      %v379 = vsel %vm268, 0.0, %v301
      %v380 = vsel %vm268, 0.0, %v304
      %v381 = vsel %vm268, 0.0, %v307
      %v382 = vsel %vm268, 0.0, %v310
      %v383 = vsel %vm268, 0.0, %v313
      %v384 = vsel %vm268, 0.0, %v316
      %v385 = vsel %vm268, %v269, 0.0
      %v386 = vsel %vm268, %v272, 0.0
      %v387 = vsel %vm268, %v275, 0.0
      %v388 = vsel %vm268, %v278, 0.0
      %v389 = vsel %vm268, %v281, 0.0
      %v390 = vsel %vm268, %v284, 0.0
      %v391 = vsel %vm268, %v287, 0.0
      %v392 = vsel %vm268, %v290, 0.0
      %v393 = vsel %vm268, %v293, 0.0
      %v394 = vsel %vm268, %v296, 0.0
      %v395 = vsel %vm268, %v299, 0.0
      %v396 = vsel %vm268, %v302, 0.0
      %v397 = vsel %vm268, %v305, 0.0
      %v398 = vsel %vm268, %v308, 0.0
      %v399 = vsel %vm268, %v311, 0.0
      %v400 = vsel %vm268, %v314, 0.0
      %v401 = vsel %vm268, %v317, 0.0
      %vm434 = vcmask 1046528
      %v435 = vrot.slane %v368, 1
      %v436 = vrot.slane %v270, 1
      %v437 = vsel %vm434, %v435, %v436
      %v438 = vrot.slane %v385, 1
      %v439 = vsel %vm434, %v436, %v438
      %v440 = vrot.slane %v369, 1
      %v441 = vrot.slane %v273, 1
      %v442 = vsel %vm434, %v440, %v441
      %v443 = vrot.slane %v386, 1
      %v444 = vsel %vm434, %v441, %v443
      %v445 = vrot.slane %v370, 1
      %v446 = vrot.slane %v276, 1
      %v447 = vsel %vm434, %v445, %v446
      %v448 = vrot.slane %v387, 1
      %v449 = vsel %vm434, %v446, %v448
      %v450 = vrot.slane %v371, 1
      %v451 = vrot.slane %v279, 1
      %v452 = vsel %vm434, %v450, %v451
      %v453 = vrot.slane %v388, 1
      %v454 = vsel %vm434, %v451, %v453
      %v455 = vrot.slane %v372, 1
      %v456 = vrot.slane %v282, 1
      %v457 = vsel %vm434, %v455, %v456
      %v458 = vrot.slane %v389, 1
      %v459 = vsel %vm434, %v456, %v458
      %v460 = vrot.slane %v373, 1
      %v461 = vrot.slane %v285, 1
      %v462 = vsel %vm434, %v460, %v461
      %v463 = vrot.slane %v390, 1
      %v464 = vsel %vm434, %v461, %v463
      %v465 = vrot.slane %v374, 1
      %v466 = vrot.slane %v288, 1
      %v467 = vsel %vm434, %v465, %v466
      %v468 = vrot.slane %v391, 1
      %v469 = vsel %vm434, %v466, %v468
      %v470 = vrot.slane %v375, 1
      %v471 = vrot.slane %v291, 1
      %v472 = vsel %vm434, %v470, %v471
      %v473 = vrot.slane %v392, 1
      %v474 = vsel %vm434, %v471, %v473
      %v475 = vrot.slane %v376, 1
      %v476 = vrot.slane %v294, 1
      %v477 = vsel %vm434, %v475, %v476
      %v478 = vrot.slane %v393, 1
      %v479 = vsel %vm434, %v476, %v478
      %v480 = vrot.slane %v377, 1
      %v481 = vrot.slane %v297, 1
      %v482 = vsel %vm434, %v480, %v481
      %v483 = vrot.slane %v394, 1
      %v484 = vsel %vm434, %v481, %v483
      %v485 = vrot.slane %v378, 1
      %v486 = vrot.slane %v300, 1
      %v487 = vsel %vm434, %v485, %v486
      %v488 = vrot.slane %v395, 1
      %v489 = vsel %vm434, %v486, %v488
      %v490 = vrot.slane %v379, 1
      %v491 = vrot.slane %v303, 1
      %v492 = vsel %vm434, %v490, %v491
      %v493 = vrot.slane %v396, 1
      %v494 = vsel %vm434, %v491, %v493
      %v495 = vrot.slane %v380, 1
      %v496 = vrot.slane %v306, 1
      %v497 = vsel %vm434, %v495, %v496
      %v498 = vrot.slane %v397, 1
      %v499 = vsel %vm434, %v496, %v498
      %v500 = vrot.slane %v381, 1
      %v501 = vrot.slane %v309, 1
      %v502 = vsel %vm434, %v500, %v501
      %v503 = vrot.slane %v398, 1
      %v504 = vsel %vm434, %v501, %v503
      %v505 = vrot.slane %v382, 1
      %v506 = vrot.slane %v312, 1
      %v507 = vsel %vm434, %v505, %v506
      %v508 = vrot.slane %v399, 1
      %v509 = vsel %vm434, %v506, %v508
      %v510 = vrot.slane %v383, 1
      %v511 = vrot.slane %v315, 1
      %v512 = vsel %vm434, %v510, %v511
      %v513 = vrot.slane %v400, 1
      %v514 = vsel %vm434, %v511, %v513
      %515 = vrot.lane.b32.xlu0 %v437, 4
      %v516 = vpop.permute.xlu0 %515
      %517 = vrot.lane.b32.xlu0 %v439, 4
      %v518 = vpop.permute.xlu0 %517
      %519 = vrot.lane.b32.xlu0 %v442, 4
      %v520 = vpop.permute.xlu0 %519
      %521 = vrot.lane.b32.xlu0 %v444, 4
      %v522 = vpop.permute.xlu0 %521
      %523 = vrot.lane.b32.xlu0 %v447, 4
      %v524 = vpop.permute.xlu0 %523
      %525 = vrot.lane.b32.xlu0 %v449, 4
      %v526 = vpop.permute.xlu0 %525
      %527 = vrot.lane.b32.xlu0 %v452, 4
      %v528 = vpop.permute.xlu0 %527
      %529 = vrot.lane.b32.xlu0 %v454, 4
      %v530 = vpop.permute.xlu0 %529
      %531 = vrot.lane.b32.xlu0 %v457, 4
      %v532 = vpop.permute.xlu0 %531
      %533 = vrot.lane.b32.xlu0 %v459, 4
      %v534 = vpop.permute.xlu0 %533
      %535 = vrot.lane.b32.xlu0 %v462, 4
      %v536 = vpop.permute.xlu0 %535
      %537 = vrot.lane.b32.xlu0 %v464, 4
      %v538 = vpop.permute.xlu0 %537
      %539 = vrot.lane.b32.xlu0 %v467, 4
      %v540 = vpop.permute.xlu0 %539
      %541 = vrot.lane.b32.xlu0 %v469, 4
      %v542 = vpop.permute.xlu0 %541
      %543 = vrot.lane.b32.xlu0 %v472, 4
      %v544 = vpop.permute.xlu0 %543
      %545 = vrot.lane.b32.xlu0 %v474, 4
      %v546 = vpop.permute.xlu0 %545
      %547 = vrot.lane.b32.xlu0 %v477, 4
      %v548 = vpop.permute.xlu0 %547
      %549 = vrot.lane.b32.xlu0 %v479, 4
      %v550 = vpop.permute.xlu0 %549
      %551 = vrot.lane.b32.xlu0 %v482, 4
      %v552 = vpop.permute.xlu0 %551
      %553 = vrot.lane.b32.xlu0 %v484, 4
      %v554 = vpop.permute.xlu0 %553
      %555 = vrot.lane.b32.xlu0 %v487, 4
      %v556 = vpop.permute.xlu0 %555
      %557 = vrot.lane.b32.xlu0 %v489, 4
      %v558 = vpop.permute.xlu0 %557
      %559 = vrot.lane.b32.xlu0 %v492, 4
      %v560 = vpop.permute.xlu0 %559
      %561 = vrot.lane.b32.xlu0 %v494, 4
      %v562 = vpop.permute.xlu0 %561
      %563 = vrot.lane.b32.xlu0 %v497, 4
      %v564 = vpop.permute.xlu0 %563
      %565 = vrot.lane.b32.xlu0 %v499, 4
      %v566 = vpop.permute.xlu0 %565
      %567 = vrot.lane.b32.xlu0 %v502, 4
      %v568 = vpop.permute.xlu0 %567
      %569 = vrot.lane.b32.xlu0 %v504, 4
      %v570 = vpop.permute.xlu0 %569
      %571 = vrot.lane.b32.xlu0 %v507, 4
      %v572 = vpop.permute.xlu0 %571
      %573 = vrot.lane.b32.xlu0 %v509, 4
      %v574 = vpop.permute.xlu0 %573
      %575 = vrot.lane.b32.xlu0 %v512, 4
      %v576 = vpop.permute.xlu0 %575
      %577 = vrot.lane.b32.xlu0 %v514, 4
      %v578 = vpop.permute.xlu0 %577
      %vm611 = vcmask 1045504
      %v612 = vrot.slane %v368, 2
      %v613 = vrot.slane %v270, 2
      %v614 = vsel %vm611, %v612, %v613
      %v615 = vrot.slane %v385, 2
      %v616 = vsel %vm611, %v613, %v615
      %v617 = vrot.slane %v369, 2
      %v618 = vrot.slane %v273, 2
      %v619 = vsel %vm611, %v617, %v618
      %v620 = vrot.slane %v386, 2
      %v621 = vsel %vm611, %v618, %v620
      %v622 = vrot.slane %v370, 2
      %v623 = vrot.slane %v276, 2
      %v624 = vsel %vm611, %v622, %v623
      %v625 = vrot.slane %v387, 2
      %v626 = vsel %vm611, %v623, %v625
      %v627 = vrot.slane %v371, 2
      %v628 = vrot.slane %v279, 2
      %v629 = vsel %vm611, %v627, %v628
      %v630 = vrot.slane %v388, 2
      %v631 = vsel %vm611, %v628, %v630
      %v632 = vrot.slane %v372, 2
      %v633 = vrot.slane %v282, 2
      %v634 = vsel %vm611, %v632, %v633
      %v635 = vrot.slane %v389, 2
      %v636 = vsel %vm611, %v633, %v635
      %v637 = vrot.slane %v373, 2
      %v638 = vrot.slane %v285, 2
      %v639 = vsel %vm611, %v637, %v638
      %v640 = vrot.slane %v390, 2
      %v641 = vsel %vm611, %v638, %v640
      %v642 = vrot.slane %v374, 2
      %v643 = vrot.slane %v288, 2
      %v644 = vsel %vm611, %v642, %v643
      %v645 = vrot.slane %v391, 2
      %v646 = vsel %vm611, %v643, %v645
      %v647 = vrot.slane %v375, 2
      %v648 = vrot.slane %v291, 2
      %v649 = vsel %vm611, %v647, %v648
      %v650 = vrot.slane %v392, 2
      %v651 = vsel %vm611, %v648, %v650
      %v652 = vrot.slane %v376, 2
      %v653 = vrot.slane %v294, 2
      %v654 = vsel %vm611, %v652, %v653
      %v655 = vrot.slane %v393, 2
      %v656 = vsel %vm611, %v653, %v655
      %v657 = vrot.slane %v377, 2
      %v658 = vrot.slane %v297, 2
      %v659 = vsel %vm611, %v657, %v658
      %v660 = vrot.slane %v394, 2
      %v661 = vsel %vm611, %v658, %v660
      %v662 = vrot.slane %v378, 2
      %v663 = vrot.slane %v300, 2
      %v664 = vsel %vm611, %v662, %v663
      %v665 = vrot.slane %v395, 2
      %v666 = vsel %vm611, %v663, %v665
      %v667 = vrot.slane %v379, 2
      %v668 = vrot.slane %v303, 2
      %v669 = vsel %vm611, %v667, %v668
      %v670 = vrot.slane %v396, 2
      %v671 = vsel %vm611, %v668, %v670
      %v672 = vrot.slane %v380, 2
      %v673 = vrot.slane %v306, 2
      %v674 = vsel %vm611, %v672, %v673
      %v675 = vrot.slane %v397, 2
      %v676 = vsel %vm611, %v673, %v675
      %v677 = vrot.slane %v381, 2
      %v678 = vrot.slane %v309, 2
      %v679 = vsel %vm611, %v677, %v678
      %v680 = vrot.slane %v398, 2
      %v681 = vsel %vm611, %v678, %v680
      %v682 = vrot.slane %v382, 2
      %v683 = vrot.slane %v312, 2
      %v684 = vsel %vm611, %v682, %v683
      %v685 = vrot.slane %v399, 2
      %v686 = vsel %vm611, %v683, %v685
      %v687 = vrot.slane %v383, 2
      %v688 = vrot.slane %v315, 2
      %v689 = vsel %vm611, %v687, %v688
      %v690 = vrot.slane %v400, 2
      %v691 = vsel %vm611, %v688, %v690
      %692 = vrot.lane.b32.xlu0 %v614, 8
      %v693 = vpop.permute.xlu0 %692
      %694 = vrot.lane.b32.xlu0 %v616, 8
      %v695 = vpop.permute.xlu0 %694
      %696 = vrot.lane.b32.xlu0 %v619, 8
      %v697 = vpop.permute.xlu0 %696
      %698 = vrot.lane.b32.xlu0 %v621, 8
      %v699 = vpop.permute.xlu0 %698
      %700 = vrot.lane.b32.xlu0 %v624, 8
      %v701 = vpop.permute.xlu0 %700
      %702 = vrot.lane.b32.xlu0 %v626, 8
      %v703 = vpop.permute.xlu0 %702
      %704 = vrot.lane.b32.xlu0 %v629, 8
      %v705 = vpop.permute.xlu0 %704
      %706 = vrot.lane.b32.xlu0 %v631, 8
      %v707 = vpop.permute.xlu0 %706
      %708 = vrot.lane.b32.xlu0 %v634, 8
      %v709 = vpop.permute.xlu0 %708
      %710 = vrot.lane.b32.xlu0 %v636, 8
      %v711 = vpop.permute.xlu0 %710
      %712 = vrot.lane.b32.xlu0 %v639, 8
      %v713 = vpop.permute.xlu0 %712
      %714 = vrot.lane.b32.xlu0 %v641, 8
      %v715 = vpop.permute.xlu0 %714
      %716 = vrot.lane.b32.xlu0 %v644, 8
      %v717 = vpop.permute.xlu0 %716
      %718 = vrot.lane.b32.xlu0 %v646, 8
      %v719 = vpop.permute.xlu0 %718
      %720 = vrot.lane.b32.xlu0 %v649, 8
      %v721 = vpop.permute.xlu0 %720
      %722 = vrot.lane.b32.xlu0 %v651, 8
      %v723 = vpop.permute.xlu0 %722
      %724 = vrot.lane.b32.xlu0 %v654, 8
      %v725 = vpop.permute.xlu0 %724
      %726 = vrot.lane.b32.xlu0 %v656, 8
      %v727 = vpop.permute.xlu0 %726
      %728 = vrot.lane.b32.xlu0 %v659, 8
      %v729 = vpop.permute.xlu0 %728
      %730 = vrot.lane.b32.xlu0 %v661, 8
      %v731 = vpop.permute.xlu0 %730
      %732 = vrot.lane.b32.xlu0 %v664, 8
      %v733 = vpop.permute.xlu0 %732
      %734 = vrot.lane.b32.xlu0 %v666, 8
      %v735 = vpop.permute.xlu0 %734
      %736 = vrot.lane.b32.xlu0 %v669, 8
      %v737 = vpop.permute.xlu0 %736
      %738 = vrot.lane.b32.xlu0 %v671, 8
      %v739 = vpop.permute.xlu0 %738
      %740 = vrot.lane.b32.xlu0 %v674, 8
      %v741 = vpop.permute.xlu0 %740
      %742 = vrot.lane.b32.xlu0 %v676, 8
      %v743 = vpop.permute.xlu0 %742
      %744 = vrot.lane.b32.xlu0 %v679, 8
      %v745 = vpop.permute.xlu0 %744
      %746 = vrot.lane.b32.xlu0 %v681, 8
      %v747 = vpop.permute.xlu0 %746
      %748 = vrot.lane.b32.xlu0 %v684, 8
      %v749 = vpop.permute.xlu0 %748
      %750 = vrot.lane.b32.xlu0 %v686, 8
      %v751 = vpop.permute.xlu0 %750
      %752 = vrot.lane.b32.xlu0 %v689, 8
      %v753 = vpop.permute.xlu0 %752
      %754 = vrot.lane.b32.xlu0 %v691, 8
      %v755 = vpop.permute.xlu0 %754
      %789 = vrot.lane.b32.xlu0 %v369, 12
      %v790 = vpop.permute.xlu0 %789
      %791 = vrot.lane.b32.xlu0 %v273, 12
      %v792 = vpop.permute.xlu0 %791
      %793 = vrot.lane.b32.xlu0 %v370, 12
      %v794 = vpop.permute.xlu0 %793
      %795 = vrot.lane.b32.xlu0 %v276, 12
      %v796 = vpop.permute.xlu0 %795
      %797 = vrot.lane.b32.xlu0 %v371, 12
      %v798 = vpop.permute.xlu0 %797
      %799 = vrot.lane.b32.xlu0 %v279, 12
      %v800 = vpop.permute.xlu0 %799
      %801 = vrot.lane.b32.xlu0 %v372, 12
      %v802 = vpop.permute.xlu0 %801
      %803 = vrot.lane.b32.xlu0 %v282, 12
      %v804 = vpop.permute.xlu0 %803
      %805 = vrot.lane.b32.xlu0 %v373, 12
      %v806 = vpop.permute.xlu0 %805
      %807 = vrot.lane.b32.xlu0 %v285, 12
      %v808 = vpop.permute.xlu0 %807
      %809 = vrot.lane.b32.xlu0 %v374, 12
      %v810 = vpop.permute.xlu0 %809
      %811 = vrot.lane.b32.xlu0 %v288, 12
      %v812 = vpop.permute.xlu0 %811
      %813 = vrot.lane.b32.xlu0 %v375, 12
      %v814 = vpop.permute.xlu0 %813
      %815 = vrot.lane.b32.xlu0 %v291, 12
      %v816 = vpop.permute.xlu0 %815
      %817 = vrot.lane.b32.xlu0 %v376, 12
      %v818 = vpop.permute.xlu0 %817
      %819 = vrot.lane.b32.xlu0 %v294, 12
      %v820 = vpop.permute.xlu0 %819
      %821 = vrot.lane.b32.xlu0 %v377, 12
      %v822 = vpop.permute.xlu0 %821
      %823 = vrot.lane.b32.xlu0 %v297, 12
      %v824 = vpop.permute.xlu0 %823
      %825 = vrot.lane.b32.xlu0 %v378, 12
      %v826 = vpop.permute.xlu0 %825
      %827 = vrot.lane.b32.xlu0 %v300, 12
      %v828 = vpop.permute.xlu0 %827
      %829 = vrot.lane.b32.xlu0 %v379, 12
      %v830 = vpop.permute.xlu0 %829
      %831 = vrot.lane.b32.xlu0 %v303, 12
      %v832 = vpop.permute.xlu0 %831
      %833 = vrot.lane.b32.xlu0 %v380, 12
      %v834 = vpop.permute.xlu0 %833
      %835 = vrot.lane.b32.xlu0 %v306, 12
      %v836 = vpop.permute.xlu0 %835
      %837 = vrot.lane.b32.xlu0 %v381, 12
      %v838 = vpop.permute.xlu0 %837
      %839 = vrot.lane.b32.xlu0 %v309, 12
      %v840 = vpop.permute.xlu0 %839
      %841 = vrot.lane.b32.xlu0 %v382, 12
      %v842 = vpop.permute.xlu0 %841
      %843 = vrot.lane.b32.xlu0 %v312, 12
      %v844 = vpop.permute.xlu0 %843
      %845 = vrot.lane.b32.xlu0 %v383, 12
      %v846 = vpop.permute.xlu0 %845
      %847 = vrot.lane.b32.xlu0 %v315, 12
      %v848 = vpop.permute.xlu0 %847
      %849 = vrot.lane.b32.xlu0 %v384, 12
      %v850 = vpop.permute.xlu0 %849
      %851 = vrot.lane.b32.xlu0 %v318, 12
      %v852 = vpop.permute.xlu0 %851
      %v886 = vrot.slane %v384, 1
      %v887 = vrot.slane %v318, 1
      %v888 = vsel %vm434, %v886, %v887
      %v889 = vrot.slane %v401, 1
      %v890 = vsel %vm434, %v887, %v889
      %891 = vrot.lane.b32.xlu0 %v442, 16
      %v892 = vpop.permute.xlu0 %891
      %893 = vrot.lane.b32.xlu0 %v444, 16
      %v894 = vpop.permute.xlu0 %893
      %895 = vrot.lane.b32.xlu0 %v447, 16
      %v896 = vpop.permute.xlu0 %895
      %897 = vrot.lane.b32.xlu0 %v449, 16
      %v898 = vpop.permute.xlu0 %897
      %899 = vrot.lane.b32.xlu0 %v452, 16
      %v900 = vpop.permute.xlu0 %899
      %901 = vrot.lane.b32.xlu0 %v454, 16
      %v902 = vpop.permute.xlu0 %901
      %903 = vrot.lane.b32.xlu0 %v457, 16
      %v904 = vpop.permute.xlu0 %903
      %905 = vrot.lane.b32.xlu0 %v459, 16
      %v906 = vpop.permute.xlu0 %905
      %907 = vrot.lane.b32.xlu0 %v462, 16
      %v908 = vpop.permute.xlu0 %907
      %909 = vrot.lane.b32.xlu0 %v464, 16
      %v910 = vpop.permute.xlu0 %909
      %911 = vrot.lane.b32.xlu0 %v467, 16
      %v912 = vpop.permute.xlu0 %911
      %913 = vrot.lane.b32.xlu0 %v469, 16
      %v914 = vpop.permute.xlu0 %913
      %915 = vrot.lane.b32.xlu0 %v472, 16
      %v916 = vpop.permute.xlu0 %915
      %917 = vrot.lane.b32.xlu0 %v474, 16
      %v918 = vpop.permute.xlu0 %917
      %919 = vrot.lane.b32.xlu0 %v477, 16
      %v920 = vpop.permute.xlu0 %919
      %921 = vrot.lane.b32.xlu0 %v479, 16
      %v922 = vpop.permute.xlu0 %921
      %923 = vrot.lane.b32.xlu0 %v482, 16
      %v924 = vpop.permute.xlu0 %923
      %925 = vrot.lane.b32.xlu0 %v484, 16
      %v926 = vpop.permute.xlu0 %925
      %927 = vrot.lane.b32.xlu0 %v487, 16
      %v928 = vpop.permute.xlu0 %927
      %929 = vrot.lane.b32.xlu0 %v489, 16
      %v930 = vpop.permute.xlu0 %929
      %931 = vrot.lane.b32.xlu0 %v492, 16
      %v932 = vpop.permute.xlu0 %931
      %933 = vrot.lane.b32.xlu0 %v494, 16
      %v934 = vpop.permute.xlu0 %933
      %935 = vrot.lane.b32.xlu0 %v497, 16
      %v936 = vpop.permute.xlu0 %935
      %937 = vrot.lane.b32.xlu0 %v499, 16
      %v938 = vpop.permute.xlu0 %937
      %939 = vrot.lane.b32.xlu0 %v502, 16
      %v940 = vpop.permute.xlu0 %939
      %941 = vrot.lane.b32.xlu0 %v504, 16
      %v942 = vpop.permute.xlu0 %941
      %943 = vrot.lane.b32.xlu0 %v507, 16
      %v944 = vpop.permute.xlu0 %943
      %945 = vrot.lane.b32.xlu0 %v509, 16
      %v946 = vpop.permute.xlu0 %945
      %947 = vrot.lane.b32.xlu0 %v512, 16
      %v948 = vpop.permute.xlu0 %947
      %949 = vrot.lane.b32.xlu0 %v514, 16
      %v950 = vpop.permute.xlu0 %949
      %951 = vrot.lane.b32.xlu0 %v888, 16
      %v952 = vpop.permute.xlu0 %951
      %953 = vrot.lane.b32.xlu0 %v890, 16
      %v954 = vpop.permute.xlu0 %953
      %v987 = vrot.slane %v384, 2
      %v988 = vrot.slane %v318, 2
      %v989 = vsel %vm611, %v987, %v988
      %v990 = vrot.slane %v401, 2
      %v991 = vsel %vm611, %v988, %v990
      %992 = vrot.lane.b32.xlu0 %v619, 20
      %v993 = vpop.permute.xlu0 %992
      %994 = vrot.lane.b32.xlu0 %v621, 20
      %v995 = vpop.permute.xlu0 %994
      %996 = vrot.lane.b32.xlu0 %v624, 20
      %v997 = vpop.permute.xlu0 %996
      %998 = vrot.lane.b32.xlu0 %v626, 20
      %v999 = vpop.permute.xlu0 %998
      %1000 = vrot.lane.b32.xlu0 %v629, 20
      %v1001 = vpop.permute.xlu0 %1000
      %1002 = vrot.lane.b32.xlu0 %v631, 20
      %v1003 = vpop.permute.xlu0 %1002
      %1004 = vrot.lane.b32.xlu0 %v634, 20
      %v1005 = vpop.permute.xlu0 %1004
      %1006 = vrot.lane.b32.xlu0 %v636, 20
      %v1007 = vpop.permute.xlu0 %1006
      %1008 = vrot.lane.b32.xlu0 %v639, 20
      %v1009 = vpop.permute.xlu0 %1008
      %1010 = vrot.lane.b32.xlu0 %v641, 20
      %v1011 = vpop.permute.xlu0 %1010
      %1012 = vrot.lane.b32.xlu0 %v644, 20
      %v1013 = vpop.permute.xlu0 %1012
      %1014 = vrot.lane.b32.xlu0 %v646, 20
      %v1015 = vpop.permute.xlu0 %1014
      %1016 = vrot.lane.b32.xlu0 %v649, 20
      %v1017 = vpop.permute.xlu0 %1016
      %1018 = vrot.lane.b32.xlu0 %v651, 20
      %v1019 = vpop.permute.xlu0 %1018
      %1020 = vrot.lane.b32.xlu0 %v654, 20
      %v1021 = vpop.permute.xlu0 %1020
      %1022 = vrot.lane.b32.xlu0 %v656, 20
      %v1023 = vpop.permute.xlu0 %1022
      %1024 = vrot.lane.b32.xlu0 %v659, 20
      %v1025 = vpop.permute.xlu0 %1024
      %1026 = vrot.lane.b32.xlu0 %v661, 20
      %v1027 = vpop.permute.xlu0 %1026
      %1028 = vrot.lane.b32.xlu0 %v664, 20
      %v1029 = vpop.permute.xlu0 %1028
      %1030 = vrot.lane.b32.xlu0 %v666, 20
      %v1031 = vpop.permute.xlu0 %1030
      %1032 = vrot.lane.b32.xlu0 %v669, 20
      %v1033 = vpop.permute.xlu0 %1032
      %1034 = vrot.lane.b32.xlu0 %v671, 20
      %v1035 = vpop.permute.xlu0 %1034
      %1036 = vrot.lane.b32.xlu0 %v674, 20
      %v1037 = vpop.permute.xlu0 %1036
      %1038 = vrot.lane.b32.xlu0 %v676, 20
      %v1039 = vpop.permute.xlu0 %1038
      %1040 = vrot.lane.b32.xlu0 %v679, 20
      %v1041 = vpop.permute.xlu0 %1040
      %1042 = vrot.lane.b32.xlu0 %v681, 20
      %v1043 = vpop.permute.xlu0 %1042
      %1044 = vrot.lane.b32.xlu0 %v684, 20
      %v1045 = vpop.permute.xlu0 %1044
      %1046 = vrot.lane.b32.xlu0 %v686, 20
      %v1047 = vpop.permute.xlu0 %1046
      %1048 = vrot.lane.b32.xlu0 %v689, 20
      %v1049 = vpop.permute.xlu0 %1048
      %1050 = vrot.lane.b32.xlu0 %v691, 20
      %v1051 = vpop.permute.xlu0 %1050
      %1052 = vrot.lane.b32.xlu0 %v989, 20
      %v1053 = vpop.permute.xlu0 %1052
      %1054 = vrot.lane.b32.xlu0 %v991, 20
      %v1055 = vpop.permute.xlu0 %1054
      %1088 = vrot.lane.b32.xlu0 %v370, 24
      %v1089 = vpop.permute.xlu0 %1088
      %1090 = vrot.lane.b32.xlu0 %v276, 24
      %v1091 = vpop.permute.xlu0 %1090
      %1092 = vrot.lane.b32.xlu0 %v371, 24
      %v1093 = vpop.permute.xlu0 %1092
      %1094 = vrot.lane.b32.xlu0 %v279, 24
      %v1095 = vpop.permute.xlu0 %1094
      %1096 = vrot.lane.b32.xlu0 %v372, 24
      %v1097 = vpop.permute.xlu0 %1096
      %1098 = vrot.lane.b32.xlu0 %v282, 24
      %v1099 = vpop.permute.xlu0 %1098
      %1100 = vrot.lane.b32.xlu0 %v373, 24
      %v1101 = vpop.permute.xlu0 %1100
      %1102 = vrot.lane.b32.xlu0 %v285, 24
      %v1103 = vpop.permute.xlu0 %1102
      %1104 = vrot.lane.b32.xlu0 %v374, 24
      %v1105 = vpop.permute.xlu0 %1104
      %1106 = vrot.lane.b32.xlu0 %v288, 24
      %v1107 = vpop.permute.xlu0 %1106
      %1108 = vrot.lane.b32.xlu0 %v375, 24
      %v1109 = vpop.permute.xlu0 %1108
      %1110 = vrot.lane.b32.xlu0 %v291, 24
      %v1111 = vpop.permute.xlu0 %1110
      %1112 = vrot.lane.b32.xlu0 %v376, 24
      %v1113 = vpop.permute.xlu0 %1112
      %1114 = vrot.lane.b32.xlu0 %v294, 24
      %v1115 = vpop.permute.xlu0 %1114
      %1116 = vrot.lane.b32.xlu0 %v377, 24
      %v1117 = vpop.permute.xlu0 %1116
      %1118 = vrot.lane.b32.xlu0 %v297, 24
      %v1119 = vpop.permute.xlu0 %1118
      %1120 = vrot.lane.b32.xlu0 %v378, 24
      %v1121 = vpop.permute.xlu0 %1120
      %1122 = vrot.lane.b32.xlu0 %v300, 24
      %v1123 = vpop.permute.xlu0 %1122
      %1124 = vrot.lane.b32.xlu0 %v379, 24
      %v1125 = vpop.permute.xlu0 %1124
      %1126 = vrot.lane.b32.xlu0 %v303, 24
      %v1127 = vpop.permute.xlu0 %1126
      %1128 = vrot.lane.b32.xlu0 %v380, 24
      %v1129 = vpop.permute.xlu0 %1128
      %1130 = vrot.lane.b32.xlu0 %v306, 24
      %v1131 = vpop.permute.xlu0 %1130
      %1132 = vrot.lane.b32.xlu0 %v381, 24
      %v1133 = vpop.permute.xlu0 %1132
      %1134 = vrot.lane.b32.xlu0 %v309, 24
      %v1135 = vpop.permute.xlu0 %1134
      %1136 = vrot.lane.b32.xlu0 %v382, 24
      %v1137 = vpop.permute.xlu0 %1136
      %1138 = vrot.lane.b32.xlu0 %v312, 24
      %v1139 = vpop.permute.xlu0 %1138
      %1140 = vrot.lane.b32.xlu0 %v383, 24
      %v1141 = vpop.permute.xlu0 %1140
      %1142 = vrot.lane.b32.xlu0 %v315, 24
      %v1143 = vpop.permute.xlu0 %1142
      %1144 = vrot.lane.b32.xlu0 %v384, 24
      %v1145 = vpop.permute.xlu0 %1144
      %1146 = vrot.lane.b32.xlu0 %v318, 24
      %v1147 = vpop.permute.xlu0 %1146
      %1148 = vrot.lane.b32.xlu0 %v368, 24
      %v1149 = vpop.permute.xlu0 %1148
      %1150 = vrot.lane.b32.xlu0 %v270, 24
      %v1151 = vpop.permute.xlu0 %1150
      %1184 = vrot.lane.b32.xlu0 %v447, 28
      %v1185 = vpop.permute.xlu0 %1184
      %1186 = vrot.lane.b32.xlu0 %v449, 28
      %v1187 = vpop.permute.xlu0 %1186
      %1188 = vrot.lane.b32.xlu0 %v452, 28
      %v1189 = vpop.permute.xlu0 %1188
      %1190 = vrot.lane.b32.xlu0 %v454, 28
      %v1191 = vpop.permute.xlu0 %1190
      %1192 = vrot.lane.b32.xlu0 %v457, 28
      %v1193 = vpop.permute.xlu0 %1192
      %1194 = vrot.lane.b32.xlu0 %v459, 28
      %v1195 = vpop.permute.xlu0 %1194
      %1196 = vrot.lane.b32.xlu0 %v462, 28
      %v1197 = vpop.permute.xlu0 %1196
      %1198 = vrot.lane.b32.xlu0 %v464, 28
      %v1199 = vpop.permute.xlu0 %1198
      %1200 = vrot.lane.b32.xlu0 %v467, 28
      %v1201 = vpop.permute.xlu0 %1200
      %1202 = vrot.lane.b32.xlu0 %v469, 28
      %v1203 = vpop.permute.xlu0 %1202
      %1204 = vrot.lane.b32.xlu0 %v472, 28
      %v1205 = vpop.permute.xlu0 %1204
      %1206 = vrot.lane.b32.xlu0 %v474, 28
      %v1207 = vpop.permute.xlu0 %1206
      %1208 = vrot.lane.b32.xlu0 %v477, 28
      %v1209 = vpop.permute.xlu0 %1208
      %1210 = vrot.lane.b32.xlu0 %v479, 28
      %v1211 = vpop.permute.xlu0 %1210
      %1212 = vrot.lane.b32.xlu0 %v482, 28
      %v1213 = vpop.permute.xlu0 %1212
      %1214 = vrot.lane.b32.xlu0 %v484, 28
      %v1215 = vpop.permute.xlu0 %1214
      %1216 = vrot.lane.b32.xlu0 %v487, 28
      %v1217 = vpop.permute.xlu0 %1216
      %1218 = vrot.lane.b32.xlu0 %v489, 28
      %v1219 = vpop.permute.xlu0 %1218
      %1220 = vrot.lane.b32.xlu0 %v492, 28
      %v1221 = vpop.permute.xlu0 %1220
      %1222 = vrot.lane.b32.xlu0 %v494, 28
      %v1223 = vpop.permute.xlu0 %1222
      %1224 = vrot.lane.b32.xlu0 %v497, 28
      %v1225 = vpop.permute.xlu0 %1224
      %1226 = vrot.lane.b32.xlu0 %v499, 28
      %v1227 = vpop.permute.xlu0 %1226
      %1228 = vrot.lane.b32.xlu0 %v502, 28
      %v1229 = vpop.permute.xlu0 %1228
      %1230 = vrot.lane.b32.xlu0 %v504, 28
      %v1231 = vpop.permute.xlu0 %1230
      %1232 = vrot.lane.b32.xlu0 %v507, 28
      %v1233 = vpop.permute.xlu0 %1232
      %1234 = vrot.lane.b32.xlu0 %v509, 28
      %v1235 = vpop.permute.xlu0 %1234
      %1236 = vrot.lane.b32.xlu0 %v512, 28
      %v1237 = vpop.permute.xlu0 %1236
      %1238 = vrot.lane.b32.xlu0 %v514, 28
      %v1239 = vpop.permute.xlu0 %1238
      %1240 = vrot.lane.b32.xlu0 %v888, 28
      %v1241 = vpop.permute.xlu0 %1240
      %1242 = vrot.lane.b32.xlu0 %v890, 28
      %v1243 = vpop.permute.xlu0 %1242
      %1244 = vrot.lane.b32.xlu0 %v437, 28
      %v1245 = vpop.permute.xlu0 %1244
      %1246 = vrot.lane.b32.xlu0 %v439, 28
      %v1247 = vpop.permute.xlu0 %1246
      %1280 = vrot.lane.b32.xlu0 %v624, 32
      %v1281 = vpop.permute.xlu0 %1280
      %1282 = vrot.lane.b32.xlu0 %v626, 32
      %v1283 = vpop.permute.xlu0 %1282
      %1284 = vrot.lane.b32.xlu0 %v629, 32
      %v1285 = vpop.permute.xlu0 %1284
      %1286 = vrot.lane.b32.xlu0 %v631, 32
      %v1287 = vpop.permute.xlu0 %1286
      %1288 = vrot.lane.b32.xlu0 %v634, 32
      %v1289 = vpop.permute.xlu0 %1288
      %1290 = vrot.lane.b32.xlu0 %v636, 32
      %v1291 = vpop.permute.xlu0 %1290
      %1292 = vrot.lane.b32.xlu0 %v639, 32
      %v1293 = vpop.permute.xlu0 %1292
      %1294 = vrot.lane.b32.xlu0 %v641, 32
      %v1295 = vpop.permute.xlu0 %1294
      %1296 = vrot.lane.b32.xlu0 %v644, 32
      %v1297 = vpop.permute.xlu0 %1296
      %1298 = vrot.lane.b32.xlu0 %v646, 32
      %v1299 = vpop.permute.xlu0 %1298
      %1300 = vrot.lane.b32.xlu0 %v649, 32
      %v1301 = vpop.permute.xlu0 %1300
      %1302 = vrot.lane.b32.xlu0 %v651, 32
      %v1303 = vpop.permute.xlu0 %1302
      %1304 = vrot.lane.b32.xlu0 %v654, 32
      %v1305 = vpop.permute.xlu0 %1304
      %1306 = vrot.lane.b32.xlu0 %v656, 32
      %v1307 = vpop.permute.xlu0 %1306
      %1308 = vrot.lane.b32.xlu0 %v659, 32
      %v1309 = vpop.permute.xlu0 %1308
      %1310 = vrot.lane.b32.xlu0 %v661, 32
      %v1311 = vpop.permute.xlu0 %1310
      %1312 = vrot.lane.b32.xlu0 %v664, 32
      %v1313 = vpop.permute.xlu0 %1312
      %1314 = vrot.lane.b32.xlu0 %v666, 32
      %v1315 = vpop.permute.xlu0 %1314
      %1316 = vrot.lane.b32.xlu0 %v669, 32
      %v1317 = vpop.permute.xlu0 %1316
      %1318 = vrot.lane.b32.xlu0 %v671, 32
      %v1319 = vpop.permute.xlu0 %1318
      %1320 = vrot.lane.b32.xlu0 %v674, 32
      %v1321 = vpop.permute.xlu0 %1320
      %1322 = vrot.lane.b32.xlu0 %v676, 32
      %v1323 = vpop.permute.xlu0 %1322
      %1324 = vrot.lane.b32.xlu0 %v679, 32
      %v1325 = vpop.permute.xlu0 %1324
      %1326 = vrot.lane.b32.xlu0 %v681, 32
      %v1327 = vpop.permute.xlu0 %1326
      %1328 = vrot.lane.b32.xlu0 %v684, 32
      %v1329 = vpop.permute.xlu0 %1328
      %1330 = vrot.lane.b32.xlu0 %v686, 32
      %v1331 = vpop.permute.xlu0 %1330
      %1332 = vrot.lane.b32.xlu0 %v689, 32
      %v1333 = vpop.permute.xlu0 %1332
      %1334 = vrot.lane.b32.xlu0 %v691, 32
      %v1335 = vpop.permute.xlu0 %1334
      %1336 = vrot.lane.b32.xlu0 %v989, 32
      %v1337 = vpop.permute.xlu0 %1336
      %1338 = vrot.lane.b32.xlu0 %v991, 32
      %v1339 = vpop.permute.xlu0 %1338
      %1340 = vrot.lane.b32.xlu0 %v614, 32
      %v1341 = vpop.permute.xlu0 %1340
      %1342 = vrot.lane.b32.xlu0 %v616, 32
      %v1343 = vpop.permute.xlu0 %1342
      %vm1376 = vcmask 31744
      %v1377 = vsel %vm1376, %v368, %v516
      %v1378 = vsel %vm1376, %v270, %v518
      %v1379 = vsel %vm1376, %v369, %v520
      %v1380 = vsel %vm1376, %v273, %v522
      %v1381 = vsel %vm1376, %v370, %v524
      %v1382 = vsel %vm1376, %v276, %v526
      %v1383 = vsel %vm1376, %v371, %v528
      %v1384 = vsel %vm1376, %v279, %v530
      %v1385 = vsel %vm1376, %v372, %v532
      %v1386 = vsel %vm1376, %v282, %v534
      %v1387 = vsel %vm1376, %v373, %v536
      %v1388 = vsel %vm1376, %v285, %v538
      %v1389 = vsel %vm1376, %v374, %v540
      %v1390 = vsel %vm1376, %v288, %v542
      %v1391 = vsel %vm1376, %v375, %v544
      %v1392 = vsel %vm1376, %v291, %v546
      %v1393 = vsel %vm1376, %v376, %v548
      %v1394 = vsel %vm1376, %v294, %v550
      %v1395 = vsel %vm1376, %v377, %v552
      %v1396 = vsel %vm1376, %v297, %v554
      %v1397 = vsel %vm1376, %v378, %v556
      %v1398 = vsel %vm1376, %v300, %v558
      %v1399 = vsel %vm1376, %v379, %v560
      %v1400 = vsel %vm1376, %v303, %v562
      %v1401 = vsel %vm1376, %v380, %v564
      %v1402 = vsel %vm1376, %v306, %v566
      %v1403 = vsel %vm1376, %v381, %v568
      %v1404 = vsel %vm1376, %v309, %v570
      %v1405 = vsel %vm1376, %v382, %v572
      %v1406 = vsel %vm1376, %v312, %v574
      %v1407 = vsel %vm1376, %v383, %v576
      %v1408 = vsel %vm1376, %v315, %v578
      %vm1409 = vcmask 64512
      %v1410 = vsel %vm1409, %v1377, %v693
      %v1411 = vsel %vm1409, %v1378, %v695
      %v1412 = vsel %vm1409, %v1379, %v697
      %v1413 = vsel %vm1409, %v1380, %v699
      %v1414 = vsel %vm1409, %v1381, %v701
      %v1415 = vsel %vm1409, %v1382, %v703
      %v1416 = vsel %vm1409, %v1383, %v705
      %v1417 = vsel %vm1409, %v1384, %v707
      %v1418 = vsel %vm1409, %v1385, %v709
      %v1419 = vsel %vm1409, %v1386, %v711
      %v1420 = vsel %vm1409, %v1387, %v713
      %v1421 = vsel %vm1409, %v1388, %v715
      %v1422 = vsel %vm1409, %v1389, %v717
      %v1423 = vsel %vm1409, %v1390, %v719
      %v1424 = vsel %vm1409, %v1391, %v721
      %v1425 = vsel %vm1409, %v1392, %v723
      %v1426 = vsel %vm1409, %v1393, %v725
      %v1427 = vsel %vm1409, %v1394, %v727
      %v1428 = vsel %vm1409, %v1395, %v729
      %v1429 = vsel %vm1409, %v1396, %v731
      %v1430 = vsel %vm1409, %v1397, %v733
      %v1431 = vsel %vm1409, %v1398, %v735
      %v1432 = vsel %vm1409, %v1399, %v737
      %v1433 = vsel %vm1409, %v1400, %v739
      %v1434 = vsel %vm1409, %v1401, %v741
      %v1435 = vsel %vm1409, %v1402, %v743
      %v1436 = vsel %vm1409, %v1403, %v745
      %v1437 = vsel %vm1409, %v1404, %v747
      %v1438 = vsel %vm1409, %v1405, %v749
      %v1439 = vsel %vm1409, %v1406, %v751
      %v1440 = vsel %vm1409, %v1407, %v753
      %v1441 = vsel %vm1409, %v1408, %v755
      %vm1442 = vcmask 97280
      %v1443 = vsel %vm1442, %v1410, %v790
      %v1444 = vsel %vm1442, %v1411, %v792
      %v1445 = vsel %vm1442, %v1412, %v794
      %v1446 = vsel %vm1442, %v1413, %v796
      %v1447 = vsel %vm1442, %v1414, %v798
      %v1448 = vsel %vm1442, %v1415, %v800
      %v1449 = vsel %vm1442, %v1416, %v802
      %v1450 = vsel %vm1442, %v1417, %v804
      %v1451 = vsel %vm1442, %v1418, %v806
      %v1452 = vsel %vm1442, %v1419, %v808
      %v1453 = vsel %vm1442, %v1420, %v810
      %v1454 = vsel %vm1442, %v1421, %v812
      %v1455 = vsel %vm1442, %v1422, %v814
      %v1456 = vsel %vm1442, %v1423, %v816
      %v1457 = vsel %vm1442, %v1424, %v818
      %v1458 = vsel %vm1442, %v1425, %v820
      %v1459 = vsel %vm1442, %v1426, %v822
      %v1460 = vsel %vm1442, %v1427, %v824
      %v1461 = vsel %vm1442, %v1428, %v826
      %v1462 = vsel %vm1442, %v1429, %v828
      %v1463 = vsel %vm1442, %v1430, %v830
      %v1464 = vsel %vm1442, %v1431, %v832
      %v1465 = vsel %vm1442, %v1432, %v834
      %v1466 = vsel %vm1442, %v1433, %v836
      %v1467 = vsel %vm1442, %v1434, %v838
      %v1468 = vsel %vm1442, %v1435, %v840
      %v1469 = vsel %vm1442, %v1436, %v842
      %v1470 = vsel %vm1442, %v1437, %v844
      %v1471 = vsel %vm1442, %v1438, %v846
      %v1472 = vsel %vm1442, %v1439, %v848
      %v1473 = vsel %vm1442, %v1440, %v850
      %v1474 = vsel %vm1442, %v1441, %v852
      %vm1475 = vcmask 130048
      %v1476 = vsel %vm1475, %v1443, %v892
      %v1477 = vsel %vm1475, %v1444, %v894
      %v1478 = vsel %vm1475, %v1445, %v896
      %v1479 = vsel %vm1475, %v1446, %v898
      %v1480 = vsel %vm1475, %v1447, %v900
      %v1481 = vsel %vm1475, %v1448, %v902
      %v1482 = vsel %vm1475, %v1449, %v904
      %v1483 = vsel %vm1475, %v1450, %v906
      %v1484 = vsel %vm1475, %v1451, %v908
      %v1485 = vsel %vm1475, %v1452, %v910
      %v1486 = vsel %vm1475, %v1453, %v912
      %v1487 = vsel %vm1475, %v1454, %v914
      %v1488 = vsel %vm1475, %v1455, %v916
      %v1489 = vsel %vm1475, %v1456, %v918
      %v1490 = vsel %vm1475, %v1457, %v920
      %v1491 = vsel %vm1475, %v1458, %v922
      %v1492 = vsel %vm1475, %v1459, %v924
      %v1493 = vsel %vm1475, %v1460, %v926
      %v1494 = vsel %vm1475, %v1461, %v928
      %v1495 = vsel %vm1475, %v1462, %v930
      %v1496 = vsel %vm1475, %v1463, %v932
      %v1497 = vsel %vm1475, %v1464, %v934
      %v1498 = vsel %vm1475, %v1465, %v936
      %v1499 = vsel %vm1475, %v1466, %v938
      %v1500 = vsel %vm1475, %v1467, %v940
      %v1501 = vsel %vm1475, %v1468, %v942
      %v1502 = vsel %vm1475, %v1469, %v944
      %v1503 = vsel %vm1475, %v1470, %v946
      %v1504 = vsel %vm1475, %v1471, %v948
      %v1505 = vsel %vm1475, %v1472, %v950
      %v1506 = vsel %vm1475, %v1473, %v952
      %v1507 = vsel %vm1475, %v1474, %v954
      %vm1508 = vcmask 162816
      %v1509 = vsel %vm1508, %v1476, %v993
      %v1510 = vsel %vm1508, %v1477, %v995
      %v1511 = vsel %vm1508, %v1478, %v997
      %v1512 = vsel %vm1508, %v1479, %v999
      %v1513 = vsel %vm1508, %v1480, %v1001
      %v1514 = vsel %vm1508, %v1481, %v1003
      %v1515 = vsel %vm1508, %v1482, %v1005
      %v1516 = vsel %vm1508, %v1483, %v1007
      %v1517 = vsel %vm1508, %v1484, %v1009
      %v1518 = vsel %vm1508, %v1485, %v1011
      %v1519 = vsel %vm1508, %v1486, %v1013
      %v1520 = vsel %vm1508, %v1487, %v1015
      %v1521 = vsel %vm1508, %v1488, %v1017
      %v1522 = vsel %vm1508, %v1489, %v1019
      %v1523 = vsel %vm1508, %v1490, %v1021
      %v1524 = vsel %vm1508, %v1491, %v1023
      %v1525 = vsel %vm1508, %v1492, %v1025
      %v1526 = vsel %vm1508, %v1493, %v1027
      %v1527 = vsel %vm1508, %v1494, %v1029
      %v1528 = vsel %vm1508, %v1495, %v1031
      %v1529 = vsel %vm1508, %v1496, %v1033
      %v1530 = vsel %vm1508, %v1497, %v1035
      %v1531 = vsel %vm1508, %v1498, %v1037
      %v1532 = vsel %vm1508, %v1499, %v1039
      %v1533 = vsel %vm1508, %v1500, %v1041
      %v1534 = vsel %vm1508, %v1501, %v1043
      %v1535 = vsel %vm1508, %v1502, %v1045
      %v1536 = vsel %vm1508, %v1503, %v1047
      %v1537 = vsel %vm1508, %v1504, %v1049
      %v1538 = vsel %vm1508, %v1505, %v1051
      %v1539 = vsel %vm1508, %v1506, %v1053
      %v1540 = vsel %vm1508, %v1507, %v1055
      %vm1541 = vcmask 195584
      %v1542 = vsel %vm1541, %v1509, %v1089
      %v1543 = vsel %vm1541, %v1510, %v1091
      %v1544 = vsel %vm1541, %v1511, %v1093
      %v1545 = vsel %vm1541, %v1512, %v1095
      %v1546 = vsel %vm1541, %v1513, %v1097
      %v1547 = vsel %vm1541, %v1514, %v1099
      %v1548 = vsel %vm1541, %v1515, %v1101
      %v1549 = vsel %vm1541, %v1516, %v1103
      %v1550 = vsel %vm1541, %v1517, %v1105
      %v1551 = vsel %vm1541, %v1518, %v1107
      %v1552 = vsel %vm1541, %v1519, %v1109
      %v1553 = vsel %vm1541, %v1520, %v1111
      %v1554 = vsel %vm1541, %v1521, %v1113
      %v1555 = vsel %vm1541, %v1522, %v1115
      %v1556 = vsel %vm1541, %v1523, %v1117
      %v1557 = vsel %vm1541, %v1524, %v1119
      %v1558 = vsel %vm1541, %v1525, %v1121
      %v1559 = vsel %vm1541, %v1526, %v1123
      %v1560 = vsel %vm1541, %v1527, %v1125
      %v1561 = vsel %vm1541, %v1528, %v1127
      %v1562 = vsel %vm1541, %v1529, %v1129
      %v1563 = vsel %vm1541, %v1530, %v1131
      %v1564 = vsel %vm1541, %v1531, %v1133
      %v1565 = vsel %vm1541, %v1532, %v1135
      %v1566 = vsel %vm1541, %v1533, %v1137
      %v1567 = vsel %vm1541, %v1534, %v1139
      %v1568 = vsel %vm1541, %v1535, %v1141
      %v1569 = vsel %vm1541, %v1536, %v1143
      %v1570 = vsel %vm1541, %v1537, %v1145
      %v1571 = vsel %vm1541, %v1538, %v1147
      %v1572 = vsel %vm1541, %v1539, %v1149
      %v1573 = vsel %vm1541, %v1540, %v1151
      %vm1574 = vcmask 228352
      %v1575 = vsel %vm1574, %v1542, %v1185
      %v1576 = vsel %vm1574, %v1543, %v1187
      %v1577 = vsel %vm1574, %v1544, %v1189
      %v1578 = vsel %vm1574, %v1545, %v1191
      %v1579 = vsel %vm1574, %v1546, %v1193
      %v1580 = vsel %vm1574, %v1547, %v1195
      %v1581 = vsel %vm1574, %v1548, %v1197
      %v1582 = vsel %vm1574, %v1549, %v1199
      %v1583 = vsel %vm1574, %v1550, %v1201
      %v1584 = vsel %vm1574, %v1551, %v1203
      %v1585 = vsel %vm1574, %v1552, %v1205
      %v1586 = vsel %vm1574, %v1553, %v1207
      %v1587 = vsel %vm1574, %v1554, %v1209
      %v1588 = vsel %vm1574, %v1555, %v1211
      %v1589 = vsel %vm1574, %v1556, %v1213
      %v1590 = vsel %vm1574, %v1557, %v1215
      %v1591 = vsel %vm1574, %v1558, %v1217
      %v1592 = vsel %vm1574, %v1559, %v1219
      %v1593 = vsel %vm1574, %v1560, %v1221
      %v1594 = vsel %vm1574, %v1561, %v1223
      %v1595 = vsel %vm1574, %v1562, %v1225
      %v1596 = vsel %vm1574, %v1563, %v1227
      %v1597 = vsel %vm1574, %v1564, %v1229
      %v1598 = vsel %vm1574, %v1565, %v1231
      %v1599 = vsel %vm1574, %v1566, %v1233
      %v1600 = vsel %vm1574, %v1567, %v1235
      %v1601 = vsel %vm1574, %v1568, %v1237
      %v1602 = vsel %vm1574, %v1569, %v1239
      %v1603 = vsel %vm1574, %v1570, %v1241
      %v1604 = vsel %vm1574, %v1571, %v1243
      %v1605 = vsel %vm1574, %v1572, %v1245
      %v1606 = vsel %vm1574, %v1573, %v1247
      %vm1607 = vcmask 261120
      %v1608 = vsel %vm1607, %v1575, %v1281
      %v1609 = vsel %vm1607, %v1576, %v1283
      %v1610 = vsel %vm1607, %v1577, %v1285
      %v1611 = vsel %vm1607, %v1578, %v1287
      %v1612 = vsel %vm1607, %v1579, %v1289
      %v1613 = vsel %vm1607, %v1580, %v1291
      %v1614 = vsel %vm1607, %v1581, %v1293
      %v1615 = vsel %vm1607, %v1582, %v1295
      %v1616 = vsel %vm1607, %v1583, %v1297
      %v1617 = vsel %vm1607, %v1584, %v1299
      %v1618 = vsel %vm1607, %v1585, %v1301
      %v1619 = vsel %vm1607, %v1586, %v1303
      %v1620 = vsel %vm1607, %v1587, %v1305
      %v1621 = vsel %vm1607, %v1588, %v1307
      %v1622 = vsel %vm1607, %v1589, %v1309
      %v1623 = vsel %vm1607, %v1590, %v1311
      %v1624 = vsel %vm1607, %v1591, %v1313
      %v1625 = vsel %vm1607, %v1592, %v1315
      %v1626 = vsel %vm1607, %v1593, %v1317
      %v1627 = vsel %vm1607, %v1594, %v1319
      %v1628 = vsel %vm1607, %v1595, %v1321
      %v1629 = vsel %vm1607, %v1596, %v1323
      %v1630 = vsel %vm1607, %v1597, %v1325
      %v1631 = vsel %vm1607, %v1598, %v1327
      %v1632 = vsel %vm1607, %v1599, %v1329
      %v1633 = vsel %vm1607, %v1600, %v1331
      %v1634 = vsel %vm1607, %v1601, %v1333
      %v1635 = vsel %vm1607, %v1602, %v1335
      %v1636 = vsel %vm1607, %v1603, %v1337
      %v1637 = vsel %vm1607, %v1604, %v1339
      %v1638 = vsel %vm1607, %v1605, %v1341
      %v1639 = vsel %vm1607, %v1606, %v1343
      %v1640 = vld [vmem:[%s3] sm:$0x1]
      %v1641 = vlaneseq
      %v1642 = vshrl.u32 %v1641, 7
      %v1643 = vsub.s32 0, %v1642
      %v1644 = vrot.slane %v1640, %v1643
      %vm1645 = vcmask 293888
      %v1647 = vsel %vm1645, %v1608, 0
      %v1650 = vsel %vm1645, %v1609, 0
      %v1653 = vsel %vm1645, %v1610, 0
      %v1656 = vsel %vm1645, %v1611, 0
      %v1659 = vsel %vm1645, %v1612, 0
      %v1662 = vsel %vm1645, %v1613, 0
      %v1665 = vsel %vm1645, %v1614, 0
      %v1668 = vsel %vm1645, %v1615, 0
      %v1671 = vsel %vm1645, %v1616, 0
      %v1674 = vsel %vm1645, %v1617, 0
      %v1677 = vsel %vm1645, %v1618, 0
      %v1680 = vsel %vm1645, %v1619, 0
      %v1683 = vsel %vm1645, %v1620, 0
      %v1686 = vsel %vm1645, %v1621, 0
      %v1689 = vsel %vm1645, %v1622, 0
      %v1692 = vsel %vm1645, %v1623, 0
      %v1695 = vsel %vm1645, %v1624, 0
      %v1698 = vsel %vm1645, %v1625, 0
      %v1701 = vsel %vm1645, %v1626, 0
      %v1704 = vsel %vm1645, %v1627, 0
      %v1707 = vsel %vm1645, %v1628, 0
      %v1710 = vsel %vm1645, %v1629, 0
      %v1713 = vsel %vm1645, %v1630, 0
      %v1716 = vsel %vm1645, %v1631, 0
      %v1719 = vsel %vm1645, %v1632, 0
      %v1722 = vsel %vm1645, %v1633, 0
      %v1725 = vsel %vm1645, %v1634, 0
      %v1728 = vsel %vm1645, %v1635, 0
      %v1731 = vsel %vm1645, %v1636, 0
      %v1734 = vsel %vm1645, %v1637, 0
      %v1737 = vsel %vm1645, %v1638, 0
      %v1740 = vsel %vm1645, %v1639, 0
      %vm1742 = vcmask 1043456
      %v1744 = vsel %vm1742, %v234, 0
      %1746 = vmatprep.subr.mxu0 0.0
      %1747 = vmatpush1.msra.mxu0 %v230
      %1748 = vmatprep.subr.mxu0 0.0
      %1749 = vmatpush1.msra.mxu0 %v231
      %1750 = vmatprep.subr.mxu0 0.0
      %1751 = vmatpush1.msra.mxu0 %v232
      %1752 = vmatprep.subr.mxu0 0.0
      %1753 = vmatpush1.msra.mxu0 %v233
      %1754 = vmatprep.subr.mxu0 0.0
      %1755 = vmatpush1.msra.mxu0 %v1744
      %1756 = vmatprep.subr.mxu0 0.0
      %1757 = vmatpush1.msra.mxu0 0.0
      %1758 = vmatprep.subr.mxu0 0.0
      %1759 = vmatpush1.msra.mxu0 0.0
      %1760 = vmatprep.subr.mxu0 0.0
      %1761 = vmatpush1.msra.mxu0 0.0
      %1762 = vmatprep.subr.mxu0 0.0
      %1763 = vmatpush1.msra.mxu0 0.0
      %1764 = vmatprep.subr.mxu0 0.0
      %1765 = vmatpush1.msra.mxu0 0.0
      %1766 = vmatprep.subr.mxu0 0.0
      %1767 = vmatpush1.msra.mxu0 0.0
      %1768 = vmatprep.subr.mxu0 0.0
      %1769 = vmatpush1.msra.mxu0 0.0
      %1770 = vmatprep.subr.mxu0 0.0
      %1771 = vmatpush1.msra.mxu0 0.0
      %1772 = vmatprep.subr.mxu0 0.0
      %1773 = vmatpush1.msra.mxu0 0.0
      %1774 = vmatprep.subr.mxu0 0.0
      %1775 = vmatpush1.msra.mxu0 0.0
      %1776 = vmatprep.subr.mxu0 0.0
      %1777 = vmatpush1.msra.mxu0 0.0
      %1778 = vmatprep.subr.mxu0 0.0
      %1779 = vmatpush1.msra.mxu0 0.0
      %1780 = vmatprep.subr.mxu0 0.0
      %1781 = vmatpush1.msra.mxu0 0.0
      %1782 = vmatprep.subr.mxu0 0.0
      %1783 = vmatpush1.msra.mxu0 0.0
      %1784 = vmatprep.subr.mxu0 0.0
      %1785 = vmatpush1.msra.mxu0 0.0
      %1786 = vmatprep.subr.mxu0 0.0
      %1787 = vmatpush1.msra.mxu0 0.0
      %1788 = vmatprep.subr.mxu0 0.0
      %1789 = vmatpush1.msra.mxu0 0.0
      %1790 = vmatprep.subr.mxu0 0.0
      %1791 = vmatpush1.msra.mxu0 0.0
      %1792 = vmatprep.subr.mxu0 0.0
      %1793 = vmatpush1.msra.mxu0 0.0
      %1794 = vmatprep.subr.mxu0 0.0
      %1795 = vmatpush1.msra.mxu0 0.0
      %1796 = vmatprep.subr.mxu0 0.0
      %1797 = vmatpush1.msra.mxu0 0.0
      %1798 = vmatprep.subr.mxu0 0.0
      %1799 = vmatpush1.msra.mxu0 0.0
      %1800 = vmatprep.subr.mxu0 0.0
      %1801 = vmatpush1.msra.mxu0 0.0
      %1802 = vmatprep.subr.mxu0 0.0
      %1803 = vmatpush1.msra.mxu0 0.0
      %1804 = vmatprep.subr.mxu0 0.0
      %1805 = vmatpush1.msra.mxu0 0.0
      %1806 = vmatprep.subr.mxu0 0.0
      %1807 = vmatpush1.msra.mxu0 0.0
      %1808 = vmatprep.subr.mxu0 0.0
      %1809 = vmatpush1.msra.mxu0 0.0
      %1810 = vmatprep.mubr.f32.mxu0 0.0
      %1811 = vmatmul.mubr.f32.gmra.mrb[0].mxu0 %v1647
      %v1812 = vpop.f32.mrb[0].mxu0
      %v1813 = vadd.f32 %v1644, %v1812
      %v1814 = vpop.f32.mrb[0].mxu0
      %1815 = vmatprep.mubr.f32.mxu0 0.0
      %1816 = vmatmul.mubr.f32.gmra.mrb[0].mxu0 %v1650
      %v1817 = vpop.f32.mrb[0].mxu0
      %v1818 = vadd.f32 %v1644, %v1817
      %v1819 = vpop.f32.mrb[0].mxu0
      %1820 = vmatprep.mubr.f32.mxu0 0.0
      %1821 = vmatmul.mubr.f32.gmra.mrb[0].mxu0 %v1653
      %v1822 = vpop.f32.mrb[0].mxu0
      %v1823 = vadd.f32 %v1644, %v1822
      %v1824 = vpop.f32.mrb[0].mxu0
      %1825 = vmatprep.mubr.f32.mxu0 0.0
      %1826 = vmatmul.mubr.f32.gmra.mrb[0].mxu0 %v1656
      %v1827 = vpop.f32.mrb[0].mxu0
      %v1828 = vadd.f32 %v1644, %v1827
      %v1829 = vpop.f32.mrb[0].mxu0
      %1830 = vmatprep.mubr.f32.mxu0 0.0
      %1831 = vmatmul.mubr.f32.gmra.mrb[0].mxu0 %v1659
      %v1832 = vpop.f32.mrb[0].mxu0
      %v1833 = vadd.f32 %v1644, %v1832
      %v1834 = vpop.f32.mrb[0].mxu0
      %1835 = vmatprep.mubr.f32.mxu0 0.0
      %1836 = vmatmul.mubr.f32.gmra.mrb[0].mxu0 %v1662
      %v1837 = vpop.f32.mrb[0].mxu0
      %v1838 = vadd.f32 %v1644, %v1837
      %v1839 = vpop.f32.mrb[0].mxu0
      %1840 = vmatprep.mubr.f32.mxu0 0.0
      %1841 = vmatmul.mubr.f32.gmra.mrb[0].mxu0 %v1665
      %v1842 = vpop.f32.mrb[0].mxu0
      %v1843 = vadd.f32 %v1644, %v1842
      %v1844 = vpop.f32.mrb[0].mxu0
      %1845 = vmatprep.mubr.f32.mxu0 0.0
      %1846 = vmatmul.mubr.f32.gmra.mrb[0].mxu0 %v1668
      %v1847 = vpop.f32.mrb[0].mxu0
      %v1848 = vadd.f32 %v1644, %v1847
      %v1849 = vpop.f32.mrb[0].mxu0
      %1850 = vmatprep.mubr.f32.mxu0 0.0
      %1851 = vmatmul.mubr.f32.gmra.mrb[0].mxu0 %v1671
      %v1852 = vpop.f32.mrb[0].mxu0
      %v1853 = vadd.f32 %v1644, %v1852
      %v1854 = vpop.f32.mrb[0].mxu0
      %1855 = vmatprep.mubr.f32.mxu0 0.0
      %1856 = vmatmul.mubr.f32.gmra.mrb[0].mxu0 %v1674
      %v1857 = vpop.f32.mrb[0].mxu0
      %v1858 = vadd.f32 %v1644, %v1857
      %v1859 = vpop.f32.mrb[0].mxu0
      %1860 = vmatprep.mubr.f32.mxu0 0.0
      %1861 = vmatmul.mubr.f32.gmra.mrb[0].mxu0 %v1677
      %v1862 = vpop.f32.mrb[0].mxu0
      %v1863 = vadd.f32 %v1644, %v1862
      %v1864 = vpop.f32.mrb[0].mxu0
      %1865 = vmatprep.mubr.f32.mxu0 0.0
      %1866 = vmatmul.mubr.f32.gmra.mrb[0].mxu0 %v1680
      %v1867 = vpop.f32.mrb[0].mxu0
      %v1868 = vadd.f32 %v1644, %v1867
      %v1869 = vpop.f32.mrb[0].mxu0
      %1870 = vmatprep.mubr.f32.mxu0 0.0
      %1871 = vmatmul.mubr.f32.gmra.mrb[0].mxu0 %v1683
      %v1872 = vpop.f32.mrb[0].mxu0
      %v1873 = vadd.f32 %v1644, %v1872
      %v1874 = vpop.f32.mrb[0].mxu0
      %1875 = vmatprep.mubr.f32.mxu0 0.0
      %1876 = vmatmul.mubr.f32.gmra.mrb[0].mxu0 %v1686
      %v1877 = vpop.f32.mrb[0].mxu0
      %v1878 = vadd.f32 %v1644, %v1877
      %v1879 = vpop.f32.mrb[0].mxu0
      %1880 = vmatprep.mubr.f32.mxu0 0.0
      %1881 = vmatmul.mubr.f32.gmra.mrb[0].mxu0 %v1689
      %v1882 = vpop.f32.mrb[0].mxu0
      %v1883 = vadd.f32 %v1644, %v1882
      %v1884 = vpop.f32.mrb[0].mxu0
      %1885 = vmatprep.mubr.f32.mxu0 0.0
      %1886 = vmatmul.mubr.f32.gmra.mrb[0].mxu0 %v1692
      %v1887 = vpop.f32.mrb[0].mxu0
      %v1888 = vadd.f32 %v1644, %v1887
      %v1889 = vpop.f32.mrb[0].mxu0
      %1890 = vmatprep.mubr.f32.mxu0 0.0
      %1891 = vmatmul.mubr.f32.gmra.mrb[0].mxu0 %v1695
      %v1892 = vpop.f32.mrb[0].mxu0
      %v1893 = vadd.f32 %v1644, %v1892
      %v1894 = vpop.f32.mrb[0].mxu0
      %1895 = vmatprep.mubr.f32.mxu0 0.0
      %1896 = vmatmul.mubr.f32.gmra.mrb[0].mxu0 %v1698
      %v1897 = vpop.f32.mrb[0].mxu0
      %v1898 = vadd.f32 %v1644, %v1897
      %v1899 = vpop.f32.mrb[0].mxu0
      %1900 = vmatprep.mubr.f32.mxu0 0.0
      %1901 = vmatmul.mubr.f32.gmra.mrb[0].mxu0 %v1701
      %v1902 = vpop.f32.mrb[0].mxu0
      %v1903 = vadd.f32 %v1644, %v1902
      %v1904 = vpop.f32.mrb[0].mxu0
      %1905 = vmatprep.mubr.f32.mxu0 0.0
      %1906 = vmatmul.mubr.f32.gmra.mrb[0].mxu0 %v1704
      %v1907 = vpop.f32.mrb[0].mxu0
      %v1908 = vadd.f32 %v1644, %v1907
      %v1909 = vpop.f32.mrb[0].mxu0
      %1910 = vmatprep.mubr.f32.mxu0 0.0
      %1911 = vmatmul.mubr.f32.gmra.mrb[0].mxu0 %v1707
      %v1912 = vpop.f32.mrb[0].mxu0
      %v1913 = vadd.f32 %v1644, %v1912
      %v1914 = vpop.f32.mrb[0].mxu0
      %1915 = vmatprep.mubr.f32.mxu0 0.0
      %1916 = vmatmul.mubr.f32.gmra.mrb[0].mxu0 %v1710
      %v1917 = vpop.f32.mrb[0].mxu0
      %v1918 = vadd.f32 %v1644, %v1917
      %v1919 = vpop.f32.mrb[0].mxu0
      %1920 = vmatprep.mubr.f32.mxu0 0.0
      %1921 = vmatmul.mubr.f32.gmra.mrb[0].mxu0 %v1713
      %v1922 = vpop.f32.mrb[0].mxu0
      %v1923 = vadd.f32 %v1644, %v1922
      %v1924 = vpop.f32.mrb[0].mxu0
      %1925 = vmatprep.mubr.f32.mxu0 0.0
      %1926 = vmatmul.mubr.f32.gmra.mrb[0].mxu0 %v1716
      %v1927 = vpop.f32.mrb[0].mxu0
      %v1928 = vadd.f32 %v1644, %v1927
      %v1929 = vpop.f32.mrb[0].mxu0
      %1930 = vmatprep.mubr.f32.mxu0 0.0
      %1931 = vmatmul.mubr.f32.gmra.mrb[0].mxu0 %v1719
      %v1932 = vpop.f32.mrb[0].mxu0
      %v1933 = vadd.f32 %v1644, %v1932
      %v1934 = vpop.f32.mrb[0].mxu0
      %1935 = vmatprep.mubr.f32.mxu0 0.0
      %1936 = vmatmul.mubr.f32.gmra.mrb[0].mxu0 %v1722
      %v1937 = vpop.f32.mrb[0].mxu0
      %v1938 = vadd.f32 %v1644, %v1937
      %v1939 = vpop.f32.mrb[0].mxu0
      %1940 = vmatprep.mubr.f32.mxu0 0.0
      %1941 = vmatmul.mubr.f32.gmra.mrb[0].mxu0 %v1725
      %v1942 = vpop.f32.mrb[0].mxu0
      %v1943 = vadd.f32 %v1644, %v1942
      %v1944 = vpop.f32.mrb[0].mxu0
      %1945 = vmatprep.mubr.f32.mxu0 0.0
      %1946 = vmatmul.mubr.f32.gmra.mrb[0].mxu0 %v1728
      %v1947 = vpop.f32.mrb[0].mxu0
      %v1948 = vadd.f32 %v1644, %v1947
      %v1949 = vpop.f32.mrb[0].mxu0
      %1950 = vmatprep.mubr.f32.mxu0 0.0
      %1951 = vmatmul.mubr.f32.gmra.mrb[0].mxu0 %v1731
      %v1952 = vpop.f32.mrb[0].mxu0
      %v1953 = vadd.f32 %v1644, %v1952
      %v1954 = vpop.f32.mrb[0].mxu0
      %1955 = vmatprep.mubr.f32.mxu0 0.0
      %1956 = vmatmul.mubr.f32.gmra.mrb[0].mxu0 %v1734
      %v1957 = vpop.f32.mrb[0].mxu0
      %v1958 = vadd.f32 %v1644, %v1957
      %v1959 = vpop.f32.mrb[0].mxu0
      %1960 = vmatprep.mubr.f32.mxu0 0.0
      %1961 = vmatmul.mubr.f32.gmra.mrb[0].mxu0 %v1737
      %v1962 = vpop.f32.mrb[0].mxu0
      %v1963 = vadd.f32 %v1644, %v1962
      %v1964 = vpop.f32.mrb[0].mxu0
      %1965 = vmatprep.mubr.f32.mxu0 0.0
      %1966 = vmatmul.mubr.f32.gmra.mrb[0].mxu0 %v1740
      %v1967 = vpop.f32.mrb[0].mxu0
      %v1968 = vadd.f32 %v1644, %v1967
      %v1969 = vpop.f32.mrb[0].mxu0
      %1970 = vdwg.mxu0
      %vm1971 = vcmp.gt.f32.partialorder %v1813, 0.0
      %vm1972 = vcmp.gt.f32.partialorder %v1818, 0.0
      %vm1973 = vcmp.gt.f32.partialorder %v1823, 0.0
      %vm1974 = vcmp.gt.f32.partialorder %v1828, 0.0
      %vm1975 = vcmp.gt.f32.partialorder %v1833, 0.0
      %vm1976 = vcmp.gt.f32.partialorder %v1838, 0.0
      %vm1977 = vcmp.gt.f32.partialorder %v1843, 0.0
      %vm1978 = vcmp.gt.f32.partialorder %v1848, 0.0
      %vm1979 = vcmp.gt.f32.partialorder %v1853, 0.0
      %vm1980 = vcmp.gt.f32.partialorder %v1858, 0.0
      %vm1981 = vcmp.gt.f32.partialorder %v1863, 0.0
      %vm1982 = vcmp.gt.f32.partialorder %v1868, 0.0
      %vm1983 = vcmp.gt.f32.partialorder %v1873, 0.0
      %vm1984 = vcmp.gt.f32.partialorder %v1878, 0.0
      %vm1985 = vcmp.gt.f32.partialorder %v1883, 0.0
      %vm1986 = vcmp.gt.f32.partialorder %v1888, 0.0
      %vm1987 = vcmp.gt.f32.partialorder %v1893, 0.0
      %vm1988 = vcmp.gt.f32.partialorder %v1898, 0.0
      %vm1989 = vcmp.gt.f32.partialorder %v1903, 0.0
      %vm1990 = vcmp.gt.f32.partialorder %v1908, 0.0
      %vm1991 = vcmp.gt.f32.partialorder %v1913, 0.0
      %vm1992 = vcmp.gt.f32.partialorder %v1918, 0.0
      %vm1993 = vcmp.gt.f32.partialorder %v1923, 0.0
      %vm1994 = vcmp.gt.f32.partialorder %v1928, 0.0
      %vm1995 = vcmp.gt.f32.partialorder %v1933, 0.0
      %vm1996 = vcmp.gt.f32.partialorder %v1938, 0.0
      %vm1997 = vcmp.gt.f32.partialorder %v1943, 0.0
      %vm1998 = vcmp.gt.f32.partialorder %v1948, 0.0
      %vm1999 = vcmp.gt.f32.partialorder %v1953, 0.0
      %vm2000 = vcmp.gt.f32.partialorder %v1958, 0.0
      %vm2001 = vcmp.gt.f32.partialorder %v1963, 0.0
      %vm2002 = vcmp.gt.f32.partialorder %v1968, 0.0
      %v2003 = vmul.f32 %v1813, 0.2
      %v2004 = vmul.f32 %v1818, 0.2
      %v2005 = vmul.f32 %v1823, 0.2
      %v2006 = vmul.f32 %v1828, 0.2
      %v2007 = vmul.f32 %v1833, 0.2
      %v2008 = vmul.f32 %v1838, 0.2
      %v2009 = vmul.f32 %v1843, 0.2
      %v2010 = vmul.f32 %v1848, 0.2
      %v2011 = vmul.f32 %v1853, 0.2
      %v2012 = vmul.f32 %v1858, 0.2
      %v2013 = vmul.f32 %v1863, 0.2
      %v2014 = vmul.f32 %v1868, 0.2
      %v2015 = vmul.f32 %v1873, 0.2
      %v2016 = vmul.f32 %v1878, 0.2
      %v2017 = vmul.f32 %v1883, 0.2
      %v2018 = vmul.f32 %v1888, 0.2
      %v2019 = vmul.f32 %v1893, 0.2
      %v2020 = vmul.f32 %v1898, 0.2
      %v2021 = vmul.f32 %v1903, 0.2
      %v2022 = vmul.f32 %v1908, 0.2
      %v2023 = vmul.f32 %v1913, 0.2
      %v2024 = vmul.f32 %v1918, 0.2
      %v2025 = vmul.f32 %v1923, 0.2
      %v2026 = vmul.f32 %v1928, 0.2
      %v2027 = vmul.f32 %v1933, 0.2
      %v2028 = vmul.f32 %v1938, 0.2
      %v2029 = vmul.f32 %v1943, 0.2
      %v2030 = vmul.f32 %v1948, 0.2
      %v2031 = vmul.f32 %v1953, 0.2
      %v2032 = vmul.f32 %v1958, 0.2
      %v2033 = vmul.f32 %v1963, 0.2
      %v2034 = vmul.f32 %v1968, 0.2
      %v2035 = vsel %vm1971, %v1813, %v2003
      %v2036 = vsel %vm1972, %v1818, %v2004
      %v2037 = vsel %vm1973, %v1823, %v2005
      %v2038 = vsel %vm1974, %v1828, %v2006
      %v2039 = vsel %vm1975, %v1833, %v2007
      %v2040 = vsel %vm1976, %v1838, %v2008
      %v2041 = vsel %vm1977, %v1843, %v2009
      %v2042 = vsel %vm1978, %v1848, %v2010
      %v2043 = vsel %vm1979, %v1853, %v2011
      %v2044 = vsel %vm1980, %v1858, %v2012
      %v2045 = vsel %vm1981, %v1863, %v2013
      %v2046 = vsel %vm1982, %v1868, %v2014
      %v2047 = vsel %vm1983, %v1873, %v2015
      %v2048 = vsel %vm1984, %v1878, %v2016
      %v2049 = vsel %vm1985, %v1883, %v2017
      %v2050 = vsel %vm1986, %v1888, %v2018
      %v2051 = vsel %vm1987, %v1893, %v2019
      %v2052 = vsel %vm1988, %v1898, %v2020
      %v2053 = vsel %vm1989, %v1903, %v2021
      %v2054 = vsel %vm1990, %v1908, %v2022
      %v2055 = vsel %vm1991, %v1913, %v2023
      %v2056 = vsel %vm1992, %v1918, %v2024
      %v2057 = vsel %vm1993, %v1923, %v2025
      %v2058 = vsel %vm1994, %v1928, %v2026
      %v2059 = vsel %vm1995, %v1933, %v2027
      %v2060 = vsel %vm1996, %v1938, %v2028
      %v2061 = vsel %vm1997, %v1943, %v2029
      %v2062 = vsel %vm1998, %v1948, %v2030
      %v2063 = vsel %vm1999, %v1953, %v2031
      %v2064 = vsel %vm2000, %v1958, %v2032
      %v2065 = vsel %vm2001, %v1963, %v2033
      %v2066 = vsel %vm2002, %v1968, %v2034
      %v2067 = vld [vmem:[%s2] sm:$0xff]
      %v2068 = vld [vmem:[%s2 + $0x8] sm:$0xff]
      %v2069 = vld [vmem:[%s2 + $0x10] sm:$0xff]
      %v2070 = vld [vmem:[%s2 + $0x18] sm:$0xff]
      %v2071 = vld [vmem:[%s2 + $0x20] sm:$0xff]
      %v2072 = vld [vmem:[%s2 + $0x28] sm:$0xff]
      %v2073 = vld [vmem:[%s2 + $0x30] sm:$0xff]
      %v2074 = vld [vmem:[%s2 + $0x38] sm:$0xff]
      %v2075 = vld [vmem:[%s2 + $0x40] sm:$0xff]
      %v2108 = vrot.slane %v2035, 7
      %v2109 = vrot.slane %v2036, 7
      %v2110 = vsel %vm268, %v2108, %v2109
      %v2111 = vrot.slane %v2037, 7
      %v2112 = vrot.slane %v2038, 7
      %v2113 = vsel %vm268, %v2111, %v2112
      %v2114 = vrot.slane %v2039, 7
      %v2115 = vrot.slane %v2040, 7
      %v2116 = vsel %vm268, %v2114, %v2115
      %v2117 = vrot.slane %v2041, 7
      %v2118 = vrot.slane %v2042, 7
      %v2119 = vsel %vm268, %v2117, %v2118
      %v2120 = vrot.slane %v2043, 7
      %v2121 = vrot.slane %v2044, 7
      %v2122 = vsel %vm268, %v2120, %v2121
      %v2123 = vrot.slane %v2045, 7
      %v2124 = vrot.slane %v2046, 7
      %v2125 = vsel %vm268, %v2123, %v2124
      %v2126 = vrot.slane %v2047, 7
      %v2127 = vrot.slane %v2048, 7
      %v2128 = vsel %vm268, %v2126, %v2127
      %v2129 = vrot.slane %v2049, 7
      %v2130 = vrot.slane %v2050, 7
      %v2131 = vsel %vm268, %v2129, %v2130
      %v2132 = vrot.slane %v2051, 7
      %v2133 = vrot.slane %v2052, 7
      %v2134 = vsel %vm268, %v2132, %v2133
      %v2135 = vrot.slane %v2053, 7
      %v2136 = vrot.slane %v2054, 7
      %v2137 = vsel %vm268, %v2135, %v2136
      %v2138 = vrot.slane %v2055, 7
      %v2139 = vrot.slane %v2056, 7
      %v2140 = vsel %vm268, %v2138, %v2139
      %v2141 = vrot.slane %v2057, 7
      %v2142 = vrot.slane %v2058, 7
      %v2143 = vsel %vm268, %v2141, %v2142
      %v2144 = vrot.slane %v2059, 7
      %v2145 = vrot.slane %v2060, 7
      %v2146 = vsel %vm268, %v2144, %v2145
      %v2147 = vrot.slane %v2061, 7
      %v2148 = vrot.slane %v2062, 7
      %v2149 = vsel %vm268, %v2147, %v2148
      %v2150 = vrot.slane %v2063, 7
      %v2151 = vrot.slane %v2064, 7
      %v2152 = vsel %vm268, %v2150, %v2151
      %v2153 = vrot.slane %v2065, 7
      %v2154 = vrot.slane %v2066, 7
      %v2155 = vsel %vm268, %v2153, %v2154
      %v2203 = vsel %vm268, 0.0, %v2108
      %v2204 = vsel %vm268, 0.0, %v2111
      %v2205 = vsel %vm268, 0.0, %v2114
      %v2206 = vsel %vm268, 0.0, %v2117
      %v2207 = vsel %vm268, 0.0, %v2120
      %v2208 = vsel %vm268, 0.0, %v2123
      %v2209 = vsel %vm268, 0.0, %v2126
      %v2210 = vsel %vm268, 0.0, %v2129
      %v2211 = vsel %vm268, 0.0, %v2132
      %v2212 = vsel %vm268, 0.0, %v2135
      %v2213 = vsel %vm268, 0.0, %v2138
      %v2214 = vsel %vm268, 0.0, %v2141
      %v2215 = vsel %vm268, 0.0, %v2144
      %v2216 = vsel %vm268, 0.0, %v2147
      %v2217 = vsel %vm268, 0.0, %v2150
      %v2218 = vsel %vm268, 0.0, %v2153
      %v2219 = vsel %vm268, %v2109, 0.0
      %v2220 = vsel %vm268, %v2112, 0.0
      %v2221 = vsel %vm268, %v2115, 0.0
      %v2222 = vsel %vm268, %v2118, 0.0
      %v2223 = vsel %vm268, %v2121, 0.0
      %v2224 = vsel %vm268, %v2124, 0.0
      %v2225 = vsel %vm268, %v2127, 0.0
      %v2226 = vsel %vm268, %v2130, 0.0
      %v2227 = vsel %vm268, %v2133, 0.0
      %v2228 = vsel %vm268, %v2136, 0.0
      %v2229 = vsel %vm268, %v2139, 0.0
      %v2230 = vsel %vm268, %v2142, 0.0
      %v2231 = vsel %vm268, %v2145, 0.0
      %v2232 = vsel %vm268, %v2148, 0.0
      %v2233 = vsel %vm268, %v2151, 0.0
      %v2234 = vsel %vm268, %v2154, 0.0
      %v2265 = vrot.slane %v2203, 1
      %v2266 = vrot.slane %v2110, 1
      %v2267 = vsel %vm434, %v2265, %v2266
      %v2268 = vrot.slane %v2219, 1
      %v2269 = vsel %vm434, %v2266, %v2268
      %v2270 = vrot.slane %v2204, 1
      %v2271 = vrot.slane %v2113, 1
      %v2272 = vsel %vm434, %v2270, %v2271
      %v2273 = vrot.slane %v2220, 1
      %v2274 = vsel %vm434, %v2271, %v2273
      %v2275 = vrot.slane %v2205, 1
      %v2276 = vrot.slane %v2116, 1
      %v2277 = vsel %vm434, %v2275, %v2276
      %v2278 = vrot.slane %v2221, 1
      %v2279 = vsel %vm434, %v2276, %v2278
      %v2280 = vrot.slane %v2206, 1
      %v2281 = vrot.slane %v2119, 1
      %v2282 = vsel %vm434, %v2280, %v2281
      %v2283 = vrot.slane %v2222, 1
      %v2284 = vsel %vm434, %v2281, %v2283
      %v2285 = vrot.slane %v2207, 1
      %v2286 = vrot.slane %v2122, 1
      %v2287 = vsel %vm434, %v2285, %v2286
      %v2288 = vrot.slane %v2223, 1
      %v2289 = vsel %vm434, %v2286, %v2288
      %v2290 = vrot.slane %v2208, 1
      %v2291 = vrot.slane %v2125, 1
      %v2292 = vsel %vm434, %v2290, %v2291
      %v2293 = vrot.slane %v2224, 1
      %v2294 = vsel %vm434, %v2291, %v2293
      %v2295 = vrot.slane %v2209, 1
      %v2296 = vrot.slane %v2128, 1
      %v2297 = vsel %vm434, %v2295, %v2296
      %v2298 = vrot.slane %v2225, 1
      %v2299 = vsel %vm434, %v2296, %v2298
      %v2300 = vrot.slane %v2210, 1
      %v2301 = vrot.slane %v2131, 1
      %v2302 = vsel %vm434, %v2300, %v2301
      %v2303 = vrot.slane %v2226, 1
      %v2304 = vsel %vm434, %v2301, %v2303
      %v2305 = vrot.slane %v2211, 1
      %v2306 = vrot.slane %v2134, 1
      %v2307 = vsel %vm434, %v2305, %v2306
      %v2308 = vrot.slane %v2227, 1
      %v2309 = vsel %vm434, %v2306, %v2308
      %v2310 = vrot.slane %v2212, 1
      %v2311 = vrot.slane %v2137, 1
      %v2312 = vsel %vm434, %v2310, %v2311
      %v2313 = vrot.slane %v2228, 1
      %v2314 = vsel %vm434, %v2311, %v2313
      %v2315 = vrot.slane %v2213, 1
      %v2316 = vrot.slane %v2140, 1
      %v2317 = vsel %vm434, %v2315, %v2316
      %v2318 = vrot.slane %v2229, 1
      %v2319 = vsel %vm434, %v2316, %v2318
      %v2320 = vrot.slane %v2214, 1
      %v2321 = vrot.slane %v2143, 1
      %v2322 = vsel %vm434, %v2320, %v2321
      %v2323 = vrot.slane %v2230, 1
      %v2324 = vsel %vm434, %v2321, %v2323
      %v2325 = vrot.slane %v2215, 1
      %v2326 = vrot.slane %v2146, 1
      %v2327 = vsel %vm434, %v2325, %v2326
      %v2328 = vrot.slane %v2231, 1
      %v2329 = vsel %vm434, %v2326, %v2328
      %v2330 = vrot.slane %v2216, 1
      %v2331 = vrot.slane %v2149, 1
      %v2332 = vsel %vm434, %v2330, %v2331
      %v2333 = vrot.slane %v2232, 1
      %v2334 = vsel %vm434, %v2331, %v2333
      %v2335 = vrot.slane %v2217, 1
      %v2336 = vrot.slane %v2152, 1
      %v2337 = vsel %vm434, %v2335, %v2336
      %v2338 = vrot.slane %v2233, 1
      %v2339 = vsel %vm434, %v2336, %v2338
      %2340 = vrot.lane.b32.xlu0 %v437, 8
      %v2341 = vpop.permute.xlu0 %2340
      %2342 = vrot.lane.b32.xlu0 %v439, 8
      %v2343 = vpop.permute.xlu0 %2342
      %2344 = vrot.lane.b32.xlu0 %v2267, 8
      %v2345 = vpop.permute.xlu0 %2344
      %2346 = vrot.lane.b32.xlu0 %v2269, 8
      %v2347 = vpop.permute.xlu0 %2346
      %2348 = vrot.lane.b32.xlu0 %v2272, 8
      %v2349 = vpop.permute.xlu0 %2348
      %2350 = vrot.lane.b32.xlu0 %v2274, 8
      %v2351 = vpop.permute.xlu0 %2350
      %2352 = vrot.lane.b32.xlu0 %v2277, 8
      %v2353 = vpop.permute.xlu0 %2352
      %2354 = vrot.lane.b32.xlu0 %v2279, 8
      %v2355 = vpop.permute.xlu0 %2354
      %2356 = vrot.lane.b32.xlu0 %v2282, 8
      %v2357 = vpop.permute.xlu0 %2356
      %2358 = vrot.lane.b32.xlu0 %v2284, 8
      %v2359 = vpop.permute.xlu0 %2358
      %2360 = vrot.lane.b32.xlu0 %v2287, 8
      %v2361 = vpop.permute.xlu0 %2360
      %2362 = vrot.lane.b32.xlu0 %v2289, 8
      %v2363 = vpop.permute.xlu0 %2362
      %2364 = vrot.lane.b32.xlu0 %v2292, 8
      %v2365 = vpop.permute.xlu0 %2364
      %2366 = vrot.lane.b32.xlu0 %v2294, 8
      %v2367 = vpop.permute.xlu0 %2366
      %2368 = vrot.lane.b32.xlu0 %v2297, 8
      %v2369 = vpop.permute.xlu0 %2368
      %2370 = vrot.lane.b32.xlu0 %v2299, 8
      %v2371 = vpop.permute.xlu0 %2370
      %2372 = vrot.lane.b32.xlu0 %v2302, 8
      %v2373 = vpop.permute.xlu0 %2372
      %2374 = vrot.lane.b32.xlu0 %v2304, 8
      %v2375 = vpop.permute.xlu0 %2374
      %2376 = vrot.lane.b32.xlu0 %v2307, 8
      %v2377 = vpop.permute.xlu0 %2376
      %2378 = vrot.lane.b32.xlu0 %v2309, 8
      %v2379 = vpop.permute.xlu0 %2378
      %2380 = vrot.lane.b32.xlu0 %v2312, 8
      %v2381 = vpop.permute.xlu0 %2380
      %2382 = vrot.lane.b32.xlu0 %v2314, 8
      %v2383 = vpop.permute.xlu0 %2382
      %2384 = vrot.lane.b32.xlu0 %v2317, 8
      %v2385 = vpop.permute.xlu0 %2384
      %2386 = vrot.lane.b32.xlu0 %v2319, 8
      %v2387 = vpop.permute.xlu0 %2386
      %2388 = vrot.lane.b32.xlu0 %v2322, 8
      %v2389 = vpop.permute.xlu0 %2388
      %2390 = vrot.lane.b32.xlu0 %v2324, 8
      %v2391 = vpop.permute.xlu0 %2390
      %2392 = vrot.lane.b32.xlu0 %v2327, 8
      %v2393 = vpop.permute.xlu0 %2392
      %2394 = vrot.lane.b32.xlu0 %v2329, 8
      %v2395 = vpop.permute.xlu0 %2394
      %2396 = vrot.lane.b32.xlu0 %v2332, 8
      %v2397 = vpop.permute.xlu0 %2396
      %2398 = vrot.lane.b32.xlu0 %v2334, 8
      %v2399 = vpop.permute.xlu0 %2398
      %2400 = vrot.lane.b32.xlu0 %v2337, 8
      %v2401 = vpop.permute.xlu0 %2400
      %2402 = vrot.lane.b32.xlu0 %v2339, 8
      %v2403 = vpop.permute.xlu0 %2402
      %v2436 = vrot.slane %v2203, 2
      %v2437 = vrot.slane %v2110, 2
      %v2438 = vsel %vm611, %v2436, %v2437
      %v2439 = vrot.slane %v2219, 2
      %v2440 = vsel %vm611, %v2437, %v2439
      %v2441 = vrot.slane %v2204, 2
      %v2442 = vrot.slane %v2113, 2
      %v2443 = vsel %vm611, %v2441, %v2442
      %v2444 = vrot.slane %v2220, 2
      %v2445 = vsel %vm611, %v2442, %v2444
      %v2446 = vrot.slane %v2205, 2
      %v2447 = vrot.slane %v2116, 2
      %v2448 = vsel %vm611, %v2446, %v2447
      %v2449 = vrot.slane %v2221, 2
      %v2450 = vsel %vm611, %v2447, %v2449
      %v2451 = vrot.slane %v2206, 2
      %v2452 = vrot.slane %v2119, 2
      %v2453 = vsel %vm611, %v2451, %v2452
      %v2454 = vrot.slane %v2222, 2
      %v2455 = vsel %vm611, %v2452, %v2454
      %v2456 = vrot.slane %v2207, 2
      %v2457 = vrot.slane %v2122, 2
      %v2458 = vsel %vm611, %v2456, %v2457
      %v2459 = vrot.slane %v2223, 2
      %v2460 = vsel %vm611, %v2457, %v2459
      %v2461 = vrot.slane %v2208, 2
      %v2462 = vrot.slane %v2125, 2
      %v2463 = vsel %vm611, %v2461, %v2462
      %v2464 = vrot.slane %v2224, 2
      %v2465 = vsel %vm611, %v2462, %v2464
      %v2466 = vrot.slane %v2209, 2
      %v2467 = vrot.slane %v2128, 2
      %v2468 = vsel %vm611, %v2466, %v2467
      %v2469 = vrot.slane %v2225, 2
      %v2470 = vsel %vm611, %v2467, %v2469
      %v2471 = vrot.slane %v2210, 2
      %v2472 = vrot.slane %v2131, 2
      %v2473 = vsel %vm611, %v2471, %v2472
      %v2474 = vrot.slane %v2226, 2
      %v2475 = vsel %vm611, %v2472, %v2474
      %v2476 = vrot.slane %v2211, 2
      %v2477 = vrot.slane %v2134, 2
      %v2478 = vsel %vm611, %v2476, %v2477
      %v2479 = vrot.slane %v2227, 2
      %v2480 = vsel %vm611, %v2477, %v2479
      %v2481 = vrot.slane %v2212, 2
      %v2482 = vrot.slane %v2137, 2
      %v2483 = vsel %vm611, %v2481, %v2482
      %v2484 = vrot.slane %v2228, 2
      %v2485 = vsel %vm611, %v2482, %v2484
      %v2486 = vrot.slane %v2213, 2
      %v2487 = vrot.slane %v2140, 2
      %v2488 = vsel %vm611, %v2486, %v2487
      %v2489 = vrot.slane %v2229, 2
      %v2490 = vsel %vm611, %v2487, %v2489
      %v2491 = vrot.slane %v2214, 2
      %v2492 = vrot.slane %v2143, 2
      %v2493 = vsel %vm611, %v2491, %v2492
      %v2494 = vrot.slane %v2230, 2
      %v2495 = vsel %vm611, %v2492, %v2494
      %v2496 = vrot.slane %v2215, 2
      %v2497 = vrot.slane %v2146, 2
      %v2498 = vsel %vm611, %v2496, %v2497
      %v2499 = vrot.slane %v2231, 2
      %v2500 = vsel %vm611, %v2497, %v2499
      %v2501 = vrot.slane %v2216, 2
      %v2502 = vrot.slane %v2149, 2
      %v2503 = vsel %vm611, %v2501, %v2502
      %v2504 = vrot.slane %v2232, 2
      %v2505 = vsel %vm611, %v2502, %v2504
      %v2506 = vrot.slane %v2217, 2
      %v2507 = vrot.slane %v2152, 2
      %v2508 = vsel %vm611, %v2506, %v2507
      %v2509 = vrot.slane %v2233, 2
      %v2510 = vsel %vm611, %v2507, %v2509
      %2511 = vrot.lane.b32.xlu0 %v614, 16
      %v2512 = vpop.permute.xlu0 %2511
      %2513 = vrot.lane.b32.xlu0 %v616, 16
      %v2514 = vpop.permute.xlu0 %2513
      %2515 = vrot.lane.b32.xlu0 %v2438, 16
      %v2516 = vpop.permute.xlu0 %2515
      %2517 = vrot.lane.b32.xlu0 %v2440, 16
      %v2518 = vpop.permute.xlu0 %2517
      %2519 = vrot.lane.b32.xlu0 %v2443, 16
      %v2520 = vpop.permute.xlu0 %2519
      %2521 = vrot.lane.b32.xlu0 %v2445, 16
      %v2522 = vpop.permute.xlu0 %2521
      %2523 = vrot.lane.b32.xlu0 %v2448, 16
      %v2524 = vpop.permute.xlu0 %2523
      %2525 = vrot.lane.b32.xlu0 %v2450, 16
      %v2526 = vpop.permute.xlu0 %2525
      %2527 = vrot.lane.b32.xlu0 %v2453, 16
      %v2528 = vpop.permute.xlu0 %2527
      %2529 = vrot.lane.b32.xlu0 %v2455, 16
      %v2530 = vpop.permute.xlu0 %2529
      %2531 = vrot.lane.b32.xlu0 %v2458, 16
      %v2532 = vpop.permute.xlu0 %2531
      %2533 = vrot.lane.b32.xlu0 %v2460, 16
      %v2534 = vpop.permute.xlu0 %2533
      %2535 = vrot.lane.b32.xlu0 %v2463, 16
      %v2536 = vpop.permute.xlu0 %2535
      %2537 = vrot.lane.b32.xlu0 %v2465, 16
      %v2538 = vpop.permute.xlu0 %2537
      %2539 = vrot.lane.b32.xlu0 %v2468, 16
      %v2540 = vpop.permute.xlu0 %2539
      %2541 = vrot.lane.b32.xlu0 %v2470, 16
      %v2542 = vpop.permute.xlu0 %2541
      %2543 = vrot.lane.b32.xlu0 %v2473, 16
      %v2544 = vpop.permute.xlu0 %2543
      %2545 = vrot.lane.b32.xlu0 %v2475, 16
      %v2546 = vpop.permute.xlu0 %2545
      %2547 = vrot.lane.b32.xlu0 %v2478, 16
      %v2548 = vpop.permute.xlu0 %2547
      %2549 = vrot.lane.b32.xlu0 %v2480, 16
      %v2550 = vpop.permute.xlu0 %2549
      %2551 = vrot.lane.b32.xlu0 %v2483, 16
      %v2552 = vpop.permute.xlu0 %2551
      %2553 = vrot.lane.b32.xlu0 %v2485, 16
      %v2554 = vpop.permute.xlu0 %2553
      %2555 = vrot.lane.b32.xlu0 %v2488, 16
      %v2556 = vpop.permute.xlu0 %2555
      %2557 = vrot.lane.b32.xlu0 %v2490, 16
      %v2558 = vpop.permute.xlu0 %2557
      %2559 = vrot.lane.b32.xlu0 %v2493, 16
      %v2560 = vpop.permute.xlu0 %2559
      %2561 = vrot.lane.b32.xlu0 %v2495, 16
      %v2562 = vpop.permute.xlu0 %2561
      %2563 = vrot.lane.b32.xlu0 %v2498, 16
      %v2564 = vpop.permute.xlu0 %2563
      %2565 = vrot.lane.b32.xlu0 %v2500, 16
      %v2566 = vpop.permute.xlu0 %2565
      %2567 = vrot.lane.b32.xlu0 %v2503, 16
      %v2568 = vpop.permute.xlu0 %2567
      %2569 = vrot.lane.b32.xlu0 %v2505, 16
      %v2570 = vpop.permute.xlu0 %2569
      %2571 = vrot.lane.b32.xlu0 %v2508, 16
      %v2572 = vpop.permute.xlu0 %2571
      %2573 = vrot.lane.b32.xlu0 %v2510, 16
      %v2574 = vpop.permute.xlu0 %2573
      %2608 = vrot.lane.b32.xlu0 %v2203, 24
      %v2609 = vpop.permute.xlu0 %2608
      %2610 = vrot.lane.b32.xlu0 %v2110, 24
      %v2611 = vpop.permute.xlu0 %2610
      %2612 = vrot.lane.b32.xlu0 %v2204, 24
      %v2613 = vpop.permute.xlu0 %2612
      %2614 = vrot.lane.b32.xlu0 %v2113, 24
      %v2615 = vpop.permute.xlu0 %2614
      %2616 = vrot.lane.b32.xlu0 %v2205, 24
      %v2617 = vpop.permute.xlu0 %2616
      %2618 = vrot.lane.b32.xlu0 %v2116, 24
      %v2619 = vpop.permute.xlu0 %2618
      %2620 = vrot.lane.b32.xlu0 %v2206, 24
      %v2621 = vpop.permute.xlu0 %2620
      %2622 = vrot.lane.b32.xlu0 %v2119, 24
      %v2623 = vpop.permute.xlu0 %2622
      %2624 = vrot.lane.b32.xlu0 %v2207, 24
      %v2625 = vpop.permute.xlu0 %2624
      %2626 = vrot.lane.b32.xlu0 %v2122, 24
      %v2627 = vpop.permute.xlu0 %2626
      %2628 = vrot.lane.b32.xlu0 %v2208, 24
      %v2629 = vpop.permute.xlu0 %2628
      %2630 = vrot.lane.b32.xlu0 %v2125, 24
      %v2631 = vpop.permute.xlu0 %2630
      %2632 = vrot.lane.b32.xlu0 %v2209, 24
      %v2633 = vpop.permute.xlu0 %2632
      %2634 = vrot.lane.b32.xlu0 %v2128, 24
      %v2635 = vpop.permute.xlu0 %2634
      %2636 = vrot.lane.b32.xlu0 %v2210, 24
      %v2637 = vpop.permute.xlu0 %2636
      %2638 = vrot.lane.b32.xlu0 %v2131, 24
      %v2639 = vpop.permute.xlu0 %2638
      %2640 = vrot.lane.b32.xlu0 %v2211, 24
      %v2641 = vpop.permute.xlu0 %2640
      %2642 = vrot.lane.b32.xlu0 %v2134, 24
      %v2643 = vpop.permute.xlu0 %2642
      %2644 = vrot.lane.b32.xlu0 %v2212, 24
      %v2645 = vpop.permute.xlu0 %2644
      %2646 = vrot.lane.b32.xlu0 %v2137, 24
      %v2647 = vpop.permute.xlu0 %2646
      %2648 = vrot.lane.b32.xlu0 %v2213, 24
      %v2649 = vpop.permute.xlu0 %2648
      %2650 = vrot.lane.b32.xlu0 %v2140, 24
      %v2651 = vpop.permute.xlu0 %2650
      %2652 = vrot.lane.b32.xlu0 %v2214, 24
      %v2653 = vpop.permute.xlu0 %2652
      %2654 = vrot.lane.b32.xlu0 %v2143, 24
      %v2655 = vpop.permute.xlu0 %2654
      %2656 = vrot.lane.b32.xlu0 %v2215, 24
      %v2657 = vpop.permute.xlu0 %2656
      %2658 = vrot.lane.b32.xlu0 %v2146, 24
      %v2659 = vpop.permute.xlu0 %2658
      %2660 = vrot.lane.b32.xlu0 %v2216, 24
      %v2661 = vpop.permute.xlu0 %2660
      %2662 = vrot.lane.b32.xlu0 %v2149, 24
      %v2663 = vpop.permute.xlu0 %2662
      %2664 = vrot.lane.b32.xlu0 %v2217, 24
      %v2665 = vpop.permute.xlu0 %2664
      %2666 = vrot.lane.b32.xlu0 %v2152, 24
      %v2667 = vpop.permute.xlu0 %2666
      %2668 = vrot.lane.b32.xlu0 %v2218, 24
      %v2669 = vpop.permute.xlu0 %2668
      %2670 = vrot.lane.b32.xlu0 %v2155, 24
      %v2671 = vpop.permute.xlu0 %2670
      %v2705 = vrot.slane %v2218, 1
      %v2706 = vrot.slane %v2155, 1
      %v2707 = vsel %vm434, %v2705, %v2706
      %v2708 = vrot.slane %v2234, 1
      %v2709 = vsel %vm434, %v2706, %v2708
      %2710 = vrot.lane.b32.xlu0 %v2267, 32
      %v2711 = vpop.permute.xlu0 %2710
      %2712 = vrot.lane.b32.xlu0 %v2269, 32
      %v2713 = vpop.permute.xlu0 %2712
      %2714 = vrot.lane.b32.xlu0 %v2272, 32
      %v2715 = vpop.permute.xlu0 %2714
      %2716 = vrot.lane.b32.xlu0 %v2274, 32
      %v2717 = vpop.permute.xlu0 %2716
      %2718 = vrot.lane.b32.xlu0 %v2277, 32
      %v2719 = vpop.permute.xlu0 %2718
      %2720 = vrot.lane.b32.xlu0 %v2279, 32
      %v2721 = vpop.permute.xlu0 %2720
      %2722 = vrot.lane.b32.xlu0 %v2282, 32
      %v2723 = vpop.permute.xlu0 %2722
      %2724 = vrot.lane.b32.xlu0 %v2284, 32
      %v2725 = vpop.permute.xlu0 %2724
      %2726 = vrot.lane.b32.xlu0 %v2287, 32
      %v2727 = vpop.permute.xlu0 %2726
      %2728 = vrot.lane.b32.xlu0 %v2289, 32
      %v2729 = vpop.permute.xlu0 %2728
      %2730 = vrot.lane.b32.xlu0 %v2292, 32
      %v2731 = vpop.permute.xlu0 %2730
      %2732 = vrot.lane.b32.xlu0 %v2294, 32
      %v2733 = vpop.permute.xlu0 %2732
      %2734 = vrot.lane.b32.xlu0 %v2297, 32
      %v2735 = vpop.permute.xlu0 %2734
      %2736 = vrot.lane.b32.xlu0 %v2299, 32
      %v2737 = vpop.permute.xlu0 %2736
      %2738 = vrot.lane.b32.xlu0 %v2302, 32
      %v2739 = vpop.permute.xlu0 %2738
      %2740 = vrot.lane.b32.xlu0 %v2304, 32
      %v2741 = vpop.permute.xlu0 %2740
      %2742 = vrot.lane.b32.xlu0 %v2307, 32
      %v2743 = vpop.permute.xlu0 %2742
      %2744 = vrot.lane.b32.xlu0 %v2309, 32
      %v2745 = vpop.permute.xlu0 %2744
      %2746 = vrot.lane.b32.xlu0 %v2312, 32
      %v2747 = vpop.permute.xlu0 %2746
      %2748 = vrot.lane.b32.xlu0 %v2314, 32
      %v2749 = vpop.permute.xlu0 %2748
      %2750 = vrot.lane.b32.xlu0 %v2317, 32
      %v2751 = vpop.permute.xlu0 %2750
      %2752 = vrot.lane.b32.xlu0 %v2319, 32
      %v2753 = vpop.permute.xlu0 %2752
      %2754 = vrot.lane.b32.xlu0 %v2322, 32
      %v2755 = vpop.permute.xlu0 %2754
      %2756 = vrot.lane.b32.xlu0 %v2324, 32
      %v2757 = vpop.permute.xlu0 %2756
      %2758 = vrot.lane.b32.xlu0 %v2327, 32
      %v2759 = vpop.permute.xlu0 %2758
      %2760 = vrot.lane.b32.xlu0 %v2329, 32
      %v2761 = vpop.permute.xlu0 %2760
      %2762 = vrot.lane.b32.xlu0 %v2332, 32
      %v2763 = vpop.permute.xlu0 %2762
      %2764 = vrot.lane.b32.xlu0 %v2334, 32
      %v2765 = vpop.permute.xlu0 %2764
      %2766 = vrot.lane.b32.xlu0 %v2337, 32
      %v2767 = vpop.permute.xlu0 %2766
      %2768 = vrot.lane.b32.xlu0 %v2339, 32
      %v2769 = vpop.permute.xlu0 %2768
      %2770 = vrot.lane.b32.xlu0 %v2707, 32
      %v2771 = vpop.permute.xlu0 %2770
      %2772 = vrot.lane.b32.xlu0 %v2709, 32
      %v2773 = vpop.permute.xlu0 %2772
      %v2806 = vrot.slane %v2218, 2
      %v2807 = vrot.slane %v2155, 2
      %v2808 = vsel %vm611, %v2806, %v2807
      %v2809 = vrot.slane %v2234, 2
      %v2810 = vsel %vm611, %v2807, %v2809
      %2811 = vrot.lane.b32.xlu0 %v2438, 40
      %v2812 = vpop.permute.xlu0 %2811
      %2813 = vrot.lane.b32.xlu0 %v2440, 40
      %v2814 = vpop.permute.xlu0 %2813
      %2815 = vrot.lane.b32.xlu0 %v2443, 40
      %v2816 = vpop.permute.xlu0 %2815
      %2817 = vrot.lane.b32.xlu0 %v2445, 40
      %v2818 = vpop.permute.xlu0 %2817
      %2819 = vrot.lane.b32.xlu0 %v2448, 40
      %v2820 = vpop.permute.xlu0 %2819
      %2821 = vrot.lane.b32.xlu0 %v2450, 40
      %v2822 = vpop.permute.xlu0 %2821
      %2823 = vrot.lane.b32.xlu0 %v2453, 40
      %v2824 = vpop.permute.xlu0 %2823
      %2825 = vrot.lane.b32.xlu0 %v2455, 40
      %v2826 = vpop.permute.xlu0 %2825
      %2827 = vrot.lane.b32.xlu0 %v2458, 40
      %v2828 = vpop.permute.xlu0 %2827
      %2829 = vrot.lane.b32.xlu0 %v2460, 40
      %v2830 = vpop.permute.xlu0 %2829
      %2831 = vrot.lane.b32.xlu0 %v2463, 40
      %v2832 = vpop.permute.xlu0 %2831
      %2833 = vrot.lane.b32.xlu0 %v2465, 40
      %v2834 = vpop.permute.xlu0 %2833
      %2835 = vrot.lane.b32.xlu0 %v2468, 40
      %v2836 = vpop.permute.xlu0 %2835
      %2837 = vrot.lane.b32.xlu0 %v2470, 40
      %v2838 = vpop.permute.xlu0 %2837
      %2839 = vrot.lane.b32.xlu0 %v2473, 40
      %v2840 = vpop.permute.xlu0 %2839
      %2841 = vrot.lane.b32.xlu0 %v2475, 40
      %v2842 = vpop.permute.xlu0 %2841
      %2843 = vrot.lane.b32.xlu0 %v2478, 40
      %v2844 = vpop.permute.xlu0 %2843
      %2845 = vrot.lane.b32.xlu0 %v2480, 40
      %v2846 = vpop.permute.xlu0 %2845
      %2847 = vrot.lane.b32.xlu0 %v2483, 40
      %v2848 = vpop.permute.xlu0 %2847
      %2849 = vrot.lane.b32.xlu0 %v2485, 40
      %v2850 = vpop.permute.xlu0 %2849
      %2851 = vrot.lane.b32.xlu0 %v2488, 40
      %v2852 = vpop.permute.xlu0 %2851
      %2853 = vrot.lane.b32.xlu0 %v2490, 40
      %v2854 = vpop.permute.xlu0 %2853
      %2855 = vrot.lane.b32.xlu0 %v2493, 40
      %v2856 = vpop.permute.xlu0 %2855
      %2857 = vrot.lane.b32.xlu0 %v2495, 40
      %v2858 = vpop.permute.xlu0 %2857
      %2859 = vrot.lane.b32.xlu0 %v2498, 40
      %v2860 = vpop.permute.xlu0 %2859
      %2861 = vrot.lane.b32.xlu0 %v2500, 40
      %v2862 = vpop.permute.xlu0 %2861
      %2863 = vrot.lane.b32.xlu0 %v2503, 40
      %v2864 = vpop.permute.xlu0 %2863
      %2865 = vrot.lane.b32.xlu0 %v2505, 40
      %v2866 = vpop.permute.xlu0 %2865
      %2867 = vrot.lane.b32.xlu0 %v2508, 40
      %v2868 = vpop.permute.xlu0 %2867
      %2869 = vrot.lane.b32.xlu0 %v2510, 40
      %v2870 = vpop.permute.xlu0 %2869
      %2871 = vrot.lane.b32.xlu0 %v2808, 40
      %v2872 = vpop.permute.xlu0 %2871
      %2873 = vrot.lane.b32.xlu0 %v2810, 40
      %v2874 = vpop.permute.xlu0 %2873
      %2907 = vrot.lane.b32.xlu0 %v2204, 48
      %v2908 = vpop.permute.xlu0 %2907
      %2909 = vrot.lane.b32.xlu0 %v2113, 48
      %v2910 = vpop.permute.xlu0 %2909
      %2911 = vrot.lane.b32.xlu0 %v2205, 48
      %v2912 = vpop.permute.xlu0 %2911
      %2913 = vrot.lane.b32.xlu0 %v2116, 48
      %v2914 = vpop.permute.xlu0 %2913
      %2915 = vrot.lane.b32.xlu0 %v2206, 48
      %v2916 = vpop.permute.xlu0 %2915
      %2917 = vrot.lane.b32.xlu0 %v2119, 48
      %v2918 = vpop.permute.xlu0 %2917
      %2919 = vrot.lane.b32.xlu0 %v2207, 48
      %v2920 = vpop.permute.xlu0 %2919
      %2921 = vrot.lane.b32.xlu0 %v2122, 48
      %v2922 = vpop.permute.xlu0 %2921
      %2923 = vrot.lane.b32.xlu0 %v2208, 48
      %v2924 = vpop.permute.xlu0 %2923
      %2925 = vrot.lane.b32.xlu0 %v2125, 48
      %v2926 = vpop.permute.xlu0 %2925
      %2927 = vrot.lane.b32.xlu0 %v2209, 48
      %v2928 = vpop.permute.xlu0 %2927
      %2929 = vrot.lane.b32.xlu0 %v2128, 48
      %v2930 = vpop.permute.xlu0 %2929
      %2931 = vrot.lane.b32.xlu0 %v2210, 48
      %v2932 = vpop.permute.xlu0 %2931
      %2933 = vrot.lane.b32.xlu0 %v2131, 48
      %v2934 = vpop.permute.xlu0 %2933
      %2935 = vrot.lane.b32.xlu0 %v2211, 48
      %v2936 = vpop.permute.xlu0 %2935
      %2937 = vrot.lane.b32.xlu0 %v2134, 48
      %v2938 = vpop.permute.xlu0 %2937
      %2939 = vrot.lane.b32.xlu0 %v2212, 48
      %v2940 = vpop.permute.xlu0 %2939
      %2941 = vrot.lane.b32.xlu0 %v2137, 48
      %v2942 = vpop.permute.xlu0 %2941
      %2943 = vrot.lane.b32.xlu0 %v2213, 48
      %v2944 = vpop.permute.xlu0 %2943
      %2945 = vrot.lane.b32.xlu0 %v2140, 48
      %v2946 = vpop.permute.xlu0 %2945
      %2947 = vrot.lane.b32.xlu0 %v2214, 48
      %v2948 = vpop.permute.xlu0 %2947
      %2949 = vrot.lane.b32.xlu0 %v2143, 48
      %v2950 = vpop.permute.xlu0 %2949
      %2951 = vrot.lane.b32.xlu0 %v2215, 48
      %v2952 = vpop.permute.xlu0 %2951
      %2953 = vrot.lane.b32.xlu0 %v2146, 48
      %v2954 = vpop.permute.xlu0 %2953
      %2955 = vrot.lane.b32.xlu0 %v2216, 48
      %v2956 = vpop.permute.xlu0 %2955
      %2957 = vrot.lane.b32.xlu0 %v2149, 48
      %v2958 = vpop.permute.xlu0 %2957
      %2959 = vrot.lane.b32.xlu0 %v2217, 48
      %v2960 = vpop.permute.xlu0 %2959
      %2961 = vrot.lane.b32.xlu0 %v2152, 48
      %v2962 = vpop.permute.xlu0 %2961
      %2963 = vrot.lane.b32.xlu0 %v2218, 48
      %v2964 = vpop.permute.xlu0 %2963
      %2965 = vrot.lane.b32.xlu0 %v2155, 48
      %v2966 = vpop.permute.xlu0 %2965
      %2967 = vrot.lane.b32.xlu0 %v368, 48
      %v2968 = vpop.permute.xlu0 %2967
      %2969 = vrot.lane.b32.xlu0 %v270, 48
      %v2970 = vpop.permute.xlu0 %2969
      %3003 = vrot.lane.b32.xlu0 %v2272, 56
      %v3004 = vpop.permute.xlu0 %3003
      %3005 = vrot.lane.b32.xlu0 %v2274, 56
      %v3006 = vpop.permute.xlu0 %3005
      %3007 = vrot.lane.b32.xlu0 %v2277, 56
      %v3008 = vpop.permute.xlu0 %3007
      %3009 = vrot.lane.b32.xlu0 %v2279, 56
      %v3010 = vpop.permute.xlu0 %3009
      %3011 = vrot.lane.b32.xlu0 %v2282, 56
      %v3012 = vpop.permute.xlu0 %3011
      %3013 = vrot.lane.b32.xlu0 %v2284, 56
      %v3014 = vpop.permute.xlu0 %3013
      %3015 = vrot.lane.b32.xlu0 %v2287, 56
      %v3016 = vpop.permute.xlu0 %3015
      %3017 = vrot.lane.b32.xlu0 %v2289, 56
      %v3018 = vpop.permute.xlu0 %3017
      %3019 = vrot.lane.b32.xlu0 %v2292, 56
      %v3020 = vpop.permute.xlu0 %3019
      %3021 = vrot.lane.b32.xlu0 %v2294, 56
      %v3022 = vpop.permute.xlu0 %3021
      %3023 = vrot.lane.b32.xlu0 %v2297, 56
      %v3024 = vpop.permute.xlu0 %3023
      %3025 = vrot.lane.b32.xlu0 %v2299, 56
      %v3026 = vpop.permute.xlu0 %3025
      %3027 = vrot.lane.b32.xlu0 %v2302, 56
      %v3028 = vpop.permute.xlu0 %3027
      %3029 = vrot.lane.b32.xlu0 %v2304, 56
      %v3030 = vpop.permute.xlu0 %3029
      %3031 = vrot.lane.b32.xlu0 %v2307, 56
      %v3032 = vpop.permute.xlu0 %3031
      %3033 = vrot.lane.b32.xlu0 %v2309, 56
      %v3034 = vpop.permute.xlu0 %3033
      %3035 = vrot.lane.b32.xlu0 %v2312, 56
      %v3036 = vpop.permute.xlu0 %3035
      %3037 = vrot.lane.b32.xlu0 %v2314, 56
      %v3038 = vpop.permute.xlu0 %3037
      %3039 = vrot.lane.b32.xlu0 %v2317, 56
      %v3040 = vpop.permute.xlu0 %3039
      %3041 = vrot.lane.b32.xlu0 %v2319, 56
      %v3042 = vpop.permute.xlu0 %3041
      %3043 = vrot.lane.b32.xlu0 %v2322, 56
      %v3044 = vpop.permute.xlu0 %3043
      %3045 = vrot.lane.b32.xlu0 %v2324, 56
      %v3046 = vpop.permute.xlu0 %3045
      %3047 = vrot.lane.b32.xlu0 %v2327, 56
      %v3048 = vpop.permute.xlu0 %3047
      %3049 = vrot.lane.b32.xlu0 %v2329, 56
      %v3050 = vpop.permute.xlu0 %3049
      %3051 = vrot.lane.b32.xlu0 %v2332, 56
      %v3052 = vpop.permute.xlu0 %3051
      %3053 = vrot.lane.b32.xlu0 %v2334, 56
      %v3054 = vpop.permute.xlu0 %3053
      %3055 = vrot.lane.b32.xlu0 %v2337, 56
      %v3056 = vpop.permute.xlu0 %3055
      %3057 = vrot.lane.b32.xlu0 %v2339, 56
      %v3058 = vpop.permute.xlu0 %3057
      %3059 = vrot.lane.b32.xlu0 %v2707, 56
      %v3060 = vpop.permute.xlu0 %3059
      %3061 = vrot.lane.b32.xlu0 %v2709, 56
      %v3062 = vpop.permute.xlu0 %3061
      %3063 = vrot.lane.b32.xlu0 %v437, 56
      %v3064 = vpop.permute.xlu0 %3063
      %3065 = vrot.lane.b32.xlu0 %v439, 56
      %v3066 = vpop.permute.xlu0 %3065
      %3099 = vrot.lane.b32.xlu0 %v2443, 64
      %v3100 = vpop.permute.xlu0 %3099
      %3101 = vrot.lane.b32.xlu0 %v2445, 64
      %v3102 = vpop.permute.xlu0 %3101
      %3103 = vrot.lane.b32.xlu0 %v2448, 64
      %v3104 = vpop.permute.xlu0 %3103
      %3105 = vrot.lane.b32.xlu0 %v2450, 64
      %v3106 = vpop.permute.xlu0 %3105
      %3107 = vrot.lane.b32.xlu0 %v2453, 64
      %v3108 = vpop.permute.xlu0 %3107
      %3109 = vrot.lane.b32.xlu0 %v2455, 64
      %v3110 = vpop.permute.xlu0 %3109
      %3111 = vrot.lane.b32.xlu0 %v2458, 64
      %v3112 = vpop.permute.xlu0 %3111
      %3113 = vrot.lane.b32.xlu0 %v2460, 64
      %v3114 = vpop.permute.xlu0 %3113
      %3115 = vrot.lane.b32.xlu0 %v2463, 64
      %v3116 = vpop.permute.xlu0 %3115
      %3117 = vrot.lane.b32.xlu0 %v2465, 64
      %v3118 = vpop.permute.xlu0 %3117
      %3119 = vrot.lane.b32.xlu0 %v2468, 64
      %v3120 = vpop.permute.xlu0 %3119
      %3121 = vrot.lane.b32.xlu0 %v2470, 64
      %v3122 = vpop.permute.xlu0 %3121
      %3123 = vrot.lane.b32.xlu0 %v2473, 64
      %v3124 = vpop.permute.xlu0 %3123
      %3125 = vrot.lane.b32.xlu0 %v2475, 64
      %v3126 = vpop.permute.xlu0 %3125
      %3127 = vrot.lane.b32.xlu0 %v2478, 64
      %v3128 = vpop.permute.xlu0 %3127
      %3129 = vrot.lane.b32.xlu0 %v2480, 64
      %v3130 = vpop.permute.xlu0 %3129
      %3131 = vrot.lane.b32.xlu0 %v2483, 64
      %v3132 = vpop.permute.xlu0 %3131
      %3133 = vrot.lane.b32.xlu0 %v2485, 64
      %v3134 = vpop.permute.xlu0 %3133
      %3135 = vrot.lane.b32.xlu0 %v2488, 64
      %v3136 = vpop.permute.xlu0 %3135
      %3137 = vrot.lane.b32.xlu0 %v2490, 64
      %v3138 = vpop.permute.xlu0 %3137
      %3139 = vrot.lane.b32.xlu0 %v2493, 64
      %v3140 = vpop.permute.xlu0 %3139
      %3141 = vrot.lane.b32.xlu0 %v2495, 64
      %v3142 = vpop.permute.xlu0 %3141
      %3143 = vrot.lane.b32.xlu0 %v2498, 64
      %v3144 = vpop.permute.xlu0 %3143
      %3145 = vrot.lane.b32.xlu0 %v2500, 64
      %v3146 = vpop.permute.xlu0 %3145
      %3147 = vrot.lane.b32.xlu0 %v2503, 64
      %v3148 = vpop.permute.xlu0 %3147
      %3149 = vrot.lane.b32.xlu0 %v2505, 64
      %v3150 = vpop.permute.xlu0 %3149
      %3151 = vrot.lane.b32.xlu0 %v2508, 64
      %v3152 = vpop.permute.xlu0 %3151
      %3153 = vrot.lane.b32.xlu0 %v2510, 64
      %v3154 = vpop.permute.xlu0 %3153
      %3155 = vrot.lane.b32.xlu0 %v2808, 64
      %v3156 = vpop.permute.xlu0 %3155
      %3157 = vrot.lane.b32.xlu0 %v2810, 64
      %v3158 = vpop.permute.xlu0 %3157
      %3159 = vrot.lane.b32.xlu0 %v614, 64
      %v3160 = vpop.permute.xlu0 %3159
      %3161 = vrot.lane.b32.xlu0 %v616, 64
      %v3162 = vpop.permute.xlu0 %3161
      %v3195 = vsel %vm1409, %v368, %v2341
      %v3196 = vsel %vm1409, %v270, %v2343
      %v3197 = vsel %vm1409, %v2203, %v2345
      %v3198 = vsel %vm1409, %v2110, %v2347
      %v3199 = vsel %vm1409, %v2204, %v2349
      %v3200 = vsel %vm1409, %v2113, %v2351
      %v3201 = vsel %vm1409, %v2205, %v2353
      %v3202 = vsel %vm1409, %v2116, %v2355
      %v3203 = vsel %vm1409, %v2206, %v2357
      %v3204 = vsel %vm1409, %v2119, %v2359
      %v3205 = vsel %vm1409, %v2207, %v2361
      %v3206 = vsel %vm1409, %v2122, %v2363
      %v3207 = vsel %vm1409, %v2208, %v2365
      %v3208 = vsel %vm1409, %v2125, %v2367
      %v3209 = vsel %vm1409, %v2209, %v2369
      %v3210 = vsel %vm1409, %v2128, %v2371
      %v3211 = vsel %vm1409, %v2210, %v2373
      %v3212 = vsel %vm1409, %v2131, %v2375
      %v3213 = vsel %vm1409, %v2211, %v2377
      %v3214 = vsel %vm1409, %v2134, %v2379
      %v3215 = vsel %vm1409, %v2212, %v2381
      %v3216 = vsel %vm1409, %v2137, %v2383
      %v3217 = vsel %vm1409, %v2213, %v2385
      %v3218 = vsel %vm1409, %v2140, %v2387
      %v3219 = vsel %vm1409, %v2214, %v2389
      %v3220 = vsel %vm1409, %v2143, %v2391
      %v3221 = vsel %vm1409, %v2215, %v2393
      %v3222 = vsel %vm1409, %v2146, %v2395
      %v3223 = vsel %vm1409, %v2216, %v2397
      %v3224 = vsel %vm1409, %v2149, %v2399
      %v3225 = vsel %vm1409, %v2217, %v2401
      %v3226 = vsel %vm1409, %v2152, %v2403
      %v3227 = vsel %vm1475, %v3195, %v2512
      %v3228 = vsel %vm1475, %v3196, %v2514
      %v3229 = vsel %vm1475, %v3197, %v2516
      %v3230 = vsel %vm1475, %v3198, %v2518
      %v3231 = vsel %vm1475, %v3199, %v2520
      %v3232 = vsel %vm1475, %v3200, %v2522
      %v3233 = vsel %vm1475, %v3201, %v2524
      %v3234 = vsel %vm1475, %v3202, %v2526
      %v3235 = vsel %vm1475, %v3203, %v2528
      %v3236 = vsel %vm1475, %v3204, %v2530
      %v3237 = vsel %vm1475, %v3205, %v2532
      %v3238 = vsel %vm1475, %v3206, %v2534
      %v3239 = vsel %vm1475, %v3207, %v2536
      %v3240 = vsel %vm1475, %v3208, %v2538
      %v3241 = vsel %vm1475, %v3209, %v2540
      %v3242 = vsel %vm1475, %v3210, %v2542
      %v3243 = vsel %vm1475, %v3211, %v2544
      %v3244 = vsel %vm1475, %v3212, %v2546
      %v3245 = vsel %vm1475, %v3213, %v2548
      %v3246 = vsel %vm1475, %v3214, %v2550
      %v3247 = vsel %vm1475, %v3215, %v2552
      %v3248 = vsel %vm1475, %v3216, %v2554
      %v3249 = vsel %vm1475, %v3217, %v2556
      %v3250 = vsel %vm1475, %v3218, %v2558
      %v3251 = vsel %vm1475, %v3219, %v2560
      %v3252 = vsel %vm1475, %v3220, %v2562
      %v3253 = vsel %vm1475, %v3221, %v2564
      %v3254 = vsel %vm1475, %v3222, %v2566
      %v3255 = vsel %vm1475, %v3223, %v2568
      %v3256 = vsel %vm1475, %v3224, %v2570
      %v3257 = vsel %vm1475, %v3225, %v2572
      %v3258 = vsel %vm1475, %v3226, %v2574
      %v3259 = vsel %vm1541, %v3227, %v2609
      %v3260 = vsel %vm1541, %v3228, %v2611
      %v3261 = vsel %vm1541, %v3229, %v2613
      %v3262 = vsel %vm1541, %v3230, %v2615
      %v3263 = vsel %vm1541, %v3231, %v2617
      %v3264 = vsel %vm1541, %v3232, %v2619
      %v3265 = vsel %vm1541, %v3233, %v2621
      %v3266 = vsel %vm1541, %v3234, %v2623
      %v3267 = vsel %vm1541, %v3235, %v2625
      %v3268 = vsel %vm1541, %v3236, %v2627
      %v3269 = vsel %vm1541, %v3237, %v2629
      %v3270 = vsel %vm1541, %v3238, %v2631
      %v3271 = vsel %vm1541, %v3239, %v2633
      %v3272 = vsel %vm1541, %v3240, %v2635
      %v3273 = vsel %vm1541, %v3241, %v2637
      %v3274 = vsel %vm1541, %v3242, %v2639
      %v3275 = vsel %vm1541, %v3243, %v2641
      %v3276 = vsel %vm1541, %v3244, %v2643
      %v3277 = vsel %vm1541, %v3245, %v2645
      %v3278 = vsel %vm1541, %v3246, %v2647
      %v3279 = vsel %vm1541, %v3247, %v2649
      %v3280 = vsel %vm1541, %v3248, %v2651
      %v3281 = vsel %vm1541, %v3249, %v2653
      %v3282 = vsel %vm1541, %v3250, %v2655
      %v3283 = vsel %vm1541, %v3251, %v2657
      %v3284 = vsel %vm1541, %v3252, %v2659
      %v3285 = vsel %vm1541, %v3253, %v2661
      %v3286 = vsel %vm1541, %v3254, %v2663
      %v3287 = vsel %vm1541, %v3255, %v2665
      %v3288 = vsel %vm1541, %v3256, %v2667
      %v3289 = vsel %vm1541, %v3257, %v2669
      %v3290 = vsel %vm1541, %v3258, %v2671
      %v3291 = vsel %vm1607, %v3259, %v2711
      %v3292 = vsel %vm1607, %v3260, %v2713
      %v3293 = vsel %vm1607, %v3261, %v2715
      %v3294 = vsel %vm1607, %v3262, %v2717
      %v3295 = vsel %vm1607, %v3263, %v2719
      %v3296 = vsel %vm1607, %v3264, %v2721
      %v3297 = vsel %vm1607, %v3265, %v2723
      %v3298 = vsel %vm1607, %v3266, %v2725
      %v3299 = vsel %vm1607, %v3267, %v2727
      %v3300 = vsel %vm1607, %v3268, %v2729
      %v3301 = vsel %vm1607, %v3269, %v2731
      %v3302 = vsel %vm1607, %v3270, %v2733
      %v3303 = vsel %vm1607, %v3271, %v2735
      %v3304 = vsel %vm1607, %v3272, %v2737
      %v3305 = vsel %vm1607, %v3273, %v2739
      %v3306 = vsel %vm1607, %v3274, %v2741
      %v3307 = vsel %vm1607, %v3275, %v2743
      %v3308 = vsel %vm1607, %v3276, %v2745
      %v3309 = vsel %vm1607, %v3277, %v2747
      %v3310 = vsel %vm1607, %v3278, %v2749
      %v3311 = vsel %vm1607, %v3279, %v2751
      %v3312 = vsel %vm1607, %v3280, %v2753
      %v3313 = vsel %vm1607, %v3281, %v2755
      %v3314 = vsel %vm1607, %v3282, %v2757
      %v3315 = vsel %vm1607, %v3283, %v2759
      %v3316 = vsel %vm1607, %v3284, %v2761
      %v3317 = vsel %vm1607, %v3285, %v2763
      %v3318 = vsel %vm1607, %v3286, %v2765
      %v3319 = vsel %vm1607, %v3287, %v2767
      %v3320 = vsel %vm1607, %v3288, %v2769
      %v3321 = vsel %vm1607, %v3289, %v2771
      %v3322 = vsel %vm1607, %v3290, %v2773
      %vm3323 = vcmask 326656
      %v3324 = vsel %vm3323, %v3291, %v2812
      %v3325 = vsel %vm3323, %v3292, %v2814
      %v3326 = vsel %vm3323, %v3293, %v2816
      %v3327 = vsel %vm3323, %v3294, %v2818
      %v3328 = vsel %vm3323, %v3295, %v2820
      %v3329 = vsel %vm3323, %v3296, %v2822
      %v3330 = vsel %vm3323, %v3297, %v2824
      %v3331 = vsel %vm3323, %v3298, %v2826
      %v3332 = vsel %vm3323, %v3299, %v2828
      %v3333 = vsel %vm3323, %v3300, %v2830
      %v3334 = vsel %vm3323, %v3301, %v2832
      %v3335 = vsel %vm3323, %v3302, %v2834
      %v3336 = vsel %vm3323, %v3303, %v2836
      %v3337 = vsel %vm3323, %v3304, %v2838
      %v3338 = vsel %vm3323, %v3305, %v2840
      %v3339 = vsel %vm3323, %v3306, %v2842
      %v3340 = vsel %vm3323, %v3307, %v2844
      %v3341 = vsel %vm3323, %v3308, %v2846
      %v3342 = vsel %vm3323, %v3309, %v2848
      %v3343 = vsel %vm3323, %v3310, %v2850
      %v3344 = vsel %vm3323, %v3311, %v2852
      %v3345 = vsel %vm3323, %v3312, %v2854
      %v3346 = vsel %vm3323, %v3313, %v2856
      %v3347 = vsel %vm3323, %v3314, %v2858
      %v3348 = vsel %vm3323, %v3315, %v2860
      %v3349 = vsel %vm3323, %v3316, %v2862
      %v3350 = vsel %vm3323, %v3317, %v2864
      %v3351 = vsel %vm3323, %v3318, %v2866
      %v3352 = vsel %vm3323, %v3319, %v2868
      %v3353 = vsel %vm3323, %v3320, %v2870
      %v3354 = vsel %vm3323, %v3321, %v2872
      %v3355 = vsel %vm3323, %v3322, %v2874
      %vm3356 = vcmask 392192
      %v3357 = vsel %vm3356, %v3324, %v2908
      %v3358 = vsel %vm3356, %v3325, %v2910
      %v3359 = vsel %vm3356, %v3326, %v2912
      %v3360 = vsel %vm3356, %v3327, %v2914
      %v3361 = vsel %vm3356, %v3328, %v2916
      %v3362 = vsel %vm3356, %v3329, %v2918
      %v3363 = vsel %vm3356, %v3330, %v2920
      %v3364 = vsel %vm3356, %v3331, %v2922
      %v3365 = vsel %vm3356, %v3332, %v2924
      %v3366 = vsel %vm3356, %v3333, %v2926
      %v3367 = vsel %vm3356, %v3334, %v2928
      %v3368 = vsel %vm3356, %v3335, %v2930
      %v3369 = vsel %vm3356, %v3336, %v2932
      %v3370 = vsel %vm3356, %v3337, %v2934
      %v3371 = vsel %vm3356, %v3338, %v2936
      %v3372 = vsel %vm3356, %v3339, %v2938
      %v3373 = vsel %vm3356, %v3340, %v2940
      %v3374 = vsel %vm3356, %v3341, %v2942
      %v3375 = vsel %vm3356, %v3342, %v2944
      %v3376 = vsel %vm3356, %v3343, %v2946
      %v3377 = vsel %vm3356, %v3344, %v2948
      %v3378 = vsel %vm3356, %v3345, %v2950
      %v3379 = vsel %vm3356, %v3346, %v2952
      %v3380 = vsel %vm3356, %v3347, %v2954
      %v3381 = vsel %vm3356, %v3348, %v2956
      %v3382 = vsel %vm3356, %v3349, %v2958
      %v3383 = vsel %vm3356, %v3350, %v2960
      %v3384 = vsel %vm3356, %v3351, %v2962
      %v3385 = vsel %vm3356, %v3352, %v2964
      %v3386 = vsel %vm3356, %v3353, %v2966
      %v3387 = vsel %vm3356, %v3354, %v2968
      %v3388 = vsel %vm3356, %v3355, %v2970
      %vm3389 = vcmask 457728
      %v3390 = vsel %vm3389, %v3357, %v3004
      %v3391 = vsel %vm3389, %v3358, %v3006
      %v3392 = vsel %vm3389, %v3359, %v3008
      %v3393 = vsel %vm3389, %v3360, %v3010
      %v3394 = vsel %vm3389, %v3361, %v3012
      %v3395 = vsel %vm3389, %v3362, %v3014
      %v3396 = vsel %vm3389, %v3363, %v3016
      %v3397 = vsel %vm3389, %v3364, %v3018
      %v3398 = vsel %vm3389, %v3365, %v3020
      %v3399 = vsel %vm3389, %v3366, %v3022
      %v3400 = vsel %vm3389, %v3367, %v3024
      %v3401 = vsel %vm3389, %v3368, %v3026
      %v3402 = vsel %vm3389, %v3369, %v3028
      %v3403 = vsel %vm3389, %v3370, %v3030
      %v3404 = vsel %vm3389, %v3371, %v3032
      %v3405 = vsel %vm3389, %v3372, %v3034
      %v3406 = vsel %vm3389, %v3373, %v3036
      %v3407 = vsel %vm3389, %v3374, %v3038
      %v3408 = vsel %vm3389, %v3375, %v3040
      %v3409 = vsel %vm3389, %v3376, %v3042
      %v3410 = vsel %vm3389, %v3377, %v3044
      %v3411 = vsel %vm3389, %v3378, %v3046
      %v3412 = vsel %vm3389, %v3379, %v3048
      %v3413 = vsel %vm3389, %v3380, %v3050
      %v3414 = vsel %vm3389, %v3381, %v3052
      %v3415 = vsel %vm3389, %v3382, %v3054
      %v3416 = vsel %vm3389, %v3383, %v3056
      %v3417 = vsel %vm3389, %v3384, %v3058
      %v3418 = vsel %vm3389, %v3385, %v3060
      %v3419 = vsel %vm3389, %v3386, %v3062
      %v3420 = vsel %vm3389, %v3387, %v3064
      %v3421 = vsel %vm3389, %v3388, %v3066
      %vm3422 = vcmask 523264
      %v3423 = vsel %vm3422, %v3390, %v3100
      %v3424 = vsel %vm3422, %v3391, %v3102
      %v3425 = vsel %vm3422, %v3392, %v3104
      %v3426 = vsel %vm3422, %v3393, %v3106
      %v3427 = vsel %vm3422, %v3394, %v3108
      %v3428 = vsel %vm3422, %v3395, %v3110
      %v3429 = vsel %vm3422, %v3396, %v3112
      %v3430 = vsel %vm3422, %v3397, %v3114
      %v3431 = vsel %vm3422, %v3398, %v3116
      %v3432 = vsel %vm3422, %v3399, %v3118
      %v3433 = vsel %vm3422, %v3400, %v3120
      %v3434 = vsel %vm3422, %v3401, %v3122
      %v3435 = vsel %vm3422, %v3402, %v3124
      %v3436 = vsel %vm3422, %v3403, %v3126
      %v3437 = vsel %vm3422, %v3404, %v3128
      %v3438 = vsel %vm3422, %v3405, %v3130
      %v3439 = vsel %vm3422, %v3406, %v3132
      %v3440 = vsel %vm3422, %v3407, %v3134
      %v3441 = vsel %vm3422, %v3408, %v3136
      %v3442 = vsel %vm3422, %v3409, %v3138
      %v3443 = vsel %vm3422, %v3410, %v3140
      %v3444 = vsel %vm3422, %v3411, %v3142
      %v3445 = vsel %vm3422, %v3412, %v3144
      %v3446 = vsel %vm3422, %v3413, %v3146
      %v3447 = vsel %vm3422, %v3414, %v3148
      %v3448 = vsel %vm3422, %v3415, %v3150
      %v3449 = vsel %vm3422, %v3416, %v3152
      %v3450 = vsel %vm3422, %v3417, %v3154
      %v3451 = vsel %vm3422, %v3418, %v3156
      %v3452 = vsel %vm3422, %v3419, %v3158
      %v3453 = vsel %vm3422, %v3420, %v3160
      %v3454 = vsel %vm3422, %v3421, %v3162
      %v3455 = vld [vmem:[%s3 + $0x1] sm:$0x1]
      %v3456 = vlaneseq
      %v3457 = vshrl.u32 %v3456, 7
      %v3458 = vsub.s32 0, %v3457
      %v3459 = vrot.slane %v3455, %v3458
      %vm3460 = vcmask 588800
      %v3462 = vsel %vm3460, %v3423, 0
      %v3465 = vsel %vm3460, %v3424, 0
      %v3468 = vsel %vm3460, %v3425, 0
      %v3471 = vsel %vm3460, %v3426, 0
      %v3474 = vsel %vm3460, %v3427, 0
      %v3477 = vsel %vm3460, %v3428, 0
      %v3480 = vsel %vm3460, %v3429, 0
      %v3483 = vsel %vm3460, %v3430, 0
      %v3486 = vsel %vm3460, %v3431, 0
      %v3489 = vsel %vm3460, %v3432, 0
      %v3492 = vsel %vm3460, %v3433, 0
      %v3495 = vsel %vm3460, %v3434, 0
      %v3498 = vsel %vm3460, %v3435, 0
      %v3501 = vsel %vm3460, %v3436, 0
      %v3504 = vsel %vm3460, %v3437, 0
      %v3507 = vsel %vm3460, %v3438, 0
      %v3510 = vsel %vm3460, %v3439, 0
      %v3513 = vsel %vm3460, %v3440, 0
      %v3516 = vsel %vm3460, %v3441, 0
      %v3519 = vsel %vm3460, %v3442, 0
      %v3522 = vsel %vm3460, %v3443, 0
      %v3525 = vsel %vm3460, %v3444, 0
      %v3528 = vsel %vm3460, %v3445, 0
      %v3531 = vsel %vm3460, %v3446, 0
      %v3534 = vsel %vm3460, %v3447, 0
      %v3537 = vsel %vm3460, %v3448, 0
      %v3540 = vsel %vm3460, %v3449, 0
      %v3543 = vsel %vm3460, %v3450, 0
      %v3546 = vsel %vm3460, %v3451, 0
      %v3549 = vsel %vm3460, %v3452, 0
      %v3552 = vsel %vm3460, %v3453, 0
      %v3555 = vsel %vm3460, %v3454, 0
      %3557 = vmatprep.subr.mxu0 0.0
      %3558 = vmatpush1.msra.mxu0 %v2067
      %3559 = vmatprep.subr.mxu0 0.0
      %3560 = vmatpush1.msra.mxu0 %v2068
      %3561 = vmatprep.subr.mxu0 0.0
      %3562 = vmatpush1.msra.mxu0 %v2069
      %3563 = vmatprep.subr.mxu0 0.0
      %3564 = vmatpush1.msra.mxu0 %v2070
      %3565 = vmatprep.subr.mxu0 0.0
      %3566 = vmatpush1.msra.mxu0 %v2071
      %3567 = vmatprep.subr.mxu0 0.0
      %3568 = vmatpush1.msra.mxu0 %v2072
      %3569 = vmatprep.subr.mxu0 0.0
      %3570 = vmatpush1.msra.mxu0 %v2073
      %3571 = vmatprep.subr.mxu0 0.0
      %3572 = vmatpush1.msra.mxu0 %v2074
      %3573 = vmatprep.subr.mxu0 0.0
      %3574 = vmatpush1.msra.mxu0 %v2075
      %3575 = vmatprep.subr.mxu0 0.0
      %3576 = vmatpush1.msra.mxu0 0.0
      %3577 = vmatprep.subr.mxu0 0.0
      %3578 = vmatpush1.msra.mxu0 0.0
      %3579 = vmatprep.subr.mxu0 0.0
      %3580 = vmatpush1.msra.mxu0 0.0
      %3581 = vmatprep.subr.mxu0 0.0
      %3582 = vmatpush1.msra.mxu0 0.0
      %3583 = vmatprep.subr.mxu0 0.0
      %3584 = vmatpush1.msra.mxu0 0.0
      %3585 = vmatprep.subr.mxu0 0.0
      %3586 = vmatpush1.msra.mxu0 0.0
      %3587 = vmatprep.subr.mxu0 0.0
      %3588 = vmatpush1.msra.mxu0 0.0
      %3589 = vmatprep.subr.mxu0 0.0
      %3590 = vmatpush1.msra.mxu0 0.0
      %3591 = vmatprep.subr.mxu0 0.0
      %3592 = vmatpush1.msra.mxu0 0.0
      %3593 = vmatprep.subr.mxu0 0.0
      %3594 = vmatpush1.msra.mxu0 0.0
      %3595 = vmatprep.subr.mxu0 0.0
      %3596 = vmatpush1.msra.mxu0 0.0
      %3597 = vmatprep.subr.mxu0 0.0
      %3598 = vmatpush1.msra.mxu0 0.0
      %3599 = vmatprep.subr.mxu0 0.0
      %3600 = vmatpush1.msra.mxu0 0.0
      %3601 = vmatprep.subr.mxu0 0.0
      %3602 = vmatpush1.msra.mxu0 0.0
      %3603 = vmatprep.subr.mxu0 0.0
      %3604 = vmatpush1.msra.mxu0 0.0
      %3605 = vmatprep.subr.mxu0 0.0
      %3606 = vmatpush1.msra.mxu0 0.0
      %3607 = vmatprep.subr.mxu0 0.0
      %3608 = vmatpush1.msra.mxu0 0.0
      %3609 = vmatprep.subr.mxu0 0.0
      %3610 = vmatpush1.msra.mxu0 0.0
      %3611 = vmatprep.subr.mxu0 0.0
      %3612 = vmatpush1.msra.mxu0 0.0
      %3613 = vmatprep.subr.mxu0 0.0
      %3614 = vmatpush1.msra.mxu0 0.0
      %3615 = vmatprep.subr.mxu0 0.0
      %3616 = vmatpush1.msra.mxu0 0.0
      %3617 = vmatprep.subr.mxu0 0.0
      %3618 = vmatpush1.msra.mxu0 0.0
      %3619 = vmatprep.subr.mxu0 0.0
      %3620 = vmatpush1.msra.mxu0 0.0
      %3621 = vmatprep.mubr.f32.mxu0 0.0
      %3622 = vmatmul.mubr.f32.gmra.mrb[0].mxu0 %v3462
      %v3623 = vpop.f32.mrb[0].mxu0
      %v3624 = vadd.f32 %v3459, %v3623
      %v3625 = vpop.f32.mrb[0].mxu0
      %3626 = vmatprep.mubr.f32.mxu0 0.0
      %3627 = vmatmul.mubr.f32.gmra.mrb[0].mxu0 %v3465
      %v3628 = vpop.f32.mrb[0].mxu0
      %v3629 = vadd.f32 %v3459, %v3628
      %v3630 = vpop.f32.mrb[0].mxu0
      %3631 = vmatprep.mubr.f32.mxu0 0.0
      %3632 = vmatmul.mubr.f32.gmra.mrb[0].mxu0 %v3468
      %v3633 = vpop.f32.mrb[0].mxu0
      %v3634 = vadd.f32 %v3459, %v3633
      %v3635 = vpop.f32.mrb[0].mxu0
      %3636 = vmatprep.mubr.f32.mxu0 0.0
      %3637 = vmatmul.mubr.f32.gmra.mrb[0].mxu0 %v3471
      %v3638 = vpop.f32.mrb[0].mxu0
      %v3639 = vadd.f32 %v3459, %v3638
      %v3640 = vpop.f32.mrb[0].mxu0
      %3641 = vmatprep.mubr.f32.mxu0 0.0
      %3642 = vmatmul.mubr.f32.gmra.mrb[0].mxu0 %v3474
      %v3643 = vpop.f32.mrb[0].mxu0
      %v3644 = vadd.f32 %v3459, %v3643
      %v3645 = vpop.f32.mrb[0].mxu0
      %3646 = vmatprep.mubr.f32.mxu0 0.0
      %3647 = vmatmul.mubr.f32.gmra.mrb[0].mxu0 %v3477
      %v3648 = vpop.f32.mrb[0].mxu0
      %v3649 = vadd.f32 %v3459, %v3648
      %v3650 = vpop.f32.mrb[0].mxu0
      %3651 = vmatprep.mubr.f32.mxu0 0.0
      %3652 = vmatmul.mubr.f32.gmra.mrb[0].mxu0 %v3480
      %v3653 = vpop.f32.mrb[0].mxu0
      %v3654 = vadd.f32 %v3459, %v3653
      %v3655 = vpop.f32.mrb[0].mxu0
      %3656 = vmatprep.mubr.f32.mxu0 0.0
      %3657 = vmatmul.mubr.f32.gmra.mrb[0].mxu0 %v3483
      %v3658 = vpop.f32.mrb[0].mxu0
      %v3659 = vadd.f32 %v3459, %v3658
      %v3660 = vpop.f32.mrb[0].mxu0
      %3661 = vmatprep.mubr.f32.mxu0 0.0
      %3662 = vmatmul.mubr.f32.gmra.mrb[0].mxu0 %v3486
      %v3663 = vpop.f32.mrb[0].mxu0
      %v3664 = vadd.f32 %v3459, %v3663
      %v3665 = vpop.f32.mrb[0].mxu0
      %3666 = vmatprep.mubr.f32.mxu0 0.0
      %3667 = vmatmul.mubr.f32.gmra.mrb[0].mxu0 %v3489
      %v3668 = vpop.f32.mrb[0].mxu0
      %v3669 = vadd.f32 %v3459, %v3668
      %v3670 = vpop.f32.mrb[0].mxu0
      %3671 = vmatprep.mubr.f32.mxu0 0.0
      %3672 = vmatmul.mubr.f32.gmra.mrb[0].mxu0 %v3492
      %v3673 = vpop.f32.mrb[0].mxu0
      %v3674 = vadd.f32 %v3459, %v3673
      %v3675 = vpop.f32.mrb[0].mxu0
      %3676 = vmatprep.mubr.f32.mxu0 0.0
      %3677 = vmatmul.mubr.f32.gmra.mrb[0].mxu0 %v3495
      %v3678 = vpop.f32.mrb[0].mxu0
      %v3679 = vadd.f32 %v3459, %v3678
      %v3680 = vpop.f32.mrb[0].mxu0
      %3681 = vmatprep.mubr.f32.mxu0 0.0
      %3682 = vmatmul.mubr.f32.gmra.mrb[0].mxu0 %v3498
      %v3683 = vpop.f32.mrb[0].mxu0
      %v3684 = vadd.f32 %v3459, %v3683
      %v3685 = vpop.f32.mrb[0].mxu0
      %3686 = vmatprep.mubr.f32.mxu0 0.0
      %3687 = vmatmul.mubr.f32.gmra.mrb[0].mxu0 %v3501
      %v3688 = vpop.f32.mrb[0].mxu0
      %v3689 = vadd.f32 %v3459, %v3688
      %v3690 = vpop.f32.mrb[0].mxu0
      %3691 = vmatprep.mubr.f32.mxu0 0.0
      %3692 = vmatmul.mubr.f32.gmra.mrb[0].mxu0 %v3504
      %v3693 = vpop.f32.mrb[0].mxu0
      %v3694 = vadd.f32 %v3459, %v3693
      %v3695 = vpop.f32.mrb[0].mxu0
      %3696 = vmatprep.mubr.f32.mxu0 0.0
      %3697 = vmatmul.mubr.f32.gmra.mrb[0].mxu0 %v3507
      %v3698 = vpop.f32.mrb[0].mxu0
      %v3699 = vadd.f32 %v3459, %v3698
      %v3700 = vpop.f32.mrb[0].mxu0
      %3701 = vmatprep.mubr.f32.mxu0 0.0
      %3702 = vmatmul.mubr.f32.gmra.mrb[0].mxu0 %v3510
      %v3703 = vpop.f32.mrb[0].mxu0
      %v3704 = vadd.f32 %v3459, %v3703
      %v3705 = vpop.f32.mrb[0].mxu0
      %3706 = vmatprep.mubr.f32.mxu0 0.0
      %3707 = vmatmul.mubr.f32.gmra.mrb[0].mxu0 %v3513
      %v3708 = vpop.f32.mrb[0].mxu0
      %v3709 = vadd.f32 %v3459, %v3708
      %v3710 = vpop.f32.mrb[0].mxu0
      %3711 = vmatprep.mubr.f32.mxu0 0.0
      %3712 = vmatmul.mubr.f32.gmra.mrb[0].mxu0 %v3516
      %v3713 = vpop.f32.mrb[0].mxu0
      %v3714 = vadd.f32 %v3459, %v3713
      %v3715 = vpop.f32.mrb[0].mxu0
      %3716 = vmatprep.mubr.f32.mxu0 0.0
      %3717 = vmatmul.mubr.f32.gmra.mrb[0].mxu0 %v3519
      %v3718 = vpop.f32.mrb[0].mxu0
      %v3719 = vadd.f32 %v3459, %v3718
      %v3720 = vpop.f32.mrb[0].mxu0
      %3721 = vmatprep.mubr.f32.mxu0 0.0
      %3722 = vmatmul.mubr.f32.gmra.mrb[0].mxu0 %v3522
      %v3723 = vpop.f32.mrb[0].mxu0
      %v3724 = vadd.f32 %v3459, %v3723
      %v3725 = vpop.f32.mrb[0].mxu0
      %3726 = vmatprep.mubr.f32.mxu0 0.0
      %3727 = vmatmul.mubr.f32.gmra.mrb[0].mxu0 %v3525
      %v3728 = vpop.f32.mrb[0].mxu0
      %v3729 = vadd.f32 %v3459, %v3728
      %v3730 = vpop.f32.mrb[0].mxu0
      %3731 = vmatprep.mubr.f32.mxu0 0.0
      %3732 = vmatmul.mubr.f32.gmra.mrb[0].mxu0 %v3528
      %v3733 = vpop.f32.mrb[0].mxu0
      %v3734 = vadd.f32 %v3459, %v3733
      %v3735 = vpop.f32.mrb[0].mxu0
      %3736 = vmatprep.mubr.f32.mxu0 0.0
      %3737 = vmatmul.mubr.f32.gmra.mrb[0].mxu0 %v3531
      %v3738 = vpop.f32.mrb[0].mxu0
      %v3739 = vadd.f32 %v3459, %v3738
      %v3740 = vpop.f32.mrb[0].mxu0
      %3741 = vmatprep.mubr.f32.mxu0 0.0
      %3742 = vmatmul.mubr.f32.gmra.mrb[0].mxu0 %v3534
      %v3743 = vpop.f32.mrb[0].mxu0
      %v3744 = vadd.f32 %v3459, %v3743
      %v3745 = vpop.f32.mrb[0].mxu0
      %3746 = vmatprep.mubr.f32.mxu0 0.0
      %3747 = vmatmul.mubr.f32.gmra.mrb[0].mxu0 %v3537
      %v3748 = vpop.f32.mrb[0].mxu0
      %v3749 = vadd.f32 %v3459, %v3748
      %v3750 = vpop.f32.mrb[0].mxu0
      %3751 = vmatprep.mubr.f32.mxu0 0.0
      %3752 = vmatmul.mubr.f32.gmra.mrb[0].mxu0 %v3540
      %v3753 = vpop.f32.mrb[0].mxu0
      %v3754 = vadd.f32 %v3459, %v3753
      %v3755 = vpop.f32.mrb[0].mxu0
      %3756 = vmatprep.mubr.f32.mxu0 0.0
      %3757 = vmatmul.mubr.f32.gmra.mrb[0].mxu0 %v3543
      %v3758 = vpop.f32.mrb[0].mxu0
      %v3759 = vadd.f32 %v3459, %v3758
      %v3760 = vpop.f32.mrb[0].mxu0
      %3761 = vmatprep.mubr.f32.mxu0 0.0
      %3762 = vmatmul.mubr.f32.gmra.mrb[0].mxu0 %v3546
      %v3763 = vpop.f32.mrb[0].mxu0
      %v3764 = vadd.f32 %v3459, %v3763
      %v3765 = vpop.f32.mrb[0].mxu0
      %3766 = vmatprep.mubr.f32.mxu0 0.0
      %3767 = vmatmul.mubr.f32.gmra.mrb[0].mxu0 %v3549
      %v3768 = vpop.f32.mrb[0].mxu0
      %v3769 = vadd.f32 %v3459, %v3768
      %v3770 = vpop.f32.mrb[0].mxu0
      %3771 = vmatprep.mubr.f32.mxu0 0.0
      %3772 = vmatmul.mubr.f32.gmra.mrb[0].mxu0 %v3552
      %v3773 = vpop.f32.mrb[0].mxu0
      %v3774 = vadd.f32 %v3459, %v3773
      %v3775 = vpop.f32.mrb[0].mxu0
      %3776 = vmatprep.mubr.f32.mxu0 0.0
      %3777 = vmatmul.mubr.f32.gmra.mrb[0].mxu0 %v3555
      %v3778 = vpop.f32.mrb[0].mxu0
      %v3779 = vadd.f32 %v3459, %v3778
      %v3780 = vpop.f32.mrb[0].mxu0
      %3781 = vdwg.mxu0
      %vm3782 = vcmp.gt.f32.partialorder %v3624, 0.0
      %vm3783 = vcmp.gt.f32.partialorder %v3629, 0.0
      %vm3784 = vcmp.gt.f32.partialorder %v3634, 0.0
      %vm3785 = vcmp.gt.f32.partialorder %v3639, 0.0
      %vm3786 = vcmp.gt.f32.partialorder %v3644, 0.0
      %vm3787 = vcmp.gt.f32.partialorder %v3649, 0.0
      %vm3788 = vcmp.gt.f32.partialorder %v3654, 0.0
      %vm3789 = vcmp.gt.f32.partialorder %v3659, 0.0
      %vm3790 = vcmp.gt.f32.partialorder %v3664, 0.0
      %vm3791 = vcmp.gt.f32.partialorder %v3669, 0.0
      %vm3792 = vcmp.gt.f32.partialorder %v3674, 0.0
      %vm3793 = vcmp.gt.f32.partialorder %v3679, 0.0
      %vm3794 = vcmp.gt.f32.partialorder %v3684, 0.0
      %vm3795 = vcmp.gt.f32.partialorder %v3689, 0.0
      %vm3796 = vcmp.gt.f32.partialorder %v3694, 0.0
      %vm3797 = vcmp.gt.f32.partialorder %v3699, 0.0
      %vm3798 = vcmp.gt.f32.partialorder %v3704, 0.0
      %vm3799 = vcmp.gt.f32.partialorder %v3709, 0.0
      %vm3800 = vcmp.gt.f32.partialorder %v3714, 0.0
      %vm3801 = vcmp.gt.f32.partialorder %v3719, 0.0
      %vm3802 = vcmp.gt.f32.partialorder %v3724, 0.0
      %vm3803 = vcmp.gt.f32.partialorder %v3729, 0.0
      %vm3804 = vcmp.gt.f32.partialorder %v3734, 0.0
      %vm3805 = vcmp.gt.f32.partialorder %v3739, 0.0
      %vm3806 = vcmp.gt.f32.partialorder %v3744, 0.0
      %vm3807 = vcmp.gt.f32.partialorder %v3749, 0.0
      %vm3808 = vcmp.gt.f32.partialorder %v3754, 0.0
      %vm3809 = vcmp.gt.f32.partialorder %v3759, 0.0
      %vm3810 = vcmp.gt.f32.partialorder %v3764, 0.0
      %vm3811 = vcmp.gt.f32.partialorder %v3769, 0.0
      %vm3812 = vcmp.gt.f32.partialorder %v3774, 0.0
      %vm3813 = vcmp.gt.f32.partialorder %v3779, 0.0
      %v3814 = vmul.f32 %v3624, 0.2
      %v3815 = vmul.f32 %v3629, 0.2
      %v3816 = vmul.f32 %v3634, 0.2
      %v3817 = vmul.f32 %v3639, 0.2
      %v3818 = vmul.f32 %v3644, 0.2
      %v3819 = vmul.f32 %v3649, 0.2
      %v3820 = vmul.f32 %v3654, 0.2
      %v3821 = vmul.f32 %v3659, 0.2
      %v3822 = vmul.f32 %v3664, 0.2
      %v3823 = vmul.f32 %v3669, 0.2
      %v3824 = vmul.f32 %v3674, 0.2
      %v3825 = vmul.f32 %v3679, 0.2
      %v3826 = vmul.f32 %v3684, 0.2
      %v3827 = vmul.f32 %v3689, 0.2
      %v3828 = vmul.f32 %v3694, 0.2
      %v3829 = vmul.f32 %v3699, 0.2
      %v3830 = vmul.f32 %v3704, 0.2
      %v3831 = vmul.f32 %v3709, 0.2
      %v3832 = vmul.f32 %v3714, 0.2
      %v3833 = vmul.f32 %v3719, 0.2
      %v3834 = vmul.f32 %v3724, 0.2
      %v3835 = vmul.f32 %v3729, 0.2
      %v3836 = vmul.f32 %v3734, 0.2
      %v3837 = vmul.f32 %v3739, 0.2
      %v3838 = vmul.f32 %v3744, 0.2
      %v3839 = vmul.f32 %v3749, 0.2
      %v3840 = vmul.f32 %v3754, 0.2
      %v3841 = vmul.f32 %v3759, 0.2
      %v3842 = vmul.f32 %v3764, 0.2
      %v3843 = vmul.f32 %v3769, 0.2
      %v3844 = vmul.f32 %v3774, 0.2
      %v3845 = vmul.f32 %v3779, 0.2
      %v3846 = vsel %vm3782, %v3624, %v3814
      %v3847 = vsel %vm3783, %v3629, %v3815
      %v3848 = vsel %vm3784, %v3634, %v3816
      %v3849 = vsel %vm3785, %v3639, %v3817
      %v3850 = vsel %vm3786, %v3644, %v3818
      %v3851 = vsel %vm3787, %v3649, %v3819
      %v3852 = vsel %vm3788, %v3654, %v3820
      %v3853 = vsel %vm3789, %v3659, %v3821
      %v3854 = vsel %vm3790, %v3664, %v3822
      %v3855 = vsel %vm3791, %v3669, %v3823
      %v3856 = vsel %vm3792, %v3674, %v3824
      %v3857 = vsel %vm3793, %v3679, %v3825
      %v3858 = vsel %vm3794, %v3684, %v3826
      %v3859 = vsel %vm3795, %v3689, %v3827
      %v3860 = vsel %vm3796, %v3694, %v3828
      %v3861 = vsel %vm3797, %v3699, %v3829
      %v3862 = vsel %vm3798, %v3704, %v3830
      %v3863 = vsel %vm3799, %v3709, %v3831
      %v3864 = vsel %vm3800, %v3714, %v3832
      %v3865 = vsel %vm3801, %v3719, %v3833
      %v3866 = vsel %vm3802, %v3724, %v3834
      %v3867 = vsel %vm3803, %v3729, %v3835
      %v3868 = vsel %vm3804, %v3734, %v3836
      %v3869 = vsel %vm3805, %v3739, %v3837
      %v3870 = vsel %vm3806, %v3744, %v3838
      %v3871 = vsel %vm3807, %v3749, %v3839
      %v3872 = vsel %vm3808, %v3754, %v3840
      %v3873 = vsel %vm3809, %v3759, %v3841
      %v3874 = vsel %vm3810, %v3764, %v3842
      %v3875 = vsel %vm3811, %v3769, %v3843
      %v3876 = vsel %vm3812, %v3774, %v3844
      %v3877 = vsel %vm3813, %v3779, %v3845
      %3878 = vst.msk [vmem:[%s197] sm:$0xff] %vm1409, %v3846
      %3879 = vst.msk [vmem:[%s197 + $0x8] sm:$0xff] %vm1409, %v3847
      %3880 = vst.msk [vmem:[%s197 + $0x10] sm:$0xff] %vm1409, %v3848
      %3881 = vst.msk [vmem:[%s197 + $0x18] sm:$0xff] %vm1409, %v3849
      %3882 = vst.msk [vmem:[%s197 + $0x20] sm:$0xff] %vm1409, %v3850
      %3883 = vst.msk [vmem:[%s197 + $0x28] sm:$0xff] %vm1409, %v3851
      %3884 = vst.msk [vmem:[%s197 + $0x30] sm:$0xff] %vm1409, %v3852
      %3885 = vst.msk [vmem:[%s197 + $0x38] sm:$0xff] %vm1409, %v3853
      %3886 = vst.msk [vmem:[%s197 + $0x40] sm:$0xff] %vm1409, %v3854
      %3887 = vst.msk [vmem:[%s197 + $0x48] sm:$0xff] %vm1409, %v3855
      %3888 = vst.msk [vmem:[%s197 + $0x50] sm:$0xff] %vm1409, %v3856
      %3889 = vst.msk [vmem:[%s197 + $0x58] sm:$0xff] %vm1409, %v3857
      %3890 = vst.msk [vmem:[%s197 + $0x60] sm:$0xff] %vm1409, %v3858
      %3891 = vst.msk [vmem:[%s197 + $0x68] sm:$0xff] %vm1409, %v3859
      %3892 = vst.msk [vmem:[%s197 + $0x70] sm:$0xff] %vm1409, %v3860
      %3893 = vst.msk [vmem:[%s197 + $0x78] sm:$0xff] %vm1409, %v3861
      %3894 = vst.msk [vmem:[%s197 + $0x80] sm:$0xff] %vm1409, %v3862
      %3895 = vst.msk [vmem:[%s197 + $0x88] sm:$0xff] %vm1409, %v3863
      %3896 = vst.msk [vmem:[%s197 + $0x90] sm:$0xff] %vm1409, %v3864
      %3897 = vst.msk [vmem:[%s197 + $0x98] sm:$0xff] %vm1409, %v3865
      %3898 = vst.msk [vmem:[%s197 + $0xa0] sm:$0xff] %vm1409, %v3866
      %3899 = vst.msk [vmem:[%s197 + $0xa8] sm:$0xff] %vm1409, %v3867
      %3900 = vst.msk [vmem:[%s197 + $0xb0] sm:$0xff] %vm1409, %v3868
      %3901 = vst.msk [vmem:[%s197 + $0xb8] sm:$0xff] %vm1409, %v3869
      %3902 = vst.msk [vmem:[%s197 + $0xc0] sm:$0xff] %vm1409, %v3870
      %3903 = vst.msk [vmem:[%s197 + $0xc8] sm:$0xff] %vm1409, %v3871
      %3904 = vst.msk [vmem:[%s197 + $0xd0] sm:$0xff] %vm1409, %v3872
      %3905 = vst.msk [vmem:[%s197 + $0xd8] sm:$0xff] %vm1409, %v3873
      %3906 = vst.msk [vmem:[%s197 + $0xe0] sm:$0xff] %vm1409, %v3874
      %3907 = vst.msk [vmem:[%s197 + $0xe8] sm:$0xff] %vm1409, %v3875
      %3908 = vst.msk [vmem:[%s197 + $0xf0] sm:$0xff] %vm1409, %v3876
      %3909 = vst.msk [vmem:[%s197 + $0xf8] sm:$0xff] %vm1409, %v3877
      %p3910 = scmp.lt.s32.totalorder %s15, 1
      %s3911 = scalar_select %p3910, %s15, 1
      %s3912 = smul.addr %s3911, 32
      %s3913 = smul.addr %s3912, 8
      %s3914 = scalar_lea.vmem %s4, %s3913
      // Predicated region
      $region37: #{double_conv_forward.1} parent=35 // pred_check
        %p3915 = pneg %p122
      $region38: #{double_conv_forward.1} parent=35 // pred_check_branch
        %3917 = sbr.rel (%p3915) target = $region40
      $region39: #{double_conv_forward.1} parent=35 // pred_region
        _
      $region40: #{double_conv_forward.1} parent=35 // pred_fallthru
        _
    $region36: #{double_conv_forward.1} parent=5 // pred_fallthru
      _
    %p3918 = scmp.le.s32.totalorder 2, %s10
    // Predicated region
    $region41: #{double_conv_forward.1} parent=5 // pred_check
      %p3919 = pneg %p3918
    $region42: #{double_conv_forward.1} parent=5 // pred_check_branch
      %3921 = sbr.rel (%p3919) target = $region44
    $region43: #{double_conv_forward.1} parent=5 // pred_region
      %s3922 = ssub.s32 %s10, 2
      // Predicated region
      $region45: #{double_conv_forward.1} parent=43 // pred_check
        %p3923 = pneg %p128
      $region46: #{double_conv_forward.1} parent=43 // pred_check_branch
        %3925 = sbr.rel (%p3923) target = $region48
      $region47: #{double_conv_forward.1} parent=43 // pred_region
        %p3926 = scmp.lt.s32.totalorder %s16, 1
        %s3927 = scalar_select %p3926, %s16, 1
        %s3928 = smul.addr %s3927, 32
        %s3929 = smul.addr %s3928, 8
        %s3930 = scalar_lea.vmem %s4, %s3929
      $region48: #{double_conv_forward.1} parent=43 // pred_fallthru
        _
    $region44: #{double_conv_forward.1} parent=5 // pred_fallthru
      _
  $region6: #{double_conv_forward.1} parent=0 // loop_footer
    %s14 = sadd.s32 1, %s10
  $region7: #{double_conv_forward.1} parent=0 // loop_footer_branch
    %9 = sbr.rel target = $region3
  $region8: #{double_conv_forward.1} parent=0 // loop_exit
    _

</llo_original>
